<compile_context>
chip_gen: v5e
topology: v5e:2x2
jax: 0.10.0
libtpu: 0.0.40
codegen_flags: <defaults>
</compile_context>

<pallas_src>
import math
import functools
import numpy as np

import jax
import jax.numpy as jnp
from jax.experimental import pallas as pl
from jax.experimental.pallas import tpu as pltpu

NEG_INF = -1e30  # large finite negative: avoids NaN on fully-masked softmax rows


def _round_up(x, m):
    return ((x + m - 1) // m) * m


# -----------------------------------------------------------------------------
# Kernel A: audio path + streamed vertice_map + 1-layer TransformerDecoder.
# grid = (B, num_vd_chunks); Vd-chunk axis is a reduction ("arbitrary").
# -----------------------------------------------------------------------------
def _decoder_kernel(
    # per-batch / chunked inputs
    audio_ref,       # (1, S, A)   f32 framed waveform
    vin_raw_ref,     # (1, T, C)   bf16 chunk of (concat(template, vertice[:-1]) - template)
    onehot_ref,      # (1, NS)     f32
    pe_ref,          # (T, D)      f32 periodic positional encoding slice
    # weights (bf16) / biases & LN params (f32)
    aud_w_ref, aud_b_ref,          # (A, D), (1, D)    folded enc + audio_feature_map
    obj_w_ref,                     # (NS, D)
    vm_w_ref, vm_b_ref,            # (C, D) chunk, (1, D)
    sa_wq_ref, sa_wk_ref, sa_wv_ref, sa_wo_ref,   # (H,D,dh)x3, (H,dh,D)
    sa_bq_ref, sa_bk_ref, sa_bv_ref, sa_bo_ref,   # (H,1,dh)x3, (1,D)
    ca_wq_ref, ca_wk_ref, ca_wv_ref, ca_wo_ref,
    ca_bq_ref, ca_bk_ref, ca_bv_ref, ca_bo_ref,
    ff1_w_ref, ff1_b_ref, ff2_w_ref, ff2_b_ref,
    ln1_g_ref, ln1_b_ref, ln2_g_ref, ln2_b_ref, ln3_g_ref, ln3_b_ref,
    # outputs
    out_vin_ref,     # (1, T, D)  vertice_input (post-PPE)
    out_dec_ref,     # (1, T, D)  decoder output (pre vertice_map_r)
    # scratch
    vin_acc,         # VMEM (T, D) f32
    *, nhead, eps, period, dataset, slopes,
):
    f32 = jnp.float32
    bf16 = jnp.bfloat16
    T, D = pe_ref.shape
    dh = D // nhead
    scale = 1.0 / math.sqrt(dh)

    c = pl.program_id(1)

    @pl.when(c == 0)
    def _init():
        vin_acc[...] = jnp.zeros_like(vin_acc)

    # --- streamed vertice_map: this Vd chunk's contribution (bf16 MXU, f32 acc)
    vin_acc[...] += jnp.dot(vin_raw_ref[0], vm_w_ref[...],
                            preferred_element_type=f32)

    # --------------------------- helpers ------------------------------------
    def mm(x, w_ref, b_ref=None):
        y = jnp.dot(x.astype(bf16), w_ref[...], preferred_element_type=f32)
        if b_ref is not None:
            y = y + b_ref[...]
        return y

    def layernorm(x, g_ref, b_ref):
        mu = jnp.mean(x, axis=-1, keepdims=True)
        xc = x - mu
        var = jnp.mean(xc * xc, axis=-1, keepdims=True)
        return xc * jax.lax.rsqrt(var + eps) * g_ref[...] + b_ref[...]

    def softmax(s):
        s = s - jnp.max(s, axis=-1, keepdims=True)
        p = jnp.exp(s)
        return p * pl.reciprocal(jnp.sum(p, axis=-1, keepdims=True), approx=True)

    def mha(x_q, x_kv, wq, wk, wv, wo, bq, bk, bv, bo, mask_fn):
        # Per-head weights are indexed on the major dim (no lane slicing of
        # activations); head outputs are fused straight into the Wo projection.
        xq = x_q.astype(bf16)
        xkv = x_kv.astype(bf16)
        acc = jnp.zeros((x_q.shape[0], D), f32)
        for h in range(nhead):                        # unrolled (H small)
            q = jnp.dot(xq, wq[h], preferred_element_type=f32) + bq[h]
            k = jnp.dot(xkv, wk[h], preferred_element_type=f32) + bk[h]
            v = jnp.dot(xkv, wv[h], preferred_element_type=f32) + bv[h]
            s = jax.lax.dot_general(q.astype(bf16), k.astype(bf16),
                                    (((1,), (1,)), ((), ())),
                                    preferred_element_type=f32) * scale
            p = softmax(s + mask_fn(h))
            ctx = jnp.dot(p.astype(bf16), v.astype(bf16),
                          preferred_element_type=f32)
            acc = acc + jnp.dot(ctx.astype(bf16), wo[h],
                                preferred_element_type=f32)
        return acc + bo[...]

    # --- decoder runs once, after the last vertice_map chunk ------------------
    @pl.when(c == pl.num_programs(1) - 1)
    def _decode():
        # teacher-forcing decoder input: vertice_map(vin) + style + PPE
        style = mm(onehot_ref[...], obj_w_ref)                       # (1, D)
        vin = vin_acc[...] + vm_b_ref[...] + style + pe_ref[...]     # (T, D)
        out_vin_ref[0] = vin

        # audio encoder stand-in + audio_feature_map (folded into one Linear)
        # TODO(synk): pretrained Wav2Vec2 has no clean Pallas equivalent.
        hidden = mm(audio_ref[0], aud_w_ref, aud_b_ref)              # (S, D)
        S = hidden.shape[0]

        # in-kernel masks (no resident mask buffers)
        ti = jax.lax.broadcasted_iota(jnp.int32, (T, T), 0)
        tj = jax.lax.broadcasted_iota(jnp.int32, (T, T), 1)
        diff = (ti - tj).astype(f32)
        causal_add = jnp.where(diff >= 0.0, 0.0, NEG_INF)
        # -((i - j) // period) for j <= i; +0.5 guard makes the f32 floor exact
        alibi = -jnp.floor((jnp.maximum(diff, 0.0) + 0.5) * (1.0 / period))
        mi = jax.lax.broadcasted_iota(jnp.int32, (T, S), 0)
        mj = jax.lax.broadcasted_iota(jnp.int32, (T, S), 1)
        if dataset == "BIWI":
            mem_add = jnp.where((mj == 2 * mi) | (mj == 2 * mi + 1), 0.0, NEG_INF)
        elif dataset == "vocaset":
            mem_add = jnp.where(mj == mi, 0.0, NEG_INF)
        else:
            mem_add = jnp.zeros((T, S), f32)

        # 1-layer post-norm TransformerDecoder (ReLU FF, dropout = eval)
        x = vin
        sa = mha(x, x, sa_wq_ref, sa_wk_ref, sa_wv_ref, sa_wo_ref,
                 sa_bq_ref, sa_bk_ref, sa_bv_ref, sa_bo_ref,
                 lambda h: causal_add + slopes[h] * alibi)
        x = layernorm(x + sa, ln1_g_ref, ln1_b_ref)

        ca = mha(x, hidden, ca_wq_ref, ca_wk_ref, ca_wv_ref, ca_wo_ref,
                 ca_bq_ref, ca_bk_ref, ca_bv_ref, ca_bo_ref,
                 lambda h: mem_add)
        x = layernorm(x + ca, ln2_g_ref, ln2_b_ref)

        ff = jnp.maximum(mm(x, ff1_w_ref, ff1_b_ref), 0.0)           # (T, 2D)
        ff = mm(ff, ff2_w_ref, ff2_b_ref)                            # (T, D)
        x = layernorm(x + ff, ln3_g_ref, ln3_b_ref)

        out_dec_ref[0] = x


# -----------------------------------------------------------------------------
# Kernel B: streamed vertice_map_r + template add, chunked over Vd output cols.
# grid = (B, num_vd_chunks); all steps independent.
# -----------------------------------------------------------------------------
def _vertice_map_r_kernel(x_ref, template_ref, vmr_w_ref, vmr_b_ref, out_ref):
    y = jnp.dot(x_ref[0].astype(jnp.bfloat16), vmr_w_ref[...],
                preferred_element_type=jnp.float32)                  # (T, C)
    out_ref[0] = y + vmr_b_ref[...] + template_ref[0]


# -----------------------------------------------------------------------------
# Host-side wrapper
# -----------------------------------------------------------------------------
def compute_tiling(vertice_dim):
    """Pick the Vd streaming chunk and scoped-VMEM limit from the device."""
    try:
        vmem_bytes = int(pltpu.get_tpu_info().vmem_capacity_bytes)
    except Exception:
        vmem_bytes = 0
    if not vmem_bytes:
        vmem_bytes = 64 << 20                     # conservative (v7x per-TC VMEM)
    # smaller chunks on 64 MiB-VMEM parts (v7x), larger on 128 MiB (v5e/v6e)
    target = 2048 if vmem_bytes <= (64 << 20) else 4096
    chunk = min(target, _round_up(vertice_dim, 128))
    vd_pad = _round_up(vertice_dim, chunk)
    vmem_limit = int(min(vmem_bytes * 3 // 4, 100 << 20))
    return chunk, vd_pad, vmem_limit


def faceformer_forward(audio, template, vertice, one_hot, weights, pe_full, *,
                       dataset, nhead, period, chunk, vd_pad, vmem_limit,
                       eps=1e-5):
    """Teacher-forcing forward.  Returns (vertice_out, vertice_input)."""
    B = audio.shape[0]
    T = vertice.shape[1]
    Vd = vertice.shape[2]
    D = pe_full.shape[-1]
    num_chunks = vd_pad // chunk

    # frame raw waveform -> (B, S, A); stand-in for the Wav2Vec2 feature path
    audio_frames = audio.reshape(B, T, -1).astype(jnp.float32)

    # teacher-forcing decoder input: template-centred, bf16, Vd padded to chunk
    tmpl3 = template[:, None, :].astype(jnp.float32)                 # (B,1,Vd)
    vin_raw = jnp.concatenate([tmpl3, vertice[:, :-1].astype(jnp.float32)],
                              axis=1)
    vin_raw = (vin_raw - tmpl3).astype(jnp.bfloat16)                 # (B,T,Vd)
    pad = vd_pad - Vd
    vin_raw = jnp.pad(vin_raw, ((0, 0), (0, 0), (0, pad)))
    tmpl_pad = jnp.pad(tmpl3, ((0, 0), (0, 0), (0, pad)))            # f32

    pe = pe_full[0, :T, :].astype(jnp.float32)                       # (T, D)
    one_hot = one_hot.astype(jnp.float32)
    slopes = tuple(float(s) for s in _get_slopes(nhead))

    w = weights
    a_inputs = [
        audio_frames, vin_raw, one_hot, pe,
        w["aud_w"], w["aud_b"], w["obj_w"], w["vm_w"], w["vm_b"],
        w["sa_wq"], w["sa_wk"], w["sa_wv"], w["sa_wo"],
        w["sa_bq"], w["sa_bk"], w["sa_bv"], w["sa_bo"],
        w["ca_wq"], w["ca_wk"], w["ca_wv"], w["ca_wo"],
        w["ca_bq"], w["ca_bk"], w["ca_bv"], w["ca_bo"],
        w["ff1_w"], w["ff1_b"], w["ff2_w"], w["ff2_b"],
        w["ln1_g"], w["ln1_b"], w["ln2_g"], w["ln2_b"], w["ln3_g"], w["ln3_b"],
    ]

    def const_spec(a):
        nd = a.ndim
        return pl.BlockSpec(a.shape, lambda b, c, _n=nd: (0,) * _n)

    def batch_spec(a):
        nd = a.ndim
        return pl.BlockSpec((1,) + a.shape[1:],
                            lambda b, c, _n=nd: (b,) + (0,) * (_n - 1))

    a_in_specs = [
        batch_spec(audio_frames),
        pl.BlockSpec((1, T, chunk), lambda b, c: (b, 0, c)),   # vin_raw chunk
        batch_spec(one_hot),
        const_spec(pe),
        const_spec(w["aud_w"]), const_spec(w["aud_b"]), const_spec(w["obj_w"]),
        pl.BlockSpec((chunk, D), lambda b, c: (c, 0)),          # vm_w chunk
        const_spec(w["vm_b"]),
    ] + [const_spec(a) for a in a_inputs[9:]]

    vertice_input, dec_out = pl.pallas_call(
        functools.partial(_decoder_kernel, nhead=nhead, eps=eps, period=period,
                          dataset=dataset, slopes=slopes),
        grid=(B, num_chunks),
        in_specs=a_in_specs,
        out_specs=(pl.BlockSpec((1, T, D), lambda b, c: (b, 0, 0)),
                   pl.BlockSpec((1, T, D), lambda b, c: (b, 0, 0))),
        out_shape=(jax.ShapeDtypeStruct((B, T, D), jnp.float32),
                   jax.ShapeDtypeStruct((B, T, D), jnp.float32)),
        scratch_shapes=[pltpu.VMEM((T, D), jnp.float32)],
        compiler_params=pltpu.CompilerParams(
            dimension_semantics=("parallel", "arbitrary"),
            vmem_limit_bytes=vmem_limit),
    )(*a_inputs)

    vertice_out_pad = pl.pallas_call(
        _vertice_map_r_kernel,
        grid=(B, num_chunks),
        in_specs=[
            pl.BlockSpec((1, T, D), lambda b, c: (b, 0, 0)),      # decoder out
            pl.BlockSpec((1, 1, chunk), lambda b, c: (b, 0, c)),  # template chunk
            pl.BlockSpec((D, chunk), lambda b, c: (0, c)),        # vmr_w chunk
            pl.BlockSpec((1, chunk), lambda b, c: (0, c)),        # vmr_b chunk
        ],
        out_specs=pl.BlockSpec((1, T, chunk), lambda b, c: (b, 0, c)),
        out_shape=jax.ShapeDtypeStruct((B, T, vd_pad), jnp.float32),
        compiler_params=pltpu.CompilerParams(
            dimension_semantics=("parallel", "parallel"),
            vmem_limit_bytes=vmem_limit),
    )(dec_out, tmpl_pad, w["vmr_w"], w["vmr_b"])

    return vertice_out_pad[:, :, :Vd], vertice_input


# -----------------------------------------------------------------------------
# Constant construction (host side, numpy — matches the reference code)
# -----------------------------------------------------------------------------
def _get_slopes(n):
    def power_of_2(n):
        start = 2 ** (-2 ** (-(math.log2(n) - 3)))
        return [start * start ** i for i in range(n)]
    if math.log2(n).is_integer():
        return power_of_2(n)
    cp = 2 ** math.floor(math.log2(n))
    return power_of_2(cp) + _get_slopes(2 * cp)[0::2][: n - cp]


def build_ppe_np(d_model, period, max_seq_len):
    pe = np.zeros((period, d_model), dtype=np.float32)
    position = np.arange(period, dtype=np.float32)[:, None]
    div_term = np.exp(np.arange(0, d_model, 2, dtype=np.float32)
                      * (-math.log(10000.0) / d_model))
    pe[:, 0::2] = np.sin(position * div_term)
    pe[:, 1::2] = np.cos(position * div_term)
    repeat_num = max_seq_len // period + 1
    return np.tile(pe, (repeat_num, 1))[None]       # (1, repeat*period, d_model)


# -----------------------------------------------------------------------------
# Parameter init (deterministic, synthetic — mirrors __init__ shapes)
# -----------------------------------------------------------------------------
def init_params(key, *, vertice_dim, feature_dim, num_subjects,
                audio_frame_dim, wav2vec_dim=768):
    keys = iter(jax.random.split(key, 32))

    def lin(fan_in, fan_out):
        w = jax.random.normal(next(keys), (fan_in, fan_out), jnp.float32) * 0.02
        b = jnp.zeros((fan_out,), jnp.float32)
        return w, b

    D = feature_dim
    p = {}
    p["obj_w"] = jax.random.normal(next(keys), (num_subjects, D), jnp.float32) * 0.02
    p["enc_w"], p["enc_b"] = lin(audio_frame_dim, wav2vec_dim)   # audio-encoder stand-in
    p["afm_w"], p["afm_b"] = lin(wav2vec_dim, D)                 # audio_feature_map
    p["vm_w"], p["vm_b"] = lin(vertice_dim, D)                   # vertice_map
    # vertice_map_r is zero-initialized in the reference (nn.init.constant_ 0)
    p["vmr_w"] = jnp.zeros((D, vertice_dim), jnp.float32)
    p["vmr_b"] = jnp.zeros((vertice_dim,), jnp.float32)

    def attn_params():
        q = {}
        q["wq"], q["bq"] = lin(D, D)
        q["wk"], q["bk"] = lin(D, D)
        q["wv"], q["bv"] = lin(D, D)
        q["wo"], q["bo"] = lin(D, D)
        return q

    p["self_attn"] = attn_params()
    p["cross_attn"] = attn_params()
    p["ff1_w"], p["ff1_b"] = lin(D, 2 * D)
    p["ff2_w"], p["ff2_b"] = lin(2 * D, D)
    for name in ("ln1", "ln2", "ln3"):
        p[name + "_g"] = jnp.ones((D,), jnp.float32)
        p[name + "_b"] = jnp.zeros((D,), jnp.float32)
    return p


def prepare_weights(p, *, nhead, vd_pad):
    """One-time host packing: bf16 weights, per-head attention layouts,
    folded audio path, Vd padding for chunked streaming."""
    bf = lambda w: jnp.asarray(w, jnp.bfloat16)
    row = lambda b: jnp.asarray(b, jnp.float32).reshape(1, -1)

    D = p["vm_w"].shape[1]
    dh = D // nhead
    Vd = p["vm_w"].shape[0]
    pad = vd_pad - Vd

    def heads_in(w):   # (D, D) -> (H, D, dh): per-head output columns
        return bf(jnp.transpose(w.reshape(D, nhead, dh), (1, 0, 2)))

    def heads_out(w):  # (D, D) -> (H, dh, D): per-head input rows
        return bf(w.reshape(nhead, dh, D))

    def heads_bias(b):  # (D,) -> (H, 1, dh)
        return jnp.asarray(b, jnp.float32).reshape(nhead, 1, dh)

    # fold the (linear) audio-encoder stand-in with audio_feature_map
    aud_w = p["enc_w"] @ p["afm_w"]
    aud_b = p["enc_b"] @ p["afm_w"] + p["afm_b"]

    sa, ca = p["self_attn"], p["cross_attn"]
    return {
        "aud_w": bf(aud_w), "aud_b": row(aud_b),
        "obj_w": bf(p["obj_w"]),
        "vm_w": bf(jnp.pad(p["vm_w"], ((0, pad), (0, 0)))),
        "vm_b": row(p["vm_b"]),
        "sa_wq": heads_in(sa["wq"]), "sa_wk": heads_in(sa["wk"]),
        "sa_wv": heads_in(sa["wv"]), "sa_wo": heads_out(sa["wo"]),
        "sa_bq": heads_bias(sa["bq"]), "sa_bk": heads_bias(sa["bk"]),
        "sa_bv": heads_bias(sa["bv"]), "sa_bo": row(sa["bo"]),
        "ca_wq": heads_in(ca["wq"]), "ca_wk": heads_in(ca["wk"]),
        "ca_wv": heads_in(ca["wv"]), "ca_wo": heads_out(ca["wo"]),
        "ca_bq": heads_bias(ca["bq"]), "ca_bk": heads_bias(ca["bk"]),
        "ca_bv": heads_bias(ca["bv"]), "ca_bo": row(ca["bo"]),
        "ff1_w": bf(p["ff1_w"]), "ff1_b": row(p["ff1_b"]),
        "ff2_w": bf(p["ff2_w"]), "ff2_b": row(p["ff2_b"]),
        "ln1_g": row(p["ln1_g"]), "ln1_b": row(p["ln1_b"]),
        "ln2_g": row(p["ln2_g"]), "ln2_b": row(p["ln2_b"]),
        "ln3_g": row(p["ln3_g"]), "ln3_b": row(p["ln3_b"]),
        "vmr_w": bf(jnp.pad(p["vmr_w"], ((0, 0), (0, pad)))),
        "vmr_b": row(jnp.pad(p["vmr_b"], ((0, pad),))),
    }


# -----------------------------------------------------------------------------
if __name__ == "__main__":
    # The reference passes tgt_mask of shape (n_head, T, T) directly to PyTorch
    # MHA, which implies batch_size == 1 (N*n_head == n_head); keep B=1.
    B = 1
    frame_num = 8
    vertice_dim = 12          # V*3 with V=4
    feature_dim = 32          # args.feature_dim
    nhead = 4
    period = 25               # args.period
    max_seq_len = 600
    num_subjects = 3          # len(args.train_subjects.split())
    audio_frame_dim = 64
    raw_wav = frame_num * audio_frame_dim
    dataset = "vocaset"

    key = jax.random.PRNGKey(0)
    k_a, k_t, k_v, k_p = jax.random.split(key, 4)
    audio = jax.random.normal(k_a, (B, raw_wav), jnp.float32)
    template = jax.random.normal(k_t, (B, vertice_dim), jnp.float32)
    vertice = jax.random.normal(k_v, (B, frame_num, vertice_dim), jnp.float32)
    one_hot = jax.nn.one_hot(jnp.zeros((B,), jnp.int32), num_subjects,
                             dtype=jnp.float32)

    chunk, vd_pad, vmem_limit = compute_tiling(vertice_dim)

    params = init_params(k_p, vertice_dim=vertice_dim, feature_dim=feature_dim,
                         num_subjects=num_subjects,
                         audio_frame_dim=audio_frame_dim)
    weights = prepare_weights(params, nhead=nhead, vd_pad=vd_pad)
    pe_full = jnp.asarray(build_ppe_np(feature_dim, period, max_seq_len))

    vertice_out, vertice_input = faceformer_forward(
        audio, template, vertice, one_hot, weights, pe_full,
        dataset=dataset, nhead=nhead, period=period,
        chunk=chunk, vd_pad=vd_pad, vmem_limit=vmem_limit)
    jax.block_until_ready((vertice_out, vertice_input))

    assert vertice_out.shape == (B, frame_num, vertice_dim)
    assert vertice_input.shape == (B, frame_num, feature_dim)
    assert bool(jnp.all(jnp.isfinite(vertice_out)))
    assert bool(jnp.all(jnp.isfinite(vertice_input)))
    print("KERNEL_OK")
</pallas_src>

<mosaic_0001>
module attributes {stable_mosaic.version = 11 : i64} {
  func.func @_decoder_kernel(%arg0: i32, %arg1: i32, %arg2: memref<1x8x64xf32, #tpu.memory_space<vmem>>, %arg3: memref<1x8x128xbf16, #tpu.memory_space<vmem>>, %arg4: memref<1x3xf32, #tpu.memory_space<vmem>>, %arg5: memref<8x32xf32, #tpu.memory_space<vmem>>, %arg6: memref<64x32xbf16, #tpu.memory_space<vmem>>, %arg7: memref<1x32xf32, #tpu.memory_space<vmem>>, %arg8: memref<3x32xbf16, #tpu.memory_space<vmem>>, %arg9: memref<128x32xbf16, #tpu.memory_space<vmem>>, %arg10: memref<1x32xf32, #tpu.memory_space<vmem>>, %arg11: memref<4x32x8xbf16, #tpu.memory_space<vmem>>, %arg12: memref<4x32x8xbf16, #tpu.memory_space<vmem>>, %arg13: memref<4x32x8xbf16, #tpu.memory_space<vmem>>, %arg14: memref<4x8x32xbf16, #tpu.memory_space<vmem>>, %arg15: memref<4x1x8xf32, #tpu.memory_space<vmem>>, %arg16: memref<4x1x8xf32, #tpu.memory_space<vmem>>, %arg17: memref<4x1x8xf32, #tpu.memory_space<vmem>>, %arg18: memref<1x32xf32, #tpu.memory_space<vmem>>, %arg19: memref<4x32x8xbf16, #tpu.memory_space<vmem>>, %arg20: memref<4x32x8xbf16, #tpu.memory_space<vmem>>, %arg21: memref<4x32x8xbf16, #tpu.memory_space<vmem>>, %arg22: memref<4x8x32xbf16, #tpu.memory_space<vmem>>, %arg23: memref<4x1x8xf32, #tpu.memory_space<vmem>>, %arg24: memref<4x1x8xf32, #tpu.memory_space<vmem>>, %arg25: memref<4x1x8xf32, #tpu.memory_space<vmem>>, %arg26: memref<1x32xf32, #tpu.memory_space<vmem>>, %arg27: memref<32x64xbf16, #tpu.memory_space<vmem>>, %arg28: memref<1x64xf32, #tpu.memory_space<vmem>>, %arg29: memref<64x32xbf16, #tpu.memory_space<vmem>>, %arg30: memref<1x32xf32, #tpu.memory_space<vmem>>, %arg31: memref<1x32xf32, #tpu.memory_space<vmem>>, %arg32: memref<1x32xf32, #tpu.memory_space<vmem>>, %arg33: memref<1x32xf32, #tpu.memory_space<vmem>>, %arg34: memref<1x32xf32, #tpu.memory_space<vmem>>, %arg35: memref<1x32xf32, #tpu.memory_space<vmem>>, %arg36: memref<1x32xf32, #tpu.memory_space<vmem>>, %arg37: memref<1x8x32xf32, #tpu.memory_space<vmem>>, %arg38: memref<1x8x32xf32, #tpu.memory_space<vmem>>, %arg39: memref<8x32xf32, #tpu.memory_space<vmem>>) attributes {dimension_semantics = [#tpu.dimension_semantics<parallel>, #tpu.dimension_semantics<arbitrary>], iteration_bounds = array<i64: 1, 1>, scalar_prefetch = 0 : i64, scratch_operands = 1 : i64, tpu.core_type = #tpu.core_type<tc>, window_params = [{transform_indices = @transform_0, window_bounds = array<i64: 1, 8, 64>}, {transform_indices = @transform_1, window_bounds = array<i64: 1, 8, 128>}, {transform_indices = @transform_2, window_bounds = array<i64: 1, 3>}, {pipeline_mode = #tpu.pipeline_mode<synchronous>, transform_indices = @transform_3, window_bounds = array<i64: 8, 32>}, {pipeline_mode = #tpu.pipeline_mode<synchronous>, transform_indices = @transform_4, window_bounds = array<i64: 64, 32>}, {pipeline_mode = #tpu.pipeline_mode<synchronous>, transform_indices = @transform_5, window_bounds = array<i64: 1, 32>}, {pipeline_mode = #tpu.pipeline_mode<synchronous>, transform_indices = @transform_6, window_bounds = array<i64: 3, 32>}, {transform_indices = @transform_7, window_bounds = array<i64: 128, 32>}, {pipeline_mode = #tpu.pipeline_mode<synchronous>, transform_indices = @transform_8, window_bounds = array<i64: 1, 32>}, {pipeline_mode = #tpu.pipeline_mode<synchronous>, transform_indices = @transform_9, window_bounds = array<i64: 4, 32, 8>}, {pipeline_mode = #tpu.pipeline_mode<synchronous>, transform_indices = @transform_10, window_bounds = array<i64: 4, 32, 8>}, {pipeline_mode = #tpu.pipeline_mode<synchronous>, transform_indices = @transform_11, window_bounds = array<i64: 4, 32, 8>}, {pipeline_mode = #tpu.pipeline_mode<synchronous>, transform_indices = @transform_12, window_bounds = array<i64: 4, 8, 32>}, {pipeline_mode = #tpu.pipeline_mode<synchronous>, transform_indices = @transform_13, window_bounds = array<i64: 4, 1, 8>}, {pipeline_mode = #tpu.pipeline_mode<synchronous>, transform_indices = @transform_14, window_bounds = array<i64: 4, 1, 8>}, {pipeline_mode = #tpu.pipeline_mode<synchronous>, transform_indices = @transform_15, window_bounds = array<i64: 4, 1, 8>}, {pipeline_mode = #tpu.pipeline_mode<synchronous>, transform_indices = @transform_16, window_bounds = array<i64: 1, 32>}, {pipeline_mode = #tpu.pipeline_mode<synchronous>, transform_indices = @transform_17, window_bounds = array<i64: 4, 32, 8>}, {pipeline_mode = #tpu.pipeline_mode<synchronous>, transform_indices = @transform_18, window_bounds = array<i64: 4, 32, 8>}, {pipeline_mode = #tpu.pipeline_mode<synchronous>, transform_indices = @transform_19, window_bounds = array<i64: 4, 32, 8>}, {pipeline_mode = #tpu.pipeline_mode<synchronous>, transform_indices = @transform_20, window_bounds = array<i64: 4, 8, 32>}, {pipeline_mode = #tpu.pipeline_mode<synchronous>, transform_indices = @transform_21, window_bounds = array<i64: 4, 1, 8>}, {pipeline_mode = #tpu.pipeline_mode<synchronous>, transform_indices = @transform_22, window_bounds = array<i64: 4, 1, 8>}, {pipeline_mode = #tpu.pipeline_mode<synchronous>, transform_indices = @transform_23, window_bounds = array<i64: 4, 1, 8>}, {pipeline_mode = #tpu.pipeline_mode<synchronous>, transform_indices = @transform_24, window_bounds = array<i64: 1, 32>}, {pipeline_mode = #tpu.pipeline_mode<synchronous>, transform_indices = @transform_25, window_bounds = array<i64: 32, 64>}, {pipeline_mode = #tpu.pipeline_mode<synchronous>, transform_indices = @transform_26, window_bounds = array<i64: 1, 64>}, {pipeline_mode = #tpu.pipeline_mode<synchronous>, transform_indices = @transform_27, window_bounds = array<i64: 64, 32>}, {pipeline_mode = #tpu.pipeline_mode<synchronous>, transform_indices = @transform_28, window_bounds = array<i64: 1, 32>}, {pipeline_mode = #tpu.pipeline_mode<synchronous>, transform_indices = @transform_29, window_bounds = array<i64: 1, 32>}, {pipeline_mode = #tpu.pipeline_mode<synchronous>, transform_indices = @transform_30, window_bounds = array<i64: 1, 32>}, {pipeline_mode = #tpu.pipeline_mode<synchronous>, transform_indices = @transform_31, window_bounds = array<i64: 1, 32>}, {pipeline_mode = #tpu.pipeline_mode<synchronous>, transform_indices = @transform_32, window_bounds = array<i64: 1, 32>}, {pipeline_mode = #tpu.pipeline_mode<synchronous>, transform_indices = @transform_33, window_bounds = array<i64: 1, 32>}, {pipeline_mode = #tpu.pipeline_mode<synchronous>, transform_indices = @transform_34, window_bounds = array<i64: 1, 32>}, {transform_indices = @transform_35, window_bounds = array<i64: 1, 8, 32>}, {transform_indices = @transform_36, window_bounds = array<i64: 1, 8, 32>}]} {
    %c0_i32 = arith.constant 0 : i32
    %0 = arith.cmpi eq, %arg1, %c0_i32 : i32
    %1 = arith.extui %0 : i1 to i32
    %c0_i32_0 = arith.constant 0 : i32
    %2 = arith.cmpi ne, %1, %c0_i32_0 : i32
    scf.if %2 {
      %cst_11 = arith.constant 0.000000e+00 : f32
      %13 = vector.broadcast %cst_11 : f32 to vector<8x32xf32>
      %c0_12 = arith.constant 0 : index
      %c0_13 = arith.constant 0 : index
      %14 = vector.load %arg39[%c0_12, %c0_13] : memref<8x32xf32, #tpu.memory_space<vmem>>, vector<8x32xf32>
      tpu.vector_store %arg39[%c0_12, %c0_13], %13 {strides = array<i32>} : memref<8x32xf32, #tpu.memory_space<vmem>>, vector<8x32xf32>,
    } else {
    }
    %c0 = arith.constant 0 : index
    %c0_1 = arith.constant 0 : index
    %3 = vector.load %arg39[%c0, %c0_1] : memref<8x32xf32, #tpu.memory_space<vmem>>, vector<8x32xf32>
    %c0_2 = arith.constant 0 : index
    %c0_3 = arith.constant 0 : index
    %c0_4 = arith.constant 0 : index
    %4 = vector.load %arg3[%c0_2, %c0_3, %c0_4] : memref<1x8x128xbf16, #tpu.memory_space<vmem>>, vector<1x8x128xbf16>
    %5 = vector.shape_cast %4 : vector<1x8x128xbf16> to vector<8x128xbf16>
    %c0_5 = arith.constant 0 : index
    %c0_6 = arith.constant 0 : index
    %6 = vector.load %arg9[%c0_5, %c0_6] : memref<128x32xbf16, #tpu.memory_space<vmem>>, vector<128x32xbf16>
    %cst = arith.constant dense<0.000000e+00> : vector<8x32xf32>
    %7 = tpu.matmul %5, %6, %cst {dimension_numbers = #tpu.dot_dimension_numbers<[1], [0], [0], [1], [0, 0, 1, 1], [], []>} : vector<8x128xbf16>, vector<128x32xbf16>, vector<8x32xf32> -> vector<8x32xf32>
    %8 = arith.addf %3, %7 : vector<8x32xf32>
    %c0_7 = arith.constant 0 : index
    %c0_8 = arith.constant 0 : index
    %9 = vector.load %arg39[%c0_7, %c0_8] : memref<8x32xf32, #tpu.memory_space<vmem>>, vector<8x32xf32>
    tpu.vector_store %arg39[%c0_7, %c0_8], %8 {strides = array<i32>} : memref<8x32xf32, #tpu.memory_space<vmem>>, vector<8x32xf32>,
    %c0_i32_9 = arith.constant 0 : i32
    %10 = arith.cmpi eq, %arg1, %c0_i32_9 : i32
    %11 = arith.extui %10 : i1 to i32
    %c0_i32_10 = arith.constant 0 : i32
    %12 = arith.cmpi ne, %11, %c0_i32_10 : i32
    scf.if %12 {
      %c0_11 = arith.constant 0 : index
      %c0_12 = arith.constant 0 : index
      %13 = vector.load %arg4[%c0_11, %c0_12] : memref<1x3xf32, #tpu.memory_space<vmem>>, vector<1x3xf32>
      %14 = arith.truncf %13 : vector<1x3xf32> to vector<1x3xbf16>
      %c0_13 = arith.constant 0 : index
      %c0_14 = arith.constant 0 : index
      %15 = vector.load %arg8[%c0_13, %c0_14] : memref<3x32xbf16, #tpu.memory_space<vmem>>, vector<3x32xbf16>
      %cst_15 = arith.constant dense<0.000000e+00> : vector<1x32xf32>
      %16 = tpu.matmul %14, %15, %cst_15 {dimension_numbers = #tpu.dot_dimension_numbers<[1], [0], [0], [1], [0, 0, 1, 1], [], []>} : vector<1x3xbf16>, vector<3x32xbf16>, vector<1x32xf32> -> vector<1x32xf32>
      %c0_16 = arith.constant 0 : index
      %c0_17 = arith.constant 0 : index
      %17 = vector.load %arg39[%c0_16, %c0_17] : memref<8x32xf32, #tpu.memory_space<vmem>>, vector<8x32xf32>
      %c0_18 = arith.constant 0 : index
      %c0_19 = arith.constant 0 : index
      %18 = vector.load %arg10[%c0_18, %c0_19] : memref<1x32xf32, #tpu.memory_space<vmem>>, vector<1x32xf32>
      %19 = vector.broadcast %18 : vector<1x32xf32> to vector<8x32xf32>
      %20 = arith.addf %17, %19 : vector<8x32xf32>
      %21 = vector.broadcast %16 : vector<1x32xf32> to vector<8x32xf32>
      %22 = arith.addf %20, %21 : vector<8x32xf32>
      %c0_20 = arith.constant 0 : index
      %c0_21 = arith.constant 0 : index
      %23 = vector.load %arg5[%c0_20, %c0_21] : memref<8x32xf32, #tpu.memory_space<vmem>>, vector<8x32xf32>
      %24 = arith.addf %22, %23 : vector<8x32xf32>
      %c0_22 = arith.constant 0 : index
      %c0_23 = arith.constant 0 : index
      %c0_24 = arith.constant 0 : index
      %25 = vector.load %arg37[%c0_22, %c0_23, %c0_24] : memref<1x8x32xf32, #tpu.memory_space<vmem>>, vector<1x8x32xf32>
      %26 = vector.shape_cast %25 : vector<1x8x32xf32> to vector<8x32xf32>
      %27 = vector.shape_cast %24 : vector<8x32xf32> to vector<1x8x32xf32>
      tpu.vector_store %arg37[%c0_22, %c0_23, %c0_24], %27 {strides = array<i32>} : memref<1x8x32xf32, #tpu.memory_space<vmem>>, vector<1x8x32xf32>,
      %c0_25 = arith.constant 0 : index
      %c0_26 = arith.constant 0 : index
      %c0_27 = arith.constant 0 : index
      %28 = vector.load %arg2[%c0_25, %c0_26, %c0_27] : memref<1x8x64xf32, #tpu.memory_space<vmem>>, vector<1x8x64xf32>
      %29 = vector.shape_cast %28 : vector<1x8x64xf32> to vector<8x64xf32>
      %30 = arith.truncf %29 : vector<8x64xf32> to vector<8x64xbf16>
      %c0_28 = arith.constant 0 : index
      %c0_29 = arith.constant 0 : index
      %31 = vector.load %arg6[%c0_28, %c0_29] : memref<64x32xbf16, #tpu.memory_space<vmem>>, vector<64x32xbf16>
      %cst_30 = arith.constant dense<0.000000e+00> : vector<8x32xf32>
      %32 = tpu.matmul %30, %31, %cst_30 {dimension_numbers = #tpu.dot_dimension_numbers<[1], [0], [0], [1], [0, 0, 1, 1], [], []>} : vector<8x64xbf16>, vector<64x32xbf16>, vector<8x32xf32> -> vector<8x32xf32>
      %c0_31 = arith.constant 0 : index
      %c0_32 = arith.constant 0 : index
      %33 = vector.load %arg7[%c0_31, %c0_32] : memref<1x32xf32, #tpu.memory_space<vmem>>, vector<1x32xf32>
      %34 = vector.broadcast %33 : vector<1x32xf32> to vector<8x32xf32>
      %35 = arith.addf %32, %34 : vector<8x32xf32>
      %36 = tpu.iota {dimensions = array<i32: 0>} : vector<8x8xi32>
      %37 = tpu.iota {dimensions = array<i32: 1>} : vector<8x8xi32>
      %38 = arith.subi %36, %37 : vector<8x8xi32>
      %39 = arith.sitofp %38 : vector<8x8xi32> to vector<8x8xf32>
      %cst_33 = arith.constant 0.000000e+00 : f32
      %40 = vector.broadcast %cst_33 : f32 to vector<8x8xf32>
      %41 = arith.cmpf oge, %39, %40 : vector<8x8xf32>
      %cst_34 = arith.constant 0.000000e+00 : f32
      %cst_35 = arith.constant -1.000000e+30 : f32
      %42 = vector.broadcast %cst_34 : f32 to vector<8x8xf32>
      %43 = vector.broadcast %cst_35 : f32 to vector<8x8xf32>
      %44 = arith.select %41, %42, %43 : vector<8x8xi1>, vector<8x8xf32>
      %cst_36 = arith.constant 0.000000e+00 : f32
      %45 = vector.broadcast %cst_36 : f32 to vector<8x8xf32>
      %46 = arith.maximumf %39, %45 : vector<8x8xf32>
      %cst_37 = arith.constant 5.000000e-01 : f32
      %47 = vector.broadcast %cst_37 : f32 to vector<8x8xf32>
      %48 = arith.addf %46, %47 : vector<8x8xf32>
      %cst_38 = arith.constant 4.000000e-02 : f32
      %49 = vector.broadcast %cst_38 : f32 to vector<8x8xf32>
      %50 = arith.mulf %48, %49 : vector<8x8xf32>
      %51 = math.floor %50 : vector<8x8xf32>
      %cst_39 = arith.constant 0.000000e+00 : f32
      %52 = vector.broadcast %cst_39 : f32 to vector<8x8xf32>
      %53 = arith.subf %52, %51 : vector<8x8xf32>
      %54 = tpu.iota {dimensions = array<i32: 0>} : vector<8x8xi32>
      %55 = tpu.iota {dimensions = array<i32: 1>} : vector<8x8xi32>
      %56 = arith.cmpi eq, %55, %54 : vector<8x8xi32>
      %cst_40 = arith.constant 0.000000e+00 : f32
      %cst_41 = arith.constant -1.000000e+30 : f32
      %57 = vector.broadcast %cst_40 : f32 to vector<8x8xf32>
      %58 = vector.broadcast %cst_41 : f32 to vector<8x8xf32>
      %59 = arith.select %56, %57, %58 : vector<8x8xi1>, vector<8x8xf32>
      %60 = arith.truncf %24 : vector<8x32xf32> to vector<8x32xbf16>
      %61 = arith.truncf %24 : vector<8x32xf32> to vector<8x32xbf16>
      %cst_42 = arith.constant 0.000000e+00 : f32
      %62 = vector.broadcast %cst_42 : f32 to vector<8x32xf32>
      %c0_43 = arith.constant 0 : index
      %c0_44 = arith.constant 0 : index
      %c0_45 = arith.constant 0 : index
      %63 = vector.load %arg11[%c0_43, %c0_44, %c0_45] : memref<4x32x8xbf16, #tpu.memory_space<vmem>>, vector<1x32x8xbf16>
      %64 = vector.shape_cast %63 : vector<1x32x8xbf16> to vector<32x8xbf16>
      %cst_46 = arith.constant dense<0.000000e+00> : vector<8x8xf32>
      %65 = tpu.matmul %60, %64, %cst_46 {dimension_numbers = #tpu.dot_dimension_numbers<[1], [0], [0], [1], [0, 0, 1, 1], [], []>} : vector<8x32xbf16>, vector<32x8xbf16>, vector<8x8xf32> -> vector<8x8xf32>
      %c0_47 = arith.constant 0 : index
      %c0_48 = arith.constant 0 : index
      %c0_49 = arith.constant 0 : index
      %66 = vector.load %arg15[%c0_47, %c0_48, %c0_49] : memref<4x1x8xf32, #tpu.memory_space<vmem>>, vector<1x1x8xf32>
      %67 = vector.shape_cast %66 : vector<1x1x8xf32> to vector<1x8xf32>
      %68 = vector.broadcast %67 : vector<1x8xf32> to vector<8x8xf32>
      %69 = arith.addf %65, %68 : vector<8x8xf32>
      %c0_50 = arith.constant 0 : index
      %c0_51 = arith.constant 0 : index
      %c0_52 = arith.constant 0 : index
      %70 = vector.load %arg12[%c0_50, %c0_51, %c0_52] : memref<4x32x8xbf16, #tpu.memory_space<vmem>>, vector<1x32x8xbf16>
      %71 = vector.shape_cast %70 : vector<1x32x8xbf16> to vector<32x8xbf16>
      %cst_53 = arith.constant dense<0.000000e+00> : vector<8x8xf32>
      %72 = tpu.matmul %61, %71, %cst_53 {dimension_numbers = #tpu.dot_dimension_numbers<[1], [0], [0], [1], [0, 0, 1, 1], [], []>} : vector<8x32xbf16>, vector<32x8xbf16>, vector<8x8xf32> -> vector<8x8xf32>
      %c0_54 = arith.constant 0 : index
      %c0_55 = arith.constant 0 : index
      %c0_56 = arith.constant 0 : index
      %73 = vector.load %arg16[%c0_54, %c0_55, %c0_56] : memref<4x1x8xf32, #tpu.memory_space<vmem>>, vector<1x1x8xf32>
      %74 = vector.shape_cast %73 : vector<1x1x8xf32> to vector<1x8xf32>
      %75 = vector.broadcast %74 : vector<1x8xf32> to vector<8x8xf32>
      %76 = arith.addf %72, %75 : vector<8x8xf32>
      %c0_57 = arith.constant 0 : index
      %c0_58 = arith.constant 0 : index
      %c0_59 = arith.constant 0 : index
      %77 = vector.load %arg13[%c0_57, %c0_58, %c0_59] : memref<4x32x8xbf16, #tpu.memory_space<vmem>>, vector<1x32x8xbf16>
      %78 = vector.shape_cast %77 : vector<1x32x8xbf16> to vector<32x8xbf16>
      %cst_60 = arith.constant dense<0.000000e+00> : vector<8x8xf32>
      %79 = tpu.matmul %61, %78, %cst_60 {dimension_numbers = #tpu.dot_dimension_numbers<[1], [0], [0], [1], [0, 0, 1, 1], [], []>} : vector<8x32xbf16>, vector<32x8xbf16>, vector<8x8xf32> -> vector<8x8xf32>
      %c0_61 = arith.constant 0 : index
      %c0_62 = arith.constant 0 : index
      %c0_63 = arith.constant 0 : index
      %80 = vector.load %arg17[%c0_61, %c0_62, %c0_63] : memref<4x1x8xf32, #tpu.memory_space<vmem>>, vector<1x1x8xf32>
      %81 = vector.shape_cast %80 : vector<1x1x8xf32> to vector<1x8xf32>
      %82 = vector.broadcast %81 : vector<1x8xf32> to vector<8x8xf32>
      %83 = arith.addf %79, %82 : vector<8x8xf32>
      %84 = arith.truncf %69 : vector<8x8xf32> to vector<8x8xbf16>
      %85 = arith.truncf %76 : vector<8x8xf32> to vector<8x8xbf16>
      %cst_64 = arith.constant dense<0.000000e+00> : vector<8x8xf32>
      %86 = tpu.matmul %84, %85, %cst_64 {dimension_numbers = #tpu.dot_dimension_numbers<[1], [1], [0], [0], [0, 0, 1, 0], [], []>} : vector<8x8xbf16>, vector<8x8xbf16>, vector<8x8xf32> -> vector<8x8xf32>
      %cst_65 = arith.constant 0.353553385 : f32
      %87 = vector.broadcast %cst_65 : f32 to vector<8x8xf32>
      %88 = arith.mulf %86, %87 : vector<8x8xf32>
      %cst_66 = arith.constant 2.500000e-01 : f32
      %89 = vector.broadcast %cst_66 : f32 to vector<8x8xf32>
      %90 = arith.mulf %89, %53 : vector<8x8xf32>
      %91 = arith.addf %44, %90 : vector<8x8xf32>
      %92 = arith.addf %88, %91 : vector<8x8xf32>
      %cst_67 = arith.constant dense<0xFF800000> : vector<8xf32>
      %93 = vector.multi_reduction <maximumf>, %92, %cst_67 [1] : vector<8x8xf32> to vector<8xf32>
      %94 = vector.shape_cast %93 : vector<8xf32> to vector<8x1xf32>
      %95 = vector.broadcast %94 : vector<8x1xf32> to vector<8x8xf32>
      %96 = arith.subf %92, %95 : vector<8x8xf32>
      %97 = math.exp %96 : vector<8x8xf32>
      %cst_68 = arith.constant dense<0.000000e+00> : vector<8xf32>
      %98 = vector.multi_reduction <add>, %97, %cst_68 [1] : vector<8x8xf32> to vector<8xf32>
      %99 = vector.shape_cast %98 : vector<8xf32> to vector<8x1xf32>
      %100 = tpu.reciprocal %99 {approx = true} : vector<8x1xf32> -> vector<8x1xf32>
      %101 = vector.broadcast %100 : vector<8x1xf32> to vector<8x8xf32>
      %102 = arith.mulf %97, %101 : vector<8x8xf32>
      %103 = arith.truncf %102 : vector<8x8xf32> to vector<8x8xbf16>
      %104 = arith.truncf %83 : vector<8x8xf32> to vector<8x8xbf16>
      %cst_69 = arith.constant dense<0.000000e+00> : vector<8x8xf32>
      %105 = tpu.matmul %103, %104, %cst_69 {dimension_numbers = #tpu.dot_dimension_numbers<[1], [0], [0], [1], [0, 0, 1, 1], [], []>} : vector<8x8xbf16>, vector<8x8xbf16>, vector<8x8xf32> -> vector<8x8xf32>
      %106 = arith.truncf %105 : vector<8x8xf32> to vector<8x8xbf16>
      %c0_70 = arith.constant 0 : index
      %c0_71 = arith.constant 0 : index
      %c0_72 = arith.constant 0 : index
      %107 = vector.load %arg14[%c0_70, %c0_71, %c0_72] : memref<4x8x32xbf16, #tpu.memory_space<vmem>>, vector<1x8x32xbf16>
      %108 = vector.shape_cast %107 : vector<1x8x32xbf16> to vector<8x32xbf16>
      %cst_73 = arith.constant dense<0.000000e+00> : vector<8x32xf32>
      %109 = tpu.matmul %106, %108, %cst_73 {dimension_numbers = #tpu.dot_dimension_numbers<[1], [0], [0], [1], [0, 0, 1, 1], [], []>} : vector<8x8xbf16>, vector<8x32xbf16>, vector<8x32xf32> -> vector<8x32xf32>
      %110 = arith.addf %62, %109 : vector<8x32xf32>
      %c1 = arith.constant 1 : index
      %c0_74 = arith.constant 0 : index
      %c0_75 = arith.constant 0 : index
      %111 = vector.load %arg11[%c1, %c0_74, %c0_75] : memref<4x32x8xbf16, #tpu.memory_space<vmem>>, vector<1x32x8xbf16>
      %112 = vector.shape_cast %111 : vector<1x32x8xbf16> to vector<32x8xbf16>
      %cst_76 = arith.constant dense<0.000000e+00> : vector<8x8xf32>
      %113 = tpu.matmul %60, %112, %cst_76 {dimension_numbers = #tpu.dot_dimension_numbers<[1], [0], [0], [1], [0, 0, 1, 1], [], []>} : vector<8x32xbf16>, vector<32x8xbf16>, vector<8x8xf32> -> vector<8x8xf32>
      %c1_77 = arith.constant 1 : index
      %c0_78 = arith.constant 0 : index
      %c0_79 = arith.constant 0 : index
      %114 = vector.load %arg15[%c1_77, %c0_78, %c0_79] : memref<4x1x8xf32, #tpu.memory_space<vmem>>, vector<1x1x8xf32>
      %115 = vector.shape_cast %114 : vector<1x1x8xf32> to vector<1x8xf32>
      %116 = vector.broadcast %115 : vector<1x8xf32> to vector<8x8xf32>
      %117 = arith.addf %113, %116 : vector<8x8xf32>
      %c1_80 = arith.constant 1 : index
      %c0_81 = arith.constant 0 : index
      %c0_82 = arith.constant 0 : index
      %118 = vector.load %arg12[%c1_80, %c0_81, %c0_82] : memref<4x32x8xbf16, #tpu.memory_space<vmem>>, vector<1x32x8xbf16>
      %119 = vector.shape_cast %118 : vector<1x32x8xbf16> to vector<32x8xbf16>
      %cst_83 = arith.constant dense<0.000000e+00> : vector<8x8xf32>
      %120 = tpu.matmul %61, %119, %cst_83 {dimension_numbers = #tpu.dot_dimension_numbers<[1], [0], [0], [1], [0, 0, 1, 1], [], []>} : vector<8x32xbf16>, vector<32x8xbf16>, vector<8x8xf32> -> vector<8x8xf32>
      %c1_84 = arith.constant 1 : index
      %c0_85 = arith.constant 0 : index
      %c0_86 = arith.constant 0 : index
      %121 = vector.load %arg16[%c1_84, %c0_85, %c0_86] : memref<4x1x8xf32, #tpu.memory_space<vmem>>, vector<1x1x8xf32>
      %122 = vector.shape_cast %121 : vector<1x1x8xf32> to vector<1x8xf32>
      %123 = vector.broadcast %122 : vector<1x8xf32> to vector<8x8xf32>
      %124 = arith.addf %120, %123 : vector<8x8xf32>
      %c1_87 = arith.constant 1 : index
      %c0_88 = arith.constant 0 : index
      %c0_89 = arith.constant 0 : index
      %125 = vector.load %arg13[%c1_87, %c0_88, %c0_89] : memref<4x32x8xbf16, #tpu.memory_space<vmem>>, vector<1x32x8xbf16>
      %126 = vector.shape_cast %125 : vector<1x32x8xbf16> to vector<32x8xbf16>
      %cst_90 = arith.constant dense<0.000000e+00> : vector<8x8xf32>
      %127 = tpu.matmul %61, %126, %cst_90 {dimension_numbers = #tpu.dot_dimension_numbers<[1], [0], [0], [1], [0, 0, 1, 1], [], []>} : vector<8x32xbf16>, vector<32x8xbf16>, vector<8x8xf32> -> vector<8x8xf32>
      %c1_91 = arith.constant 1 : index
      %c0_92 = arith.constant 0 : index
      %c0_93 = arith.constant 0 : index
      %128 = vector.load %arg17[%c1_91, %c0_92, %c0_93] : memref<4x1x8xf32, #tpu.memory_space<vmem>>, vector<1x1x8xf32>
      %129 = vector.shape_cast %128 : vector<1x1x8xf32> to vector<1x8xf32>
      %130 = vector.broadcast %129 : vector<1x8xf32> to vector<8x8xf32>
      %131 = arith.addf %127, %130 : vector<8x8xf32>
      %132 = arith.truncf %117 : vector<8x8xf32> to vector<8x8xbf16>
      %133 = arith.truncf %124 : vector<8x8xf32> to vector<8x8xbf16>
      %cst_94 = arith.constant dense<0.000000e+00> : vector<8x8xf32>
      %134 = tpu.matmul %132, %133, %cst_94 {dimension_numbers = #tpu.dot_dimension_numbers<[1], [1], [0], [0], [0, 0, 1, 0], [], []>} : vector<8x8xbf16>, vector<8x8xbf16>, vector<8x8xf32> -> vector<8x8xf32>
      %cst_95 = arith.constant 0.353553385 : f32
      %135 = vector.broadcast %cst_95 : f32 to vector<8x8xf32>
      %136 = arith.mulf %134, %135 : vector<8x8xf32>
      %cst_96 = arith.constant 6.250000e-02 : f32
      %137 = vector.broadcast %cst_96 : f32 to vector<8x8xf32>
      %138 = arith.mulf %137, %53 : vector<8x8xf32>
      %139 = arith.addf %44, %138 : vector<8x8xf32>
      %140 = arith.addf %136, %139 : vector<8x8xf32>
      %cst_97 = arith.constant dense<0xFF800000> : vector<8xf32>
      %141 = vector.multi_reduction <maximumf>, %140, %cst_97 [1] : vector<8x8xf32> to vector<8xf32>
      %142 = vector.shape_cast %141 : vector<8xf32> to vector<8x1xf32>
      %143 = vector.broadcast %142 : vector<8x1xf32> to vector<8x8xf32>
      %144 = arith.subf %140, %143 : vector<8x8xf32>
      %145 = math.exp %144 : vector<8x8xf32>
      %cst_98 = arith.constant dense<0.000000e+00> : vector<8xf32>
      %146 = vector.multi_reduction <add>, %145, %cst_98 [1] : vector<8x8xf32> to vector<8xf32>
      %147 = vector.shape_cast %146 : vector<8xf32> to vector<8x1xf32>
      %148 = tpu.reciprocal %147 {approx = true} : vector<8x1xf32> -> vector<8x1xf32>
      %149 = vector.broadcast %148 : vector<8x1xf32> to vector<8x8xf32>
      %150 = arith.mulf %145, %149 : vector<8x8xf32>
      %151 = arith.truncf %150 : vector<8x8xf32> to vector<8x8xbf16>
      %152 = arith.truncf %131 : vector<8x8xf32> to vector<8x8xbf16>
      %cst_99 = arith.constant dense<0.000000e+00> : vector<8x8xf32>
      %153 = tpu.matmul %151, %152, %cst_99 {dimension_numbers = #tpu.dot_dimension_numbers<[1], [0], [0], [1], [0, 0, 1, 1], [], []>} : vector<8x8xbf16>, vector<8x8xbf16>, vector<8x8xf32> -> vector<8x8xf32>
      %154 = arith.truncf %153 : vector<8x8xf32> to vector<8x8xbf16>
      %c1_100 = arith.constant 1 : index
      %c0_101 = arith.constant 0 : index
      %c0_102 = arith.constant 0 : index
      %155 = vector.load %arg14[%c1_100, %c0_101, %c0_102] : memref<4x8x32xbf16, #tpu.memory_space<vmem>>, vector<1x8x32xbf16>
      %156 = vector.shape_cast %155 : vector<1x8x32xbf16> to vector<8x32xbf16>
      %cst_103 = arith.constant dense<0.000000e+00> : vector<8x32xf32>
      %157 = tpu.matmul %154, %156, %cst_103 {dimension_numbers = #tpu.dot_dimension_numbers<[1], [0], [0], [1], [0, 0, 1, 1], [], []>} : vector<8x8xbf16>, vector<8x32xbf16>, vector<8x32xf32> -> vector<8x32xf32>
      %158 = arith.addf %110, %157 : vector<8x32xf32>
      %c2 = arith.constant 2 : index
      %c0_104 = arith.constant 0 : index
      %c0_105 = arith.constant 0 : index
      %159 = vector.load %arg11[%c2, %c0_104, %c0_105] : memref<4x32x8xbf16, #tpu.memory_space<vmem>>, vector<1x32x8xbf16>
      %160 = vector.shape_cast %159 : vector<1x32x8xbf16> to vector<32x8xbf16>
      %cst_106 = arith.constant dense<0.000000e+00> : vector<8x8xf32>
      %161 = tpu.matmul %60, %160, %cst_106 {dimension_numbers = #tpu.dot_dimension_numbers<[1], [0], [0], [1], [0, 0, 1, 1], [], []>} : vector<8x32xbf16>, vector<32x8xbf16>, vector<8x8xf32> -> vector<8x8xf32>
      %c2_107 = arith.constant 2 : index
      %c0_108 = arith.constant 0 : index
      %c0_109 = arith.constant 0 : index
      %162 = vector.load %arg15[%c2_107, %c0_108, %c0_109] : memref<4x1x8xf32, #tpu.memory_space<vmem>>, vector<1x1x8xf32>
      %163 = vector.shape_cast %162 : vector<1x1x8xf32> to vector<1x8xf32>
      %164 = vector.broadcast %163 : vector<1x8xf32> to vector<8x8xf32>
      %165 = arith.addf %161, %164 : vector<8x8xf32>
      %c2_110 = arith.constant 2 : index
      %c0_111 = arith.constant 0 : index
      %c0_112 = arith.constant 0 : index
      %166 = vector.load %arg12[%c2_110, %c0_111, %c0_112] : memref<4x32x8xbf16, #tpu.memory_space<vmem>>, vector<1x32x8xbf16>
      %167 = vector.shape_cast %166 : vector<1x32x8xbf16> to vector<32x8xbf16>
      %cst_113 = arith.constant dense<0.000000e+00> : vector<8x8xf32>
      %168 = tpu.matmul %61, %167, %cst_113 {dimension_numbers = #tpu.dot_dimension_numbers<[1], [0], [0], [1], [0, 0, 1, 1], [], []>} : vector<8x32xbf16>, vector<32x8xbf16>, vector<8x8xf32> -> vector<8x8xf32>
      %c2_114 = arith.constant 2 : index
      %c0_115 = arith.constant 0 : index
      %c0_116 = arith.constant 0 : index
      %169 = vector.load %arg16[%c2_114, %c0_115, %c0_116] : memref<4x1x8xf32, #tpu.memory_space<vmem>>, vector<1x1x8xf32>
      %170 = vector.shape_cast %169 : vector<1x1x8xf32> to vector<1x8xf32>
      %171 = vector.broadcast %170 : vector<1x8xf32> to vector<8x8xf32>
      %172 = arith.addf %168, %171 : vector<8x8xf32>
      %c2_117 = arith.constant 2 : index
      %c0_118 = arith.constant 0 : index
      %c0_119 = arith.constant 0 : index
      %173 = vector.load %arg13[%c2_117, %c0_118, %c0_119] : memref<4x32x8xbf16, #tpu.memory_space<vmem>>, vector<1x32x8xbf16>
      %174 = vector.shape_cast %173 : vector<1x32x8xbf16> to vector<32x8xbf16>
      %cst_120 = arith.constant dense<0.000000e+00> : vector<8x8xf32>
      %175 = tpu.matmul %61, %174, %cst_120 {dimension_numbers = #tpu.dot_dimension_numbers<[1], [0], [0], [1], [0, 0, 1, 1], [], []>} : vector<8x32xbf16>, vector<32x8xbf16>, vector<8x8xf32> -> vector<8x8xf32>
      %c2_121 = arith.constant 2 : index
      %c0_122 = arith.constant 0 : index
      %c0_123 = arith.constant 0 : index
      %176 = vector.load %arg17[%c2_121, %c0_122, %c0_123] : memref<4x1x8xf32, #tpu.memory_space<vmem>>, vector<1x1x8xf32>
      %177 = vector.shape_cast %176 : vector<1x1x8xf32> to vector<1x8xf32>
      %178 = vector.broadcast %177 : vector<1x8xf32> to vector<8x8xf32>
      %179 = arith.addf %175, %178 : vector<8x8xf32>
      %180 = arith.truncf %165 : vector<8x8xf32> to vector<8x8xbf16>
      %181 = arith.truncf %172 : vector<8x8xf32> to vector<8x8xbf16>
      %cst_124 = arith.constant dense<0.000000e+00> : vector<8x8xf32>
      %182 = tpu.matmul %180, %181, %cst_124 {dimension_numbers = #tpu.dot_dimension_numbers<[1], [1], [0], [0], [0, 0, 1, 0], [], []>} : vector<8x8xbf16>, vector<8x8xbf16>, vector<8x8xf32> -> vector<8x8xf32>
      %cst_125 = arith.constant 0.353553385 : f32
      %183 = vector.broadcast %cst_125 : f32 to vector<8x8xf32>
      %184 = arith.mulf %182, %183 : vector<8x8xf32>
      %cst_126 = arith.constant 1.562500e-02 : f32
      %185 = vector.broadcast %cst_126 : f32 to vector<8x8xf32>
      %186 = arith.mulf %185, %53 : vector<8x8xf32>
      %187 = arith.addf %44, %186 : vector<8x8xf32>
      %188 = arith.addf %184, %187 : vector<8x8xf32>
      %cst_127 = arith.constant dense<0xFF800000> : vector<8xf32>
      %189 = vector.multi_reduction <maximumf>, %188, %cst_127 [1] : vector<8x8xf32> to vector<8xf32>
      %190 = vector.shape_cast %189 : vector<8xf32> to vector<8x1xf32>
      %191 = vector.broadcast %190 : vector<8x1xf32> to vector<8x8xf32>
      %192 = arith.subf %188, %191 : vector<8x8xf32>
      %193 = math.exp %192 : vector<8x8xf32>
      %cst_128 = arith.constant dense<0.000000e+00> : vector<8xf32>
      %194 = vector.multi_reduction <add>, %193, %cst_128 [1] : vector<8x8xf32> to vector<8xf32>
      %195 = vector.shape_cast %194 : vector<8xf32> to vector<8x1xf32>
      %196 = tpu.reciprocal %195 {approx = true} : vector<8x1xf32> -> vector<8x1xf32>
      %197 = vector.broadcast %196 : vector<8x1xf32> to vector<8x8xf32>
      %198 = arith.mulf %193, %197 : vector<8x8xf32>
      %199 = arith.truncf %198 : vector<8x8xf32> to vector<8x8xbf16>
      %200 = arith.truncf %179 : vector<8x8xf32> to vector<8x8xbf16>
      %cst_129 = arith.constant dense<0.000000e+00> : vector<8x8xf32>
      %201 = tpu.matmul %199, %200, %cst_129 {dimension_numbers = #tpu.dot_dimension_numbers<[1], [0], [0], [1], [0, 0, 1, 1], [], []>} : vector<8x8xbf16>, vector<8x8xbf16>, vector<8x8xf32> -> vector<8x8xf32>
      %202 = arith.truncf %201 : vector<8x8xf32> to vector<8x8xbf16>
      %c2_130 = arith.constant 2 : index
      %c0_131 = arith.constant 0 : index
      %c0_132 = arith.constant 0 : index
      %203 = vector.load %arg14[%c2_130, %c0_131, %c0_132] : memref<4x8x32xbf16, #tpu.memory_space<vmem>>, vector<1x8x32xbf16>
      %204 = vector.shape_cast %203 : vector<1x8x32xbf16> to vector<8x32xbf16>
      %cst_133 = arith.constant dense<0.000000e+00> : vector<8x32xf32>
      %205 = tpu.matmul %202, %204, %cst_133 {dimension_numbers = #tpu.dot_dimension_numbers<[1], [0], [0], [1], [0, 0, 1, 1], [], []>} : vector<8x8xbf16>, vector<8x32xbf16>, vector<8x32xf32> -> vector<8x32xf32>
      %206 = arith.addf %158, %205 : vector<8x32xf32>
      %c3 = arith.constant 3 : index
      %c0_134 = arith.constant 0 : index
      %c0_135 = arith.constant 0 : index
      %207 = vector.load %arg11[%c3, %c0_134, %c0_135] : memref<4x32x8xbf16, #tpu.memory_space<vmem>>, vector<1x32x8xbf16>
      %208 = vector.shape_cast %207 : vector<1x32x8xbf16> to vector<32x8xbf16>
      %cst_136 = arith.constant dense<0.000000e+00> : vector<8x8xf32>
      %209 = tpu.matmul %60, %208, %cst_136 {dimension_numbers = #tpu.dot_dimension_numbers<[1], [0], [0], [1], [0, 0, 1, 1], [], []>} : vector<8x32xbf16>, vector<32x8xbf16>, vector<8x8xf32> -> vector<8x8xf32>
      %c3_137 = arith.constant 3 : index
      %c0_138 = arith.constant 0 : index
      %c0_139 = arith.constant 0 : index
      %210 = vector.load %arg15[%c3_137, %c0_138, %c0_139] : memref<4x1x8xf32, #tpu.memory_space<vmem>>, vector<1x1x8xf32>
      %211 = vector.shape_cast %210 : vector<1x1x8xf32> to vector<1x8xf32>
      %212 = vector.broadcast %211 : vector<1x8xf32> to vector<8x8xf32>
      %213 = arith.addf %209, %212 : vector<8x8xf32>
      %c3_140 = arith.constant 3 : index
      %c0_141 = arith.constant 0 : index
      %c0_142 = arith.constant 0 : index
      %214 = vector.load %arg12[%c3_140, %c0_141, %c0_142] : memref<4x32x8xbf16, #tpu.memory_space<vmem>>, vector<1x32x8xbf16>
      %215 = vector.shape_cast %214 : vector<1x32x8xbf16> to vector<32x8xbf16>
      %cst_143 = arith.constant dense<0.000000e+00> : vector<8x8xf32>
      %216 = tpu.matmul %61, %215, %cst_143 {dimension_numbers = #tpu.dot_dimension_numbers<[1], [0], [0], [1], [0, 0, 1, 1], [], []>} : vector<8x32xbf16>, vector<32x8xbf16>, vector<8x8xf32> -> vector<8x8xf32>
      %c3_144 = arith.constant 3 : index
      %c0_145 = arith.constant 0 : index
      %c0_146 = arith.constant 0 : index
      %217 = vector.load %arg16[%c3_144, %c0_145, %c0_146] : memref<4x1x8xf32, #tpu.memory_space<vmem>>, vector<1x1x8xf32>
      %218 = vector.shape_cast %217 : vector<1x1x8xf32> to vector<1x8xf32>
      %219 = vector.broadcast %218 : vector<1x8xf32> to vector<8x8xf32>
      %220 = arith.addf %216, %219 : vector<8x8xf32>
      %c3_147 = arith.constant 3 : index
      %c0_148 = arith.constant 0 : index
      %c0_149 = arith.constant 0 : index
      %221 = vector.load %arg13[%c3_147, %c0_148, %c0_149] : memref<4x32x8xbf16, #tpu.memory_space<vmem>>, vector<1x32x8xbf16>
      %222 = vector.shape_cast %221 : vector<1x32x8xbf16> to vector<32x8xbf16>
      %cst_150 = arith.constant dense<0.000000e+00> : vector<8x8xf32>
      %223 = tpu.matmul %61, %222, %cst_150 {dimension_numbers = #tpu.dot_dimension_numbers<[1], [0], [0], [1], [0, 0, 1, 1], [], []>} : vector<8x32xbf16>, vector<32x8xbf16>, vector<8x8xf32> -> vector<8x8xf32>
      %c3_151 = arith.constant 3 : index
      %c0_152 = arith.constant 0 : index
      %c0_153 = arith.constant 0 : index
      %224 = vector.load %arg17[%c3_151, %c0_152, %c0_153] : memref<4x1x8xf32, #tpu.memory_space<vmem>>, vector<1x1x8xf32>
      %225 = vector.shape_cast %224 : vector<1x1x8xf32> to vector<1x8xf32>
      %226 = vector.broadcast %225 : vector<1x8xf32> to vector<8x8xf32>
      %227 = arith.addf %223, %226 : vector<8x8xf32>
      %228 = arith.truncf %213 : vector<8x8xf32> to vector<8x8xbf16>
      %229 = arith.truncf %220 : vector<8x8xf32> to vector<8x8xbf16>
      %cst_154 = arith.constant dense<0.000000e+00> : vector<8x8xf32>
      %230 = tpu.matmul %228, %229, %cst_154 {dimension_numbers = #tpu.dot_dimension_numbers<[1], [1], [0], [0], [0, 0, 1, 0], [], []>} : vector<8x8xbf16>, vector<8x8xbf16>, vector<8x8xf32> -> vector<8x8xf32>
      %cst_155 = arith.constant 0.353553385 : f32
      %231 = vector.broadcast %cst_155 : f32 to vector<8x8xf32>
      %232 = arith.mulf %230, %231 : vector<8x8xf32>
      %cst_156 = arith.constant 3.906250e-03 : f32
      %233 = vector.broadcast %cst_156 : f32 to vector<8x8xf32>
      %234 = arith.mulf %233, %53 : vector<8x8xf32>
      %235 = arith.addf %44, %234 : vector<8x8xf32>
      %236 = arith.addf %232, %235 : vector<8x8xf32>
      %cst_157 = arith.constant dense<0xFF800000> : vector<8xf32>
      %237 = vector.multi_reduction <maximumf>, %236, %cst_157 [1] : vector<8x8xf32> to vector<8xf32>
      %238 = vector.shape_cast %237 : vector<8xf32> to vector<8x1xf32>
      %239 = vector.broadcast %238 : vector<8x1xf32> to vector<8x8xf32>
      %240 = arith.subf %236, %239 : vector<8x8xf32>
      %241 = math.exp %240 : vector<8x8xf32>
      %cst_158 = arith.constant dense<0.000000e+00> : vector<8xf32>
      %242 = vector.multi_reduction <add>, %241, %cst_158 [1] : vector<8x8xf32> to vector<8xf32>
      %243 = vector.shape_cast %242 : vector<8xf32> to vector<8x1xf32>
      %244 = tpu.reciprocal %243 {approx = true} : vector<8x1xf32> -> vector<8x1xf32>
      %245 = vector.broadcast %244 : vector<8x1xf32> to vector<8x8xf32>
      %246 = arith.mulf %241, %245 : vector<8x8xf32>
      %247 = arith.truncf %246 : vector<8x8xf32> to vector<8x8xbf16>
      %248 = arith.truncf %227 : vector<8x8xf32> to vector<8x8xbf16>
      %cst_159 = arith.constant dense<0.000000e+00> : vector<8x8xf32>
      %249 = tpu.matmul %247, %248, %cst_159 {dimension_numbers = #tpu.dot_dimension_numbers<[1], [0], [0], [1], [0, 0, 1, 1], [], []>} : vector<8x8xbf16>, vector<8x8xbf16>, vector<8x8xf32> -> vector<8x8xf32>
      %250 = arith.truncf %249 : vector<8x8xf32> to vector<8x8xbf16>
      %c3_160 = arith.constant 3 : index
      %c0_161 = arith.constant 0 : index
      %c0_162 = arith.constant 0 : index
      %251 = vector.load %arg14[%c3_160, %c0_161, %c0_162] : memref<4x8x32xbf16, #tpu.memory_space<vmem>>, vector<1x8x32xbf16>
      %252 = vector.shape_cast %251 : vector<1x8x32xbf16> to vector<8x32xbf16>
      %cst_163 = arith.constant dense<0.000000e+00> : vector<8x32xf32>
      %253 = tpu.matmul %250, %252, %cst_163 {dimension_numbers = #tpu.dot_dimension_numbers<[1], [0], [0], [1], [0, 0, 1, 1], [], []>} : vector<8x8xbf16>, vector<8x32xbf16>, vector<8x32xf32> -> vector<8x32xf32>
      %254 = arith.addf %206, %253 : vector<8x32xf32>
      %c0_164 = arith.constant 0 : index
      %c0_165 = arith.constant 0 : index
      %255 = vector.load %arg18[%c0_164, %c0_165] : memref<1x32xf32, #tpu.memory_space<vmem>>, vector<1x32xf32>
      %256 = vector.broadcast %255 : vector<1x32xf32> to vector<8x32xf32>
      %257 = arith.addf %254, %256 : vector<8x32xf32>
      %258 = arith.addf %24, %257 : vector<8x32xf32>
      %cst_166 = arith.constant dense<0.000000e+00> : vector<8xf32>
      %259 = vector.multi_reduction <add>, %258, %cst_166 [1] : vector<8x32xf32> to vector<8xf32>
      %260 = vector.shape_cast %259 : vector<8xf32> to vector<8x1xf32>
      %cst_167 = arith.constant 3.200000e+01 : f32
      %261 = vector.broadcast %cst_167 : f32 to vector<8x1xf32>
      %262 = arith.divf %260, %261 : vector<8x1xf32>
      %263 = vector.broadcast %262 : vector<8x1xf32> to vector<8x32xf32>
      %264 = arith.subf %258, %263 : vector<8x32xf32>
      %265 = arith.mulf %264, %264 : vector<8x32xf32>
      %cst_168 = arith.constant dense<0.000000e+00> : vector<8xf32>
      %266 = vector.multi_reduction <add>, %265, %cst_168 [1] : vector<8x32xf32> to vector<8xf32>
      %267 = vector.shape_cast %266 : vector<8xf32> to vector<8x1xf32>
      %cst_169 = arith.constant 3.200000e+01 : f32
      %268 = vector.broadcast %cst_169 : f32 to vector<8x1xf32>
      %269 = arith.divf %267, %268 : vector<8x1xf32>
      %cst_170 = arith.constant 9.99999974E-6 : f32
      %270 = vector.broadcast %cst_170 : f32 to vector<8x1xf32>
      %271 = arith.addf %269, %270 : vector<8x1xf32>
      %272 = math.rsqrt %271 : vector<8x1xf32>
      %273 = vector.broadcast %272 : vector<8x1xf32> to vector<8x32xf32>
      %274 = arith.mulf %264, %273 : vector<8x32xf32>
      %c0_171 = arith.constant 0 : index
      %c0_172 = arith.constant 0 : index
      %275 = vector.load %arg31[%c0_171, %c0_172] : memref<1x32xf32, #tpu.memory_space<vmem>>, vector<1x32xf32>
      %276 = vector.broadcast %275 : vector<1x32xf32> to vector<8x32xf32>
      %277 = arith.mulf %274, %276 : vector<8x32xf32>
      %c0_173 = arith.constant 0 : index
      %c0_174 = arith.constant 0 : index
      %278 = vector.load %arg32[%c0_173, %c0_174] : memref<1x32xf32, #tpu.memory_space<vmem>>, vector<1x32xf32>
      %279 = vector.broadcast %278 : vector<1x32xf32> to vector<8x32xf32>
      %280 = arith.addf %277, %279 : vector<8x32xf32>
      %281 = arith.truncf %280 : vector<8x32xf32> to vector<8x32xbf16>
      %282 = arith.truncf %35 : vector<8x32xf32> to vector<8x32xbf16>
      %cst_175 = arith.constant 0.000000e+00 : f32
      %283 = vector.broadcast %cst_175 : f32 to vector<8x32xf32>
      %c0_176 = arith.constant 0 : index
      %c0_177 = arith.constant 0 : index
      %c0_178 = arith.constant 0 : index
      %284 = vector.load %arg19[%c0_176, %c0_177, %c0_178] : memref<4x32x8xbf16, #tpu.memory_space<vmem>>, vector<1x32x8xbf16>
      %285 = vector.shape_cast %284 : vector<1x32x8xbf16> to vector<32x8xbf16>
      %cst_179 = arith.constant dense<0.000000e+00> : vector<8x8xf32>
      %286 = tpu.matmul %281, %285, %cst_179 {dimension_numbers = #tpu.dot_dimension_numbers<[1], [0], [0], [1], [0, 0, 1, 1], [], []>} : vector<8x32xbf16>, vector<32x8xbf16>, vector<8x8xf32> -> vector<8x8xf32>
      %c0_180 = arith.constant 0 : index
      %c0_181 = arith.constant 0 : index
      %c0_182 = arith.constant 0 : index
      %287 = vector.load %arg23[%c0_180, %c0_181, %c0_182] : memref<4x1x8xf32, #tpu.memory_space<vmem>>, vector<1x1x8xf32>
      %288 = vector.shape_cast %287 : vector<1x1x8xf32> to vector<1x8xf32>
      %289 = vector.broadcast %288 : vector<1x8xf32> to vector<8x8xf32>
      %290 = arith.addf %286, %289 : vector<8x8xf32>
      %c0_183 = arith.constant 0 : index
      %c0_184 = arith.constant 0 : index
      %c0_185 = arith.constant 0 : index
      %291 = vector.load %arg20[%c0_183, %c0_184, %c0_185] : memref<4x32x8xbf16, #tpu.memory_space<vmem>>, vector<1x32x8xbf16>
      %292 = vector.shape_cast %291 : vector<1x32x8xbf16> to vector<32x8xbf16>
      %cst_186 = arith.constant dense<0.000000e+00> : vector<8x8xf32>
      %293 = tpu.matmul %282, %292, %cst_186 {dimension_numbers = #tpu.dot_dimension_numbers<[1], [0], [0], [1], [0, 0, 1, 1], [], []>} : vector<8x32xbf16>, vector<32x8xbf16>, vector<8x8xf32> -> vector<8x8xf32>
      %c0_187 = arith.constant 0 : index
      %c0_188 = arith.constant 0 : index
      %c0_189 = arith.constant 0 : index
      %294 = vector.load %arg24[%c0_187, %c0_188, %c0_189] : memref<4x1x8xf32, #tpu.memory_space<vmem>>, vector<1x1x8xf32>
      %295 = vector.shape_cast %294 : vector<1x1x8xf32> to vector<1x8xf32>
      %296 = vector.broadcast %295 : vector<1x8xf32> to vector<8x8xf32>
      %297 = arith.addf %293, %296 : vector<8x8xf32>
      %c0_190 = arith.constant 0 : index
      %c0_191 = arith.constant 0 : index
      %c0_192 = arith.constant 0 : index
      %298 = vector.load %arg21[%c0_190, %c0_191, %c0_192] : memref<4x32x8xbf16, #tpu.memory_space<vmem>>, vector<1x32x8xbf16>
      %299 = vector.shape_cast %298 : vector<1x32x8xbf16> to vector<32x8xbf16>
      %cst_193 = arith.constant dense<0.000000e+00> : vector<8x8xf32>
      %300 = tpu.matmul %282, %299, %cst_193 {dimension_numbers = #tpu.dot_dimension_numbers<[1], [0], [0], [1], [0, 0, 1, 1], [], []>} : vector<8x32xbf16>, vector<32x8xbf16>, vector<8x8xf32> -> vector<8x8xf32>
      %c0_194 = arith.constant 0 : index
      %c0_195 = arith.constant 0 : index
      %c0_196 = arith.constant 0 : index
      %301 = vector.load %arg25[%c0_194, %c0_195, %c0_196] : memref<4x1x8xf32, #tpu.memory_space<vmem>>, vector<1x1x8xf32>
      %302 = vector.shape_cast %301 : vector<1x1x8xf32> to vector<1x8xf32>
      %303 = vector.broadcast %302 : vector<1x8xf32> to vector<8x8xf32>
      %304 = arith.addf %300, %303 : vector<8x8xf32>
      %305 = arith.truncf %290 : vector<8x8xf32> to vector<8x8xbf16>
      %306 = arith.truncf %297 : vector<8x8xf32> to vector<8x8xbf16>
      %cst_197 = arith.constant dense<0.000000e+00> : vector<8x8xf32>
      %307 = tpu.matmul %305, %306, %cst_197 {dimension_numbers = #tpu.dot_dimension_numbers<[1], [1], [0], [0], [0, 0, 1, 0], [], []>} : vector<8x8xbf16>, vector<8x8xbf16>, vector<8x8xf32> -> vector<8x8xf32>
      %cst_198 = arith.constant 0.353553385 : f32
      %308 = vector.broadcast %cst_198 : f32 to vector<8x8xf32>
      %309 = arith.mulf %307, %308 : vector<8x8xf32>
      %310 = arith.addf %309, %59 : vector<8x8xf32>
      %cst_199 = arith.constant dense<0xFF800000> : vector<8xf32>
      %311 = vector.multi_reduction <maximumf>, %310, %cst_199 [1] : vector<8x8xf32> to vector<8xf32>
      %312 = vector.shape_cast %311 : vector<8xf32> to vector<8x1xf32>
      %313 = vector.broadcast %312 : vector<8x1xf32> to vector<8x8xf32>
      %314 = arith.subf %310, %313 : vector<8x8xf32>
      %315 = math.exp %314 : vector<8x8xf32>
      %cst_200 = arith.constant dense<0.000000e+00> : vector<8xf32>
      %316 = vector.multi_reduction <add>, %315, %cst_200 [1] : vector<8x8xf32> to vector<8xf32>
      %317 = vector.shape_cast %316 : vector<8xf32> to vector<8x1xf32>
      %318 = tpu.reciprocal %317 {approx = true} : vector<8x1xf32> -> vector<8x1xf32>
      %319 = vector.broadcast %318 : vector<8x1xf32> to vector<8x8xf32>
      %320 = arith.mulf %315, %319 : vector<8x8xf32>
      %321 = arith.truncf %320 : vector<8x8xf32> to vector<8x8xbf16>
      %322 = arith.truncf %304 : vector<8x8xf32> to vector<8x8xbf16>
      %cst_201 = arith.constant dense<0.000000e+00> : vector<8x8xf32>
      %323 = tpu.matmul %321, %322, %cst_201 {dimension_numbers = #tpu.dot_dimension_numbers<[1], [0], [0], [1], [0, 0, 1, 1], [], []>} : vector<8x8xbf16>, vector<8x8xbf16>, vector<8x8xf32> -> vector<8x8xf32>
      %324 = arith.truncf %323 : vector<8x8xf32> to vector<8x8xbf16>
      %c0_202 = arith.constant 0 : index
      %c0_203 = arith.constant 0 : index
      %c0_204 = arith.constant 0 : index
      %325 = vector.load %arg22[%c0_202, %c0_203, %c0_204] : memref<4x8x32xbf16, #tpu.memory_space<vmem>>, vector<1x8x32xbf16>
      %326 = vector.shape_cast %325 : vector<1x8x32xbf16> to vector<8x32xbf16>
      %cst_205 = arith.constant dense<0.000000e+00> : vector<8x32xf32>
      %327 = tpu.matmul %324, %326, %cst_205 {dimension_numbers = #tpu.dot_dimension_numbers<[1], [0], [0], [1], [0, 0, 1, 1], [], []>} : vector<8x8xbf16>, vector<8x32xbf16>, vector<8x32xf32> -> vector<8x32xf32>
      %328 = arith.addf %283, %327 : vector<8x32xf32>
      %c1_206 = arith.constant 1 : index
      %c0_207 = arith.constant 0 : index
      %c0_208 = arith.constant 0 : index
      %329 = vector.load %arg19[%c1_206, %c0_207, %c0_208] : memref<4x32x8xbf16, #tpu.memory_space<vmem>>, vector<1x32x8xbf16>
      %330 = vector.shape_cast %329 : vector<1x32x8xbf16> to vector<32x8xbf16>
      %cst_209 = arith.constant dense<0.000000e+00> : vector<8x8xf32>
      %331 = tpu.matmul %281, %330, %cst_209 {dimension_numbers = #tpu.dot_dimension_numbers<[1], [0], [0], [1], [0, 0, 1, 1], [], []>} : vector<8x32xbf16>, vector<32x8xbf16>, vector<8x8xf32> -> vector<8x8xf32>
      %c1_210 = arith.constant 1 : index
      %c0_211 = arith.constant 0 : index
      %c0_212 = arith.constant 0 : index
      %332 = vector.load %arg23[%c1_210, %c0_211, %c0_212] : memref<4x1x8xf32, #tpu.memory_space<vmem>>, vector<1x1x8xf32>
      %333 = vector.shape_cast %332 : vector<1x1x8xf32> to vector<1x8xf32>
      %334 = vector.broadcast %333 : vector<1x8xf32> to vector<8x8xf32>
      %335 = arith.addf %331, %334 : vector<8x8xf32>
      %c1_213 = arith.constant 1 : index
      %c0_214 = arith.constant 0 : index
      %c0_215 = arith.constant 0 : index
      %336 = vector.load %arg20[%c1_213, %c0_214, %c0_215] : memref<4x32x8xbf16, #tpu.memory_space<vmem>>, vector<1x32x8xbf16>
      %337 = vector.shape_cast %336 : vector<1x32x8xbf16> to vector<32x8xbf16>
      %cst_216 = arith.constant dense<0.000000e+00> : vector<8x8xf32>
      %338 = tpu.matmul %282, %337, %cst_216 {dimension_numbers = #tpu.dot_dimension_numbers<[1], [0], [0], [1], [0, 0, 1, 1], [], []>} : vector<8x32xbf16>, vector<32x8xbf16>, vector<8x8xf32> -> vector<8x8xf32>
      %c1_217 = arith.constant 1 : index
      %c0_218 = arith.constant 0 : index
      %c0_219 = arith.constant 0 : index
      %339 = vector.load %arg24[%c1_217, %c0_218, %c0_219] : memref<4x1x8xf32, #tpu.memory_space<vmem>>, vector<1x1x8xf32>
      %340 = vector.shape_cast %339 : vector<1x1x8xf32> to vector<1x8xf32>
      %341 = vector.broadcast %340 : vector<1x8xf32> to vector<8x8xf32>
      %342 = arith.addf %338, %341 : vector<8x8xf32>
      %c1_220 = arith.constant 1 : index
      %c0_221 = arith.constant 0 : index
      %c0_222 = arith.constant 0 : index
      %343 = vector.load %arg21[%c1_220, %c0_221, %c0_222] : memref<4x32x8xbf16, #tpu.memory_space<vmem>>, vector<1x32x8xbf16>
      %344 = vector.shape_cast %343 : vector<1x32x8xbf16> to vector<32x8xbf16>
      %cst_223 = arith.constant dense<0.000000e+00> : vector<8x8xf32>
      %345 = tpu.matmul %282, %344, %cst_223 {dimension_numbers = #tpu.dot_dimension_numbers<[1], [0], [0], [1], [0, 0, 1, 1], [], []>} : vector<8x32xbf16>, vector<32x8xbf16>, vector<8x8xf32> -> vector<8x8xf32>
      %c1_224 = arith.constant 1 : index
      %c0_225 = arith.constant 0 : index
      %c0_226 = arith.constant 0 : index
      %346 = vector.load %arg25[%c1_224, %c0_225, %c0_226] : memref<4x1x8xf32, #tpu.memory_space<vmem>>, vector<1x1x8xf32>
      %347 = vector.shape_cast %346 : vector<1x1x8xf32> to vector<1x8xf32>
      %348 = vector.broadcast %347 : vector<1x8xf32> to vector<8x8xf32>
      %349 = arith.addf %345, %348 : vector<8x8xf32>
      %350 = arith.truncf %335 : vector<8x8xf32> to vector<8x8xbf16>
      %351 = arith.truncf %342 : vector<8x8xf32> to vector<8x8xbf16>
      %cst_227 = arith.constant dense<0.000000e+00> : vector<8x8xf32>
      %352 = tpu.matmul %350, %351, %cst_227 {dimension_numbers = #tpu.dot_dimension_numbers<[1], [1], [0], [0], [0, 0, 1, 0], [], []>} : vector<8x8xbf16>, vector<8x8xbf16>, vector<8x8xf32> -> vector<8x8xf32>
      %cst_228 = arith.constant 0.353553385 : f32
      %353 = vector.broadcast %cst_228 : f32 to vector<8x8xf32>
      %354 = arith.mulf %352, %353 : vector<8x8xf32>
      %355 = arith.addf %354, %59 : vector<8x8xf32>
      %cst_229 = arith.constant dense<0xFF800000> : vector<8xf32>
      %356 = vector.multi_reduction <maximumf>, %355, %cst_229 [1] : vector<8x8xf32> to vector<8xf32>
      %357 = vector.shape_cast %356 : vector<8xf32> to vector<8x1xf32>
      %358 = vector.broadcast %357 : vector<8x1xf32> to vector<8x8xf32>
      %359 = arith.subf %355, %358 : vector<8x8xf32>
      %360 = math.exp %359 : vector<8x8xf32>
      %cst_230 = arith.constant dense<0.000000e+00> : vector<8xf32>
      %361 = vector.multi_reduction <add>, %360, %cst_230 [1] : vector<8x8xf32> to vector<8xf32>
      %362 = vector.shape_cast %361 : vector<8xf32> to vector<8x1xf32>
      %363 = tpu.reciprocal %362 {approx = true} : vector<8x1xf32> -> vector<8x1xf32>
      %364 = vector.broadcast %363 : vector<8x1xf32> to vector<8x8xf32>
      %365 = arith.mulf %360, %364 : vector<8x8xf32>
      %366 = arith.truncf %365 : vector<8x8xf32> to vector<8x8xbf16>
      %367 = arith.truncf %349 : vector<8x8xf32> to vector<8x8xbf16>
      %cst_231 = arith.constant dense<0.000000e+00> : vector<8x8xf32>
      %368 = tpu.matmul %366, %367, %cst_231 {dimension_numbers = #tpu.dot_dimension_numbers<[1], [0], [0], [1], [0, 0, 1, 1], [], []>} : vector<8x8xbf16>, vector<8x8xbf16>, vector<8x8xf32> -> vector<8x8xf32>
      %369 = arith.truncf %368 : vector<8x8xf32> to vector<8x8xbf16>
      %c1_232 = arith.constant 1 : index
      %c0_233 = arith.constant 0 : index
      %c0_234 = arith.constant 0 : index
      %370 = vector.load %arg22[%c1_232, %c0_233, %c0_234] : memref<4x8x32xbf16, #tpu.memory_space<vmem>>, vector<1x8x32xbf16>
      %371 = vector.shape_cast %370 : vector<1x8x32xbf16> to vector<8x32xbf16>
      %cst_235 = arith.constant dense<0.000000e+00> : vector<8x32xf32>
      %372 = tpu.matmul %369, %371, %cst_235 {dimension_numbers = #tpu.dot_dimension_numbers<[1], [0], [0], [1], [0, 0, 1, 1], [], []>} : vector<8x8xbf16>, vector<8x32xbf16>, vector<8x32xf32> -> vector<8x32xf32>
      %373 = arith.addf %328, %372 : vector<8x32xf32>
      %c2_236 = arith.constant 2 : index
      %c0_237 = arith.constant 0 : index
      %c0_238 = arith.constant 0 : index
      %374 = vector.load %arg19[%c2_236, %c0_237, %c0_238] : memref<4x32x8xbf16, #tpu.memory_space<vmem>>, vector<1x32x8xbf16>
      %375 = vector.shape_cast %374 : vector<1x32x8xbf16> to vector<32x8xbf16>
      %cst_239 = arith.constant dense<0.000000e+00> : vector<8x8xf32>
      %376 = tpu.matmul %281, %375, %cst_239 {dimension_numbers = #tpu.dot_dimension_numbers<[1], [0], [0], [1], [0, 0, 1, 1], [], []>} : vector<8x32xbf16>, vector<32x8xbf16>, vector<8x8xf32> -> vector<8x8xf32>
      %c2_240 = arith.constant 2 : index
      %c0_241 = arith.constant 0 : index
      %c0_242 = arith.constant 0 : index
      %377 = vector.load %arg23[%c2_240, %c0_241, %c0_242] : memref<4x1x8xf32, #tpu.memory_space<vmem>>, vector<1x1x8xf32>
      %378 = vector.shape_cast %377 : vector<1x1x8xf32> to vector<1x8xf32>
      %379 = vector.broadcast %378 : vector<1x8xf32> to vector<8x8xf32>
      %380 = arith.addf %376, %379 : vector<8x8xf32>
      %c2_243 = arith.constant 2 : index
      %c0_244 = arith.constant 0 : index
      %c0_245 = arith.constant 0 : index
      %381 = vector.load %arg20[%c2_243, %c0_244, %c0_245] : memref<4x32x8xbf16, #tpu.memory_space<vmem>>, vector<1x32x8xbf16>
      %382 = vector.shape_cast %381 : vector<1x32x8xbf16> to vector<32x8xbf16>
      %cst_246 = arith.constant dense<0.000000e+00> : vector<8x8xf32>
      %383 = tpu.matmul %282, %382, %cst_246 {dimension_numbers = #tpu.dot_dimension_numbers<[1], [0], [0], [1], [0, 0, 1, 1], [], []>} : vector<8x32xbf16>, vector<32x8xbf16>, vector<8x8xf32> -> vector<8x8xf32>
      %c2_247 = arith.constant 2 : index
      %c0_248 = arith.constant 0 : index
      %c0_249 = arith.constant 0 : index
      %384 = vector.load %arg24[%c2_247, %c0_248, %c0_249] : memref<4x1x8xf32, #tpu.memory_space<vmem>>, vector<1x1x8xf32>
      %385 = vector.shape_cast %384 : vector<1x1x8xf32> to vector<1x8xf32>
      %386 = vector.broadcast %385 : vector<1x8xf32> to vector<8x8xf32>
      %387 = arith.addf %383, %386 : vector<8x8xf32>
      %c2_250 = arith.constant 2 : index
      %c0_251 = arith.constant 0 : index
      %c0_252 = arith.constant 0 : index
      %388 = vector.load %arg21[%c2_250, %c0_251, %c0_252] : memref<4x32x8xbf16, #tpu.memory_space<vmem>>, vector<1x32x8xbf16>
      %389 = vector.shape_cast %388 : vector<1x32x8xbf16> to vector<32x8xbf16>
      %cst_253 = arith.constant dense<0.000000e+00> : vector<8x8xf32>
      %390 = tpu.matmul %282, %389, %cst_253 {dimension_numbers = #tpu.dot_dimension_numbers<[1], [0], [0], [1], [0, 0, 1, 1], [], []>} : vector<8x32xbf16>, vector<32x8xbf16>, vector<8x8xf32> -> vector<8x8xf32>
      %c2_254 = arith.constant 2 : index
      %c0_255 = arith.constant 0 : index
      %c0_256 = arith.constant 0 : index
      %391 = vector.load %arg25[%c2_254, %c0_255, %c0_256] : memref<4x1x8xf32, #tpu.memory_space<vmem>>, vector<1x1x8xf32>
      %392 = vector.shape_cast %391 : vector<1x1x8xf32> to vector<1x8xf32>
      %393 = vector.broadcast %392 : vector<1x8xf32> to vector<8x8xf32>
      %394 = arith.addf %390, %393 : vector<8x8xf32>
      %395 = arith.truncf %380 : vector<8x8xf32> to vector<8x8xbf16>
      %396 = arith.truncf %387 : vector<8x8xf32> to vector<8x8xbf16>
      %cst_257 = arith.constant dense<0.000000e+00> : vector<8x8xf32>
      %397 = tpu.matmul %395, %396, %cst_257 {dimension_numbers = #tpu.dot_dimension_numbers<[1], [1], [0], [0], [0, 0, 1, 0], [], []>} : vector<8x8xbf16>, vector<8x8xbf16>, vector<8x8xf32> -> vector<8x8xf32>
      %cst_258 = arith.constant 0.353553385 : f32
      %398 = vector.broadcast %cst_258 : f32 to vector<8x8xf32>
      %399 = arith.mulf %397, %398 : vector<8x8xf32>
      %400 = arith.addf %399, %59 : vector<8x8xf32>
      %cst_259 = arith.constant dense<0xFF800000> : vector<8xf32>
      %401 = vector.multi_reduction <maximumf>, %400, %cst_259 [1] : vector<8x8xf32> to vector<8xf32>
      %402 = vector.shape_cast %401 : vector<8xf32> to vector<8x1xf32>
      %403 = vector.broadcast %402 : vector<8x1xf32> to vector<8x8xf32>
      %404 = arith.subf %400, %403 : vector<8x8xf32>
      %405 = math.exp %404 : vector<8x8xf32>
      %cst_260 = arith.constant dense<0.000000e+00> : vector<8xf32>
      %406 = vector.multi_reduction <add>, %405, %cst_260 [1] : vector<8x8xf32> to vector<8xf32>
      %407 = vector.shape_cast %406 : vector<8xf32> to vector<8x1xf32>
      %408 = tpu.reciprocal %407 {approx = true} : vector<8x1xf32> -> vector<8x1xf32>
      %409 = vector.broadcast %408 : vector<8x1xf32> to vector<8x8xf32>
      %410 = arith.mulf %405, %409 : vector<8x8xf32>
      %411 = arith.truncf %410 : vector<8x8xf32> to vector<8x8xbf16>
      %412 = arith.truncf %394 : vector<8x8xf32> to vector<8x8xbf16>
      %cst_261 = arith.constant dense<0.000000e+00> : vector<8x8xf32>
      %413 = tpu.matmul %411, %412, %cst_261 {dimension_numbers = #tpu.dot_dimension_numbers<[1], [0], [0], [1], [0, 0, 1, 1], [], []>} : vector<8x8xbf16>, vector<8x8xbf16>, vector<8x8xf32> -> vector<8x8xf32>
      %414 = arith.truncf %413 : vector<8x8xf32> to vector<8x8xbf16>
      %c2_262 = arith.constant 2 : index
      %c0_263 = arith.constant 0 : index
      %c0_264 = arith.constant 0 : index
      %415 = vector.load %arg22[%c2_262, %c0_263, %c0_264] : memref<4x8x32xbf16, #tpu.memory_space<vmem>>, vector<1x8x32xbf16>
      %416 = vector.shape_cast %415 : vector<1x8x32xbf16> to vector<8x32xbf16>
      %cst_265 = arith.constant dense<0.000000e+00> : vector<8x32xf32>
      %417 = tpu.matmul %414, %416, %cst_265 {dimension_numbers = #tpu.dot_dimension_numbers<[1], [0], [0], [1], [0, 0, 1, 1], [], []>} : vector<8x8xbf16>, vector<8x32xbf16>, vector<8x32xf32> -> vector<8x32xf32>
      %418 = arith.addf %373, %417 : vector<8x32xf32>
      %c3_266 = arith.constant 3 : index
      %c0_267 = arith.constant 0 : index
      %c0_268 = arith.constant 0 : index
      %419 = vector.load %arg19[%c3_266, %c0_267, %c0_268] : memref<4x32x8xbf16, #tpu.memory_space<vmem>>, vector<1x32x8xbf16>
      %420 = vector.shape_cast %419 : vector<1x32x8xbf16> to vector<32x8xbf16>
      %cst_269 = arith.constant dense<0.000000e+00> : vector<8x8xf32>
      %421 = tpu.matmul %281, %420, %cst_269 {dimension_numbers = #tpu.dot_dimension_numbers<[1], [0], [0], [1], [0, 0, 1, 1], [], []>} : vector<8x32xbf16>, vector<32x8xbf16>, vector<8x8xf32> -> vector<8x8xf32>
      %c3_270 = arith.constant 3 : index
      %c0_271 = arith.constant 0 : index
      %c0_272 = arith.constant 0 : index
      %422 = vector.load %arg23[%c3_270, %c0_271, %c0_272] : memref<4x1x8xf32, #tpu.memory_space<vmem>>, vector<1x1x8xf32>
      %423 = vector.shape_cast %422 : vector<1x1x8xf32> to vector<1x8xf32>
      %424 = vector.broadcast %423 : vector<1x8xf32> to vector<8x8xf32>
      %425 = arith.addf %421, %424 : vector<8x8xf32>
      %c3_273 = arith.constant 3 : index
      %c0_274 = arith.constant 0 : index
      %c0_275 = arith.constant 0 : index
      %426 = vector.load %arg20[%c3_273, %c0_274, %c0_275] : memref<4x32x8xbf16, #tpu.memory_space<vmem>>, vector<1x32x8xbf16>
      %427 = vector.shape_cast %426 : vector<1x32x8xbf16> to vector<32x8xbf16>
      %cst_276 = arith.constant dense<0.000000e+00> : vector<8x8xf32>
      %428 = tpu.matmul %282, %427, %cst_276 {dimension_numbers = #tpu.dot_dimension_numbers<[1], [0], [0], [1], [0, 0, 1, 1], [], []>} : vector<8x32xbf16>, vector<32x8xbf16>, vector<8x8xf32> -> vector<8x8xf32>
      %c3_277 = arith.constant 3 : index
      %c0_278 = arith.constant 0 : index
      %c0_279 = arith.constant 0 : index
      %429 = vector.load %arg24[%c3_277, %c0_278, %c0_279] : memref<4x1x8xf32, #tpu.memory_space<vmem>>, vector<1x1x8xf32>
      %430 = vector.shape_cast %429 : vector<1x1x8xf32> to vector<1x8xf32>
      %431 = vector.broadcast %430 : vector<1x8xf32> to vector<8x8xf32>
      %432 = arith.addf %428, %431 : vector<8x8xf32>
      %c3_280 = arith.constant 3 : index
      %c0_281 = arith.constant 0 : index
      %c0_282 = arith.constant 0 : index
      %433 = vector.load %arg21[%c3_280, %c0_281, %c0_282] : memref<4x32x8xbf16, #tpu.memory_space<vmem>>, vector<1x32x8xbf16>
      %434 = vector.shape_cast %433 : vector<1x32x8xbf16> to vector<32x8xbf16>
      %cst_283 = arith.constant dense<0.000000e+00> : vector<8x8xf32>
      %435 = tpu.matmul %282, %434, %cst_283 {dimension_numbers = #tpu.dot_dimension_numbers<[1], [0], [0], [1], [0, 0, 1, 1], [], []>} : vector<8x32xbf16>, vector<32x8xbf16>, vector<8x8xf32> -> vector<8x8xf32>
      %c3_284 = arith.constant 3 : index
      %c0_285 = arith.constant 0 : index
      %c0_286 = arith.constant 0 : index
      %436 = vector.load %arg25[%c3_284, %c0_285, %c0_286] : memref<4x1x8xf32, #tpu.memory_space<vmem>>, vector<1x1x8xf32>
      %437 = vector.shape_cast %436 : vector<1x1x8xf32> to vector<1x8xf32>
      %438 = vector.broadcast %437 : vector<1x8xf32> to vector<8x8xf32>
      %439 = arith.addf %435, %438 : vector<8x8xf32>
      %440 = arith.truncf %425 : vector<8x8xf32> to vector<8x8xbf16>
      %441 = arith.truncf %432 : vector<8x8xf32> to vector<8x8xbf16>
      %cst_287 = arith.constant dense<0.000000e+00> : vector<8x8xf32>
      %442 = tpu.matmul %440, %441, %cst_287 {dimension_numbers = #tpu.dot_dimension_numbers<[1], [1], [0], [0], [0, 0, 1, 0], [], []>} : vector<8x8xbf16>, vector<8x8xbf16>, vector<8x8xf32> -> vector<8x8xf32>
      %cst_288 = arith.constant 0.353553385 : f32
      %443 = vector.broadcast %cst_288 : f32 to vector<8x8xf32>
      %444 = arith.mulf %442, %443 : vector<8x8xf32>
      %445 = arith.addf %444, %59 : vector<8x8xf32>
      %cst_289 = arith.constant dense<0xFF800000> : vector<8xf32>
      %446 = vector.multi_reduction <maximumf>, %445, %cst_289 [1] : vector<8x8xf32> to vector<8xf32>
      %447 = vector.shape_cast %446 : vector<8xf32> to vector<8x1xf32>
      %448 = vector.broadcast %447 : vector<8x1xf32> to vector<8x8xf32>
      %449 = arith.subf %445, %448 : vector<8x8xf32>
      %450 = math.exp %449 : vector<8x8xf32>
      %cst_290 = arith.constant dense<0.000000e+00> : vector<8xf32>
      %451 = vector.multi_reduction <add>, %450, %cst_290 [1] : vector<8x8xf32> to vector<8xf32>
      %452 = vector.shape_cast %451 : vector<8xf32> to vector<8x1xf32>
      %453 = tpu.reciprocal %452 {approx = true} : vector<8x1xf32> -> vector<8x1xf32>
      %454 = vector.broadcast %453 : vector<8x1xf32> to vector<8x8xf32>
      %455 = arith.mulf %450, %454 : vector<8x8xf32>
      %456 = arith.truncf %455 : vector<8x8xf32> to vector<8x8xbf16>
      %457 = arith.truncf %439 : vector<8x8xf32> to vector<8x8xbf16>
      %cst_291 = arith.constant dense<0.000000e+00> : vector<8x8xf32>
      %458 = tpu.matmul %456, %457, %cst_291 {dimension_numbers = #tpu.dot_dimension_numbers<[1], [0], [0], [1], [0, 0, 1, 1], [], []>} : vector<8x8xbf16>, vector<8x8xbf16>, vector<8x8xf32> -> vector<8x8xf32>
      %459 = arith.truncf %458 : vector<8x8xf32> to vector<8x8xbf16>
      %c3_292 = arith.constant 3 : index
      %c0_293 = arith.constant 0 : index
      %c0_294 = arith.constant 0 : index
      %460 = vector.load %arg22[%c3_292, %c0_293, %c0_294] : memref<4x8x32xbf16, #tpu.memory_space<vmem>>, vector<1x8x32xbf16>
      %461 = vector.shape_cast %460 : vector<1x8x32xbf16> to vector<8x32xbf16>
      %cst_295 = arith.constant dense<0.000000e+00> : vector<8x32xf32>
      %462 = tpu.matmul %459, %461, %cst_295 {dimension_numbers = #tpu.dot_dimension_numbers<[1], [0], [0], [1], [0, 0, 1, 1], [], []>} : vector<8x8xbf16>, vector<8x32xbf16>, vector<8x32xf32> -> vector<8x32xf32>
      %463 = arith.addf %418, %462 : vector<8x32xf32>
      %c0_296 = arith.constant 0 : index
      %c0_297 = arith.constant 0 : index
      %464 = vector.load %arg26[%c0_296, %c0_297] : memref<1x32xf32, #tpu.memory_space<vmem>>, vector<1x32xf32>
      %465 = vector.broadcast %464 : vector<1x32xf32> to vector<8x32xf32>
      %466 = arith.addf %463, %465 : vector<8x32xf32>
      %467 = arith.addf %280, %466 : vector<8x32xf32>
      %cst_298 = arith.constant dense<0.000000e+00> : vector<8xf32>
      %468 = vector.multi_reduction <add>, %467, %cst_298 [1] : vector<8x32xf32> to vector<8xf32>
      %469 = vector.shape_cast %468 : vector<8xf32> to vector<8x1xf32>
      %cst_299 = arith.constant 3.200000e+01 : f32
      %470 = vector.broadcast %cst_299 : f32 to vector<8x1xf32>
      %471 = arith.divf %469, %470 : vector<8x1xf32>
      %472 = vector.broadcast %471 : vector<8x1xf32> to vector<8x32xf32>
      %473 = arith.subf %467, %472 : vector<8x32xf32>
      %474 = arith.mulf %473, %473 : vector<8x32xf32>
      %cst_300 = arith.constant dense<0.000000e+00> : vector<8xf32>
      %475 = vector.multi_reduction <add>, %474, %cst_300 [1] : vector<8x32xf32> to vector<8xf32>
      %476 = vector.shape_cast %475 : vector<8xf32> to vector<8x1xf32>
      %cst_301 = arith.constant 3.200000e+01 : f32
      %477 = vector.broadcast %cst_301 : f32 to vector<8x1xf32>
      %478 = arith.divf %476, %477 : vector<8x1xf32>
      %cst_302 = arith.constant 9.99999974E-6 : f32
      %479 = vector.broadcast %cst_302 : f32 to vector<8x1xf32>
      %480 = arith.addf %478, %479 : vector<8x1xf32>
      %481 = math.rsqrt %480 : vector<8x1xf32>
      %482 = vector.broadcast %481 : vector<8x1xf32> to vector<8x32xf32>
      %483 = arith.mulf %473, %482 : vector<8x32xf32>
      %c0_303 = arith.constant 0 : index
      %c0_304 = arith.constant 0 : index
      %484 = vector.load %arg33[%c0_303, %c0_304] : memref<1x32xf32, #tpu.memory_space<vmem>>, vector<1x32xf32>
      %485 = vector.broadcast %484 : vector<1x32xf32> to vector<8x32xf32>
      %486 = arith.mulf %483, %485 : vector<8x32xf32>
      %c0_305 = arith.constant 0 : index
      %c0_306 = arith.constant 0 : index
      %487 = vector.load %arg34[%c0_305, %c0_306] : memref<1x32xf32, #tpu.memory_space<vmem>>, vector<1x32xf32>
      %488 = vector.broadcast %487 : vector<1x32xf32> to vector<8x32xf32>
      %489 = arith.addf %486, %488 : vector<8x32xf32>
      %490 = arith.truncf %489 : vector<8x32xf32> to vector<8x32xbf16>
      %c0_307 = arith.constant 0 : index
      %c0_308 = arith.constant 0 : index
      %491 = vector.load %arg27[%c0_307, %c0_308] : memref<32x64xbf16, #tpu.memory_space<vmem>>, vector<32x64xbf16>
      %cst_309 = arith.constant dense<0.000000e+00> : vector<8x64xf32>
      %492 = tpu.matmul %490, %491, %cst_309 {dimension_numbers = #tpu.dot_dimension_numbers<[1], [0], [0], [1], [0, 0, 1, 1], [], []>} : vector<8x32xbf16>, vector<32x64xbf16>, vector<8x64xf32> -> vector<8x64xf32>
      %c0_310 = arith.constant 0 : index
      %c0_311 = arith.constant 0 : index
      %493 = vector.load %arg28[%c0_310, %c0_311] : memref<1x64xf32, #tpu.memory_space<vmem>>, vector<1x64xf32>
      %494 = vector.broadcast %493 : vector<1x64xf32> to vector<8x64xf32>
      %495 = arith.addf %492, %494 : vector<8x64xf32>
      %cst_312 = arith.constant 0.000000e+00 : f32
      %496 = vector.broadcast %cst_312 : f32 to vector<8x64xf32>
      %497 = arith.maximumf %495, %496 : vector<8x64xf32>
      %498 = arith.truncf %497 : vector<8x64xf32> to vector<8x64xbf16>
      %c0_313 = arith.constant 0 : index
      %c0_314 = arith.constant 0 : index
      %499 = vector.load %arg29[%c0_313, %c0_314] : memref<64x32xbf16, #tpu.memory_space<vmem>>, vector<64x32xbf16>
      %cst_315 = arith.constant dense<0.000000e+00> : vector<8x32xf32>
      %500 = tpu.matmul %498, %499, %cst_315 {dimension_numbers = #tpu.dot_dimension_numbers<[1], [0], [0], [1], [0, 0, 1, 1], [], []>} : vector<8x64xbf16>, vector<64x32xbf16>, vector<8x32xf32> -> vector<8x32xf32>
      %c0_316 = arith.constant 0 : index
      %c0_317 = arith.constant 0 : index
      %501 = vector.load %arg30[%c0_316, %c0_317] : memref<1x32xf32, #tpu.memory_space<vmem>>, vector<1x32xf32>
      %502 = vector.broadcast %501 : vector<1x32xf32> to vector<8x32xf32>
      %503 = arith.addf %500, %502 : vector<8x32xf32>
      %504 = arith.addf %489, %503 : vector<8x32xf32>
      %cst_318 = arith.constant dense<0.000000e+00> : vector<8xf32>
      %505 = vector.multi_reduction <add>, %504, %cst_318 [1] : vector<8x32xf32> to vector<8xf32>
      %506 = vector.shape_cast %505 : vector<8xf32> to vector<8x1xf32>
      %cst_319 = arith.constant 3.200000e+01 : f32
      %507 = vector.broadcast %cst_319 : f32 to vector<8x1xf32>
      %508 = arith.divf %506, %507 : vector<8x1xf32>
      %509 = vector.broadcast %508 : vector<8x1xf32> to vector<8x32xf32>
      %510 = arith.subf %504, %509 : vector<8x32xf32>
      %511 = arith.mulf %510, %510 : vector<8x32xf32>
      %cst_320 = arith.constant dense<0.000000e+00> : vector<8xf32>
      %512 = vector.multi_reduction <add>, %511, %cst_320 [1] : vector<8x32xf32> to vector<8xf32>
      %513 = vector.shape_cast %512 : vector<8xf32> to vector<8x1xf32>
      %cst_321 = arith.constant 3.200000e+01 : f32
      %514 = vector.broadcast %cst_321 : f32 to vector<8x1xf32>
      %515 = arith.divf %513, %514 : vector<8x1xf32>
      %cst_322 = arith.constant 9.99999974E-6 : f32
      %516 = vector.broadcast %cst_322 : f32 to vector<8x1xf32>
      %517 = arith.addf %515, %516 : vector<8x1xf32>
      %518 = math.rsqrt %517 : vector<8x1xf32>
      %519 = vector.broadcast %518 : vector<8x1xf32> to vector<8x32xf32>
      %520 = arith.mulf %510, %519 : vector<8x32xf32>
      %c0_323 = arith.constant 0 : index
      %c0_324 = arith.constant 0 : index
      %521 = vector.load %arg35[%c0_323, %c0_324] : memref<1x32xf32, #tpu.memory_space<vmem>>, vector<1x32xf32>
      %522 = vector.broadcast %521 : vector<1x32xf32> to vector<8x32xf32>
      %523 = arith.mulf %520, %522 : vector<8x32xf32>
      %c0_325 = arith.constant 0 : index
      %c0_326 = arith.constant 0 : index
      %524 = vector.load %arg36[%c0_325, %c0_326] : memref<1x32xf32, #tpu.memory_space<vmem>>, vector<1x32xf32>
      %525 = vector.broadcast %524 : vector<1x32xf32> to vector<8x32xf32>
      %526 = arith.addf %523, %525 : vector<8x32xf32>
      %c0_327 = arith.constant 0 : index
      %c0_328 = arith.constant 0 : index
      %c0_329 = arith.constant 0 : index
      %527 = vector.load %arg38[%c0_327, %c0_328, %c0_329] : memref<1x8x32xf32, #tpu.memory_space<vmem>>, vector<1x8x32xf32>
      %528 = vector.shape_cast %527 : vector<1x8x32xf32> to vector<8x32xf32>
      %529 = vector.shape_cast %526 : vector<8x32xf32> to vector<1x8x32xf32>
      tpu.vector_store %arg38[%c0_327, %c0_328, %c0_329], %529 {strides = array<i32>} : memref<1x8x32xf32, #tpu.memory_space<vmem>>, vector<1x8x32xf32>,
    } else {
    }
    return
  }
  func.func @transform_0(%arg0: i32, %arg1: i32) -> (i32, i32, i32) {
    %c0_i32 = arith.constant 0 : i32
    %c0_i32_0 = arith.constant 0 : i32
    %c0_i32_1 = arith.constant 0 : i32
    return %arg0, %c0_i32, %c0_i32_0 : i32, i32, i32
  }
  func.func @transform_1(%arg0: i32, %arg1: i32) -> (i32, i32, i32) {
    %c0_i32 = arith.constant 0 : i32
    %c0_i32_0 = arith.constant 0 : i32
    return %arg0, %c0_i32, %arg1 : i32, i32, i32
  }
  func.func @transform_2(%arg0: i32, %arg1: i32) -> (i32, i32) {
    %c0_i32 = arith.constant 0 : i32
    %c0_i32_0 = arith.constant 0 : i32
    return %arg0, %c0_i32 : i32, i32
  }
  func.func @transform_3(%arg0: i32, %arg1: i32) -> (i32, i32) {
    %c0_i32 = arith.constant 0 : i32
    %c0_i32_0 = arith.constant 0 : i32
    %c0_i32_1 = arith.constant 0 : i32
    return %c0_i32, %c0_i32_0 : i32, i32
  }
  func.func @transform_4(%arg0: i32, %arg1: i32) -> (i32, i32) {
    %c0_i32 = arith.constant 0 : i32
    %c0_i32_0 = arith.constant 0 : i32
    %c0_i32_1 = arith.constant 0 : i32
    return %c0_i32, %c0_i32_0 : i32, i32
  }
  func.func @transform_5(%arg0: i32, %arg1: i32) -> (i32, i32) {
    %c0_i32 = arith.constant 0 : i32
    %c0_i32_0 = arith.constant 0 : i32
    %c0_i32_1 = arith.constant 0 : i32
    return %c0_i32, %c0_i32_0 : i32, i32
  }
  func.func @transform_6(%arg0: i32, %arg1: i32) -> (i32, i32) {
    %c0_i32 = arith.constant 0 : i32
    %c0_i32_0 = arith.constant 0 : i32
    %c0_i32_1 = arith.constant 0 : i32
    return %c0_i32, %c0_i32_0 : i32, i32
  }
  func.func @transform_7(%arg0: i32, %arg1: i32) -> (i32, i32) {
    %c0_i32 = arith.constant 0 : i32
    %c0_i32_0 = arith.constant 0 : i32
    return %arg1, %c0_i32 : i32, i32
  }
  func.func @transform_8(%arg0: i32, %arg1: i32) -> (i32, i32) {
    %c0_i32 = arith.constant 0 : i32
    %c0_i32_0 = arith.constant 0 : i32
    %c0_i32_1 = arith.constant 0 : i32
    return %c0_i32, %c0_i32_0 : i32, i32
  }
  func.func @transform_9(%arg0: i32, %arg1: i32) -> (i32, i32, i32) {
    %c0_i32 = arith.constant 0 : i32
    %c0_i32_0 = arith.constant 0 : i32
    %c0_i32_1 = arith.constant 0 : i32
    %c0_i32_2 = arith.constant 0 : i32
    return %c0_i32, %c0_i32_0, %c0_i32_1 : i32, i32, i32
  }
  func.func @transform_10(%arg0: i32, %arg1: i32) -> (i32, i32, i32) {
    %c0_i32 = arith.constant 0 : i32
    %c0_i32_0 = arith.constant 0 : i32
    %c0_i32_1 = arith.constant 0 : i32
    %c0_i32_2 = arith.constant 0 : i32
    return %c0_i32, %c0_i32_0, %c0_i32_1 : i32, i32, i32
  }
  func.func @transform_11(%arg0: i32, %arg1: i32) -> (i32, i32, i32) {
    %c0_i32 = arith.constant 0 : i32
    %c0_i32_0 = arith.constant 0 : i32
    %c0_i32_1 = arith.constant 0 : i32
    %c0_i32_2 = arith.constant 0 : i32
    return %c0_i32, %c0_i32_0, %c0_i32_1 : i32, i32, i32
  }
  func.func @transform_12(%arg0: i32, %arg1: i32) -> (i32, i32, i32) {
    %c0_i32 = arith.constant 0 : i32
    %c0_i32_0 = arith.constant 0 : i32
    %c0_i32_1 = arith.constant 0 : i32
    %c0_i32_2 = arith.constant 0 : i32
    return %c0_i32, %c0_i32_0, %c0_i32_1 : i32, i32, i32
  }
  func.func @transform_13(%arg0: i32, %arg1: i32) -> (i32, i32, i32) {
    %c0_i32 = arith.constant 0 : i32
    %c0_i32_0 = arith.constant 0 : i32
    %c0_i32_1 = arith.constant 0 : i32
    %c0_i32_2 = arith.constant 0 : i32
    return %c0_i32, %c0_i32_0, %c0_i32_1 : i32, i32, i32
  }
  func.func @transform_14(%arg0: i32, %arg1: i32) -> (i32, i32, i32) {
    %c0_i32 = arith.constant 0 : i32
    %c0_i32_0 = arith.constant 0 : i32
    %c0_i32_1 = arith.constant 0 : i32
    %c0_i32_2 = arith.constant 0 : i32
    return %c0_i32, %c0_i32_0, %c0_i32_1 : i32, i32, i32
  }
  func.func @transform_15(%arg0: i32, %arg1: i32) -> (i32, i32, i32) {
    %c0_i32 = arith.constant 0 : i32
    %c0_i32_0 = arith.constant 0 : i32
    %c0_i32_1 = arith.constant 0 : i32
    %c0_i32_2 = arith.constant 0 : i32
    return %c0_i32, %c0_i32_0, %c0_i32_1 : i32, i32, i32
  }
  func.func @transform_16(%arg0: i32, %arg1: i32) -> (i32, i32) {
    %c0_i32 = arith.constant 0 : i32
    %c0_i32_0 = arith.constant 0 : i32
    %c0_i32_1 = arith.constant 0 : i32
    return %c0_i32, %c0_i32_0 : i32, i32
  }
  func.func @transform_17(%arg0: i32, %arg1: i32) -> (i32, i32, i32) {
    %c0_i32 = arith.constant 0 : i32
    %c0_i32_0 = arith.constant 0 : i32
    %c0_i32_1 = arith.constant 0 : i32
    %c0_i32_2 = arith.constant 0 : i32
    return %c0_i32, %c0_i32_0, %c0_i32_1 : i32, i32, i32
  }
  func.func @transform_18(%arg0: i32, %arg1: i32) -> (i32, i32, i32) {
    %c0_i32 = arith.constant 0 : i32
    %c0_i32_0 = arith.constant 0 : i32
    %c0_i32_1 = arith.constant 0 : i32
    %c0_i32_2 = arith.constant 0 : i32
    return %c0_i32, %c0_i32_0, %c0_i32_1 : i32, i32, i32
  }
  func.func @transform_19(%arg0: i32, %arg1: i32) -> (i32, i32, i32) {
    %c0_i32 = arith.constant 0 : i32
    %c0_i32_0 = arith.constant 0 : i32
    %c0_i32_1 = arith.constant 0 : i32
    %c0_i32_2 = arith.constant 0 : i32
    return %c0_i32, %c0_i32_0, %c0_i32_1 : i32, i32, i32
  }
  func.func @transform_20(%arg0: i32, %arg1: i32) -> (i32, i32, i32) {
    %c0_i32 = arith.constant 0 : i32
    %c0_i32_0 = arith.constant 0 : i32
    %c0_i32_1 = arith.constant 0 : i32
    %c0_i32_2 = arith.constant 0 : i32
    return %c0_i32, %c0_i32_0, %c0_i32_1 : i32, i32, i32
  }
  func.func @transform_21(%arg0: i32, %arg1: i32) -> (i32, i32, i32) {
    %c0_i32 = arith.constant 0 : i32
    %c0_i32_0 = arith.constant 0 : i32
    %c0_i32_1 = arith.constant 0 : i32
    %c0_i32_2 = arith.constant 0 : i32
    return %c0_i32, %c0_i32_0, %c0_i32_1 : i32, i32, i32
  }
  func.func @transform_22(%arg0: i32, %arg1: i32) -> (i32, i32, i32) {
    %c0_i32 = arith.constant 0 : i32
    %c0_i32_0 = arith.constant 0 : i32
    %c0_i32_1 = arith.constant 0 : i32
    %c0_i32_2 = arith.constant 0 : i32
    return %c0_i32, %c0_i32_0, %c0_i32_1 : i32, i32, i32
  }
  func.func @transform_23(%arg0: i32, %arg1: i32) -> (i32, i32, i32) {
    %c0_i32 = arith.constant 0 : i32
    %c0_i32_0 = arith.constant 0 : i32
    %c0_i32_1 = arith.constant 0 : i32
    %c0_i32_2 = arith.constant 0 : i32
    return %c0_i32, %c0_i32_0, %c0_i32_1 : i32, i32, i32
  }
  func.func @transform_24(%arg0: i32, %arg1: i32) -> (i32, i32) {
    %c0_i32 = arith.constant 0 : i32
    %c0_i32_0 = arith.constant 0 : i32
    %c0_i32_1 = arith.constant 0 : i32
    return %c0_i32, %c0_i32_0 : i32, i32
  }
  func.func @transform_25(%arg0: i32, %arg1: i32) -> (i32, i32) {
    %c0_i32 = arith.constant 0 : i32
    %c0_i32_0 = arith.constant 0 : i32
    %c0_i32_1 = arith.constant 0 : i32
    return %c0_i32, %c0_i32_0 : i32, i32
  }
  func.func @transform_26(%arg0: i32, %arg1: i32) -> (i32, i32) {
    %c0_i32 = arith.constant 0 : i32
    %c0_i32_0 = arith.constant 0 : i32
    %c0_i32_1 = arith.constant 0 : i32
    return %c0_i32, %c0_i32_0 : i32, i32
  }
  func.func @transform_27(%arg0: i32, %arg1: i32) -> (i32, i32) {
    %c0_i32 = arith.constant 0 : i32
    %c0_i32_0 = arith.constant 0 : i32
    %c0_i32_1 = arith.constant 0 : i32
    return %c0_i32, %c0_i32_0 : i32, i32
  }
  func.func @transform_28(%arg0: i32, %arg1: i32) -> (i32, i32) {
    %c0_i32 = arith.constant 0 : i32
    %c0_i32_0 = arith.constant 0 : i32
    %c0_i32_1 = arith.constant 0 : i32
    return %c0_i32, %c0_i32_0 : i32, i32
  }
  func.func @transform_29(%arg0: i32, %arg1: i32) -> (i32, i32) {
    %c0_i32 = arith.constant 0 : i32
    %c0_i32_0 = arith.constant 0 : i32
    %c0_i32_1 = arith.constant 0 : i32
    return %c0_i32, %c0_i32_0 : i32, i32
  }
  func.func @transform_30(%arg0: i32, %arg1: i32) -> (i32, i32) {
    %c0_i32 = arith.constant 0 : i32
    %c0_i32_0 = arith.constant 0 : i32
    %c0_i32_1 = arith.constant 0 : i32
    return %c0_i32, %c0_i32_0 : i32, i32
  }
  func.func @transform_31(%arg0: i32, %arg1: i32) -> (i32, i32) {
    %c0_i32 = arith.constant 0 : i32
    %c0_i32_0 = arith.constant 0 : i32
    %c0_i32_1 = arith.constant 0 : i32
    return %c0_i32, %c0_i32_0 : i32, i32
  }
  func.func @transform_32(%arg0: i32, %arg1: i32) -> (i32, i32) {
    %c0_i32 = arith.constant 0 : i32
    %c0_i32_0 = arith.constant 0 : i32
    %c0_i32_1 = arith.constant 0 : i32
    return %c0_i32, %c0_i32_0 : i32, i32
  }
  func.func @transform_33(%arg0: i32, %arg1: i32) -> (i32, i32) {
    %c0_i32 = arith.constant 0 : i32
    %c0_i32_0 = arith.constant 0 : i32
    %c0_i32_1 = arith.constant 0 : i32
    return %c0_i32, %c0_i32_0 : i32, i32
  }
  func.func @transform_34(%arg0: i32, %arg1: i32) -> (i32, i32) {
    %c0_i32 = arith.constant 0 : i32
    %c0_i32_0 = arith.constant 0 : i32
    %c0_i32_1 = arith.constant 0 : i32
    return %c0_i32, %c0_i32_0 : i32, i32
  }
  func.func @transform_35(%arg0: i32, %arg1: i32) -> (i32, i32, i32) {
    %c0_i32 = arith.constant 0 : i32
    %c0_i32_0 = arith.constant 0 : i32
    %c0_i32_1 = arith.constant 0 : i32
    return %arg0, %c0_i32, %c0_i32_0 : i32, i32, i32
  }
  func.func @transform_36(%arg0: i32, %arg1: i32) -> (i32, i32, i32) {
    %c0_i32 = arith.constant 0 : i32
    %c0_i32_0 = arith.constant 0 : i32
    %c0_i32_1 = arith.constant 0 : i32
    return %arg0, %c0_i32, %c0_i32_0 : i32, i32, i32
  }
}

</mosaic_0001>

<llo_original>
// kernel: tpu_custom_call.1
$region0: #{tpu_custom_call.1}
  #allocation0 [shape = 'u32[]', space=smem, size = 0x4, offset = 0x4, fixed_abs, tag = 'smem constant byte address 0x4 - core index']
  #allocation1 [shape = 'u32[72,128]{1,0:T(1,128)}', space=vmem, size = 0x9000, scoped, tag = 'internal scratch']
  #allocation2 [shape = 'f32[8,32]{1,0:T(8,128)}', space=vmem, size = 0x1000, scoped, tag = 'scratch operand']
  %s0 = inlined_call_operand.smem [shape: u32[37], index: -1, kind: input, shape index: {}]
  %s1 = sld [smem:[%s0]]
  %s2 = scalar_lea.smem %s0, 1
  %s3 = sld [smem:[%s2]]
  %s4 = scalar_lea.smem %s0, 2
  %s5 = sld [smem:[%s4]]
  %s6 = scalar_lea.smem %s0, 3
  %s7 = sld [smem:[%s6]]
  %s8 = scalar_lea.smem %s0, 4
  %s9 = sld [smem:[%s8]]
  %s10 = scalar_lea.smem %s0, 5
  %s11 = sld [smem:[%s10]]
  %s12 = scalar_lea.smem %s0, 6
  %s13 = sld [smem:[%s12]]
  %s14 = scalar_lea.smem %s0, 7
  %s15 = sld [smem:[%s14]]
  %s16 = scalar_lea.smem %s0, 8
  %s17 = sld [smem:[%s16]]
  %s18 = scalar_lea.smem %s0, 9
  %s19 = sld [smem:[%s18]]
  %s20 = scalar_lea.smem %s0, 10
  %s21 = sld [smem:[%s20]]
  %s22 = scalar_lea.smem %s0, 11
  %s23 = sld [smem:[%s22]]
  %s24 = scalar_lea.smem %s0, 12
  %s25 = sld [smem:[%s24]]
  %s26 = scalar_lea.smem %s0, 13
  %s27 = sld [smem:[%s26]]
  %s28 = scalar_lea.smem %s0, 14
  %s29 = sld [smem:[%s28]]
  %s30 = scalar_lea.smem %s0, 15
  %s31 = sld [smem:[%s30]]
  %s32 = scalar_lea.smem %s0, 16
  %s33 = sld [smem:[%s32]]
  %s34 = scalar_lea.smem %s0, 17
  %s35 = sld [smem:[%s34]]
  %s36 = scalar_lea.smem %s0, 18
  %s37 = sld [smem:[%s36]]
  %s38 = scalar_lea.smem %s0, 19
  %s39 = sld [smem:[%s38]]
  %s40 = scalar_lea.smem %s0, 20
  %s41 = sld [smem:[%s40]]
  %s42 = scalar_lea.smem %s0, 21
  %s43 = sld [smem:[%s42]]
  %s44 = scalar_lea.smem %s0, 22
  %s45 = sld [smem:[%s44]]
  %s46 = scalar_lea.smem %s0, 23
  %s47 = sld [smem:[%s46]]
  %s48 = scalar_lea.smem %s0, 24
  %s49 = sld [smem:[%s48]]
  %s50 = scalar_lea.smem %s0, 25
  %s51 = sld [smem:[%s50]]
  %s52 = scalar_lea.smem %s0, 26
  %s53 = sld [smem:[%s52]]
  %s54 = scalar_lea.smem %s0, 27
  %s55 = sld [smem:[%s54]]
  %s56 = scalar_lea.smem %s0, 28
  %s57 = sld [smem:[%s56]]
  %s58 = scalar_lea.smem %s0, 29
  %s59 = sld [smem:[%s58]]
  %s60 = scalar_lea.smem %s0, 30
  %s61 = sld [smem:[%s60]]
  %s62 = scalar_lea.smem %s0, 31
  %s63 = sld [smem:[%s62]]
  %s64 = scalar_lea.smem %s0, 32
  %s65 = sld [smem:[%s64]]
  %s66 = scalar_lea.smem %s0, 33
  %s67 = sld [smem:[%s66]]
  %s68 = scalar_lea.smem %s0, 34
  %s69 = sld [smem:[%s68]]
  %s70 = scalar_lea.smem %s0, 35
  %s71 = sld [smem:[%s70]]
  %s72 = scalar_lea.smem %s0, 36
  %s73 = sld [smem:[%s72]]
  %74 = xla_tuple %s71, %s73
  %s75 = sld [smem:[#allocation0]]
  $region166: #{tpu_custom_call.1} parent=0
    _
  %s77 = ssub.s32 1, %s75
  %s78 = scalar_select 0, %s77, %s75
  $region1: #{tpu_custom_call.1} parent=0
    #allocation3 [shape = 'u8[4096]{0}', space=vmem, size = 0x1000, scoped, tag = 'output window, operand 0, single buffered']
    #allocation4 [shape = 's32[1]{0}', space=sflag, size = 0x4, scoped, tag = 'scoped memory for tpu_custom_call.1']
    #allocation5 [shape = 'u8[4096]{0}', space=vmem, size = 0x1000, scoped, tag = 'output window, operand 1, single buffered']
    #allocation6 [shape = 's32[1]{0}', space=sflag, size = 0x4, scoped, tag = 'scoped memory for tpu_custom_call.1']
    %79 = vsyncpa [#allocation4], 0
    %80 = vsyncpa [#allocation6], 0
    // Predicated region
    $region2: #{tpu_custom_call.1} parent=1 // pred_check
      _
    $region3: #{tpu_custom_call.1} parent=1 // pred_check_branch
      %82 = sbr.rel (0) target = $region5
    $region4: #{tpu_custom_call.1} parent=1 // pred_region
      _
    $region5: #{tpu_custom_call.1} parent=1 // pred_fallthru
      _
    // Predicated region
    $region6: #{tpu_custom_call.1} parent=1 // pred_check
      _
    $region7: #{tpu_custom_call.1} parent=1 // pred_check_branch
      %84 = sbr.rel (0) target = $region9
    $region8: #{tpu_custom_call.1} parent=1 // pred_region
      _
    $region9: #{tpu_custom_call.1} parent=1 // pred_fallthru
      _
    // Predicated region
    $region10: #{tpu_custom_call.1} parent=1 // pred_check
      _
    $region11: #{tpu_custom_call.1} parent=1 // pred_check_branch
      %86 = sbr.rel (0) target = $region13
    $region12: #{tpu_custom_call.1} parent=1 // pred_region
      _
    $region13: #{tpu_custom_call.1} parent=1 // pred_fallthru
      _
    // Predicated region
    $region14: #{tpu_custom_call.1} parent=1 // pred_check
      _
    $region15: #{tpu_custom_call.1} parent=1 // pred_check_branch
      %88 = sbr.rel (0) target = $region17
    $region16: #{tpu_custom_call.1} parent=1 // pred_region
      _
    $region17: #{tpu_custom_call.1} parent=1 // pred_fallthru
      _
    // Predicated region
    $region18: #{tpu_custom_call.1} parent=1 // pred_check
      _
    $region19: #{tpu_custom_call.1} parent=1 // pred_check_branch
      %90 = sbr.rel (0) target = $region21
    $region20: #{tpu_custom_call.1} parent=1 // pred_region
      _
    $region21: #{tpu_custom_call.1} parent=1 // pred_fallthru
      _
    // Predicated region
    $region22: #{tpu_custom_call.1} parent=1 // pred_check
      _
    $region23: #{tpu_custom_call.1} parent=1 // pred_check_branch
      %92 = sbr.rel (0) target = $region25
    $region24: #{tpu_custom_call.1} parent=1 // pred_region
      _
    $region25: #{tpu_custom_call.1} parent=1 // pred_fallthru
      _
    // Predicated region
    $region26: #{tpu_custom_call.1} parent=1 // pred_check
      _
    $region27: #{tpu_custom_call.1} parent=1 // pred_check_branch
      %94 = sbr.rel (0) target = $region29
    $region28: #{tpu_custom_call.1} parent=1 // pred_region
      _
    $region29: #{tpu_custom_call.1} parent=1 // pred_fallthru
      _
    // Predicated region
    $region30: #{tpu_custom_call.1} parent=1 // pred_check
      _
    $region31: #{tpu_custom_call.1} parent=1 // pred_check_branch
      %96 = sbr.rel (0) target = $region33
    $region32: #{tpu_custom_call.1} parent=1 // pred_region
      _
    $region33: #{tpu_custom_call.1} parent=1 // pred_fallthru
      _
    // Predicated region
    $region34: #{tpu_custom_call.1} parent=1 // pred_check
      _
    $region35: #{tpu_custom_call.1} parent=1 // pred_check_branch
      %98 = sbr.rel (0) target = $region37
    $region36: #{tpu_custom_call.1} parent=1 // pred_region
      _
    $region37: #{tpu_custom_call.1} parent=1 // pred_fallthru
      _
    // Predicated region
    $region38: #{tpu_custom_call.1} parent=1 // pred_check
      _
    $region39: #{tpu_custom_call.1} parent=1 // pred_check_branch
      %100 = sbr.rel (0) target = $region41
    $region40: #{tpu_custom_call.1} parent=1 // pred_region
      _
    $region41: #{tpu_custom_call.1} parent=1 // pred_fallthru
      _
    // Predicated region
    $region42: #{tpu_custom_call.1} parent=1 // pred_check
      _
    $region43: #{tpu_custom_call.1} parent=1 // pred_check_branch
      %102 = sbr.rel (0) target = $region45
    $region44: #{tpu_custom_call.1} parent=1 // pred_region
      _
    $region45: #{tpu_custom_call.1} parent=1 // pred_fallthru
      _
    // Predicated region
    $region46: #{tpu_custom_call.1} parent=1 // pred_check
      _
    $region47: #{tpu_custom_call.1} parent=1 // pred_check_branch
      %104 = sbr.rel (0) target = $region49
    $region48: #{tpu_custom_call.1} parent=1 // pred_region
      _
    $region49: #{tpu_custom_call.1} parent=1 // pred_fallthru
      _
    // Predicated region
    $region50: #{tpu_custom_call.1} parent=1 // pred_check
      _
    $region51: #{tpu_custom_call.1} parent=1 // pred_check_branch
      %106 = sbr.rel (0) target = $region53
    $region52: #{tpu_custom_call.1} parent=1 // pred_region
      _
    $region53: #{tpu_custom_call.1} parent=1 // pred_fallthru
      _
    // Predicated region
    $region54: #{tpu_custom_call.1} parent=1 // pred_check
      _
    $region55: #{tpu_custom_call.1} parent=1 // pred_check_branch
      %108 = sbr.rel (0) target = $region57
    $region56: #{tpu_custom_call.1} parent=1 // pred_region
      _
    $region57: #{tpu_custom_call.1} parent=1 // pred_fallthru
      _
    // Predicated region
    $region58: #{tpu_custom_call.1} parent=1 // pred_check
      _
    $region59: #{tpu_custom_call.1} parent=1 // pred_check_branch
      %110 = sbr.rel (0) target = $region61
    $region60: #{tpu_custom_call.1} parent=1 // pred_region
      _
    $region61: #{tpu_custom_call.1} parent=1 // pred_fallthru
      _
    // Predicated region
    $region62: #{tpu_custom_call.1} parent=1 // pred_check
      _
    $region63: #{tpu_custom_call.1} parent=1 // pred_check_branch
      %112 = sbr.rel (0) target = $region65
    $region64: #{tpu_custom_call.1} parent=1 // pred_region
      _
    $region65: #{tpu_custom_call.1} parent=1 // pred_fallthru
      _
    // Predicated region
    $region66: #{tpu_custom_call.1} parent=1 // pred_check
      _
    $region67: #{tpu_custom_call.1} parent=1 // pred_check_branch
      %114 = sbr.rel (0) target = $region69
    $region68: #{tpu_custom_call.1} parent=1 // pred_region
      _
    $region69: #{tpu_custom_call.1} parent=1 // pred_fallthru
      _
    // Predicated region
    $region70: #{tpu_custom_call.1} parent=1 // pred_check
      _
    $region71: #{tpu_custom_call.1} parent=1 // pred_check_branch
      %116 = sbr.rel (0) target = $region73
    $region72: #{tpu_custom_call.1} parent=1 // pred_region
      _
    $region73: #{tpu_custom_call.1} parent=1 // pred_fallthru
      _
    // Predicated region
    $region74: #{tpu_custom_call.1} parent=1 // pred_check
      _
    $region75: #{tpu_custom_call.1} parent=1 // pred_check_branch
      %118 = sbr.rel (0) target = $region77
    $region76: #{tpu_custom_call.1} parent=1 // pred_region
      _
    $region77: #{tpu_custom_call.1} parent=1 // pred_fallthru
      _
    // Predicated region
    $region78: #{tpu_custom_call.1} parent=1 // pred_check
      _
    $region79: #{tpu_custom_call.1} parent=1 // pred_check_branch
      %120 = sbr.rel (0) target = $region81
    $region80: #{tpu_custom_call.1} parent=1 // pred_region
      _
    $region81: #{tpu_custom_call.1} parent=1 // pred_fallthru
      _
    // Predicated region
    $region82: #{tpu_custom_call.1} parent=1 // pred_check
      _
    $region83: #{tpu_custom_call.1} parent=1 // pred_check_branch
      %122 = sbr.rel (0) target = $region85
    $region84: #{tpu_custom_call.1} parent=1 // pred_region
      _
    $region85: #{tpu_custom_call.1} parent=1 // pred_fallthru
      _
    // Predicated region
    $region86: #{tpu_custom_call.1} parent=1 // pred_check
      _
    $region87: #{tpu_custom_call.1} parent=1 // pred_check_branch
      %124 = sbr.rel (0) target = $region89
    $region88: #{tpu_custom_call.1} parent=1 // pred_region
      _
    $region89: #{tpu_custom_call.1} parent=1 // pred_fallthru
      _
    // Predicated region
    $region90: #{tpu_custom_call.1} parent=1 // pred_check
      _
    $region91: #{tpu_custom_call.1} parent=1 // pred_check_branch
      %126 = sbr.rel (0) target = $region93
    $region92: #{tpu_custom_call.1} parent=1 // pred_region
      _
    $region93: #{tpu_custom_call.1} parent=1 // pred_fallthru
      _
    // Predicated region
    $region94: #{tpu_custom_call.1} parent=1 // pred_check
      _
    $region95: #{tpu_custom_call.1} parent=1 // pred_check_branch
      %128 = sbr.rel (0) target = $region97
    $region96: #{tpu_custom_call.1} parent=1 // pred_region
      _
    $region97: #{tpu_custom_call.1} parent=1 // pred_fallthru
      _
    // Predicated region
    $region98: #{tpu_custom_call.1} parent=1 // pred_check
      _
    $region99: #{tpu_custom_call.1} parent=1 // pred_check_branch
      %130 = sbr.rel (0) target = $region101
    $region100: #{tpu_custom_call.1} parent=1 // pred_region
      _
    $region101: #{tpu_custom_call.1} parent=1 // pred_fallthru
      _
    // Predicated region
    $region102: #{tpu_custom_call.1} parent=1 // pred_check
      _
    $region103: #{tpu_custom_call.1} parent=1 // pred_check_branch
      %132 = sbr.rel (0) target = $region105
    $region104: #{tpu_custom_call.1} parent=1 // pred_region
      _
    $region105: #{tpu_custom_call.1} parent=1 // pred_fallthru
      _
    // Predicated region
    $region106: #{tpu_custom_call.1} parent=1 // pred_check
      _
    $region107: #{tpu_custom_call.1} parent=1 // pred_check_branch
      %134 = sbr.rel (0) target = $region109
    $region108: #{tpu_custom_call.1} parent=1 // pred_region
      _
    $region109: #{tpu_custom_call.1} parent=1 // pred_fallthru
      _
    // Predicated region
    $region110: #{tpu_custom_call.1} parent=1 // pred_check
      _
    $region111: #{tpu_custom_call.1} parent=1 // pred_check_branch
      %136 = sbr.rel (0) target = $region113
    $region112: #{tpu_custom_call.1} parent=1 // pred_region
      _
    $region113: #{tpu_custom_call.1} parent=1 // pred_fallthru
      _
    // Predicated region
    $region114: #{tpu_custom_call.1} parent=1 // pred_check
      _
    $region115: #{tpu_custom_call.1} parent=1 // pred_check_branch
      %138 = sbr.rel (0) target = $region117
    $region116: #{tpu_custom_call.1} parent=1 // pred_region
      _
    $region117: #{tpu_custom_call.1} parent=1 // pred_fallthru
      _
    // Predicated region
    $region118: #{tpu_custom_call.1} parent=1 // pred_check
      _
    $region119: #{tpu_custom_call.1} parent=1 // pred_check_branch
      %140 = sbr.rel (0) target = $region121
    $region120: #{tpu_custom_call.1} parent=1 // pred_region
      _
    $region121: #{tpu_custom_call.1} parent=1 // pred_fallthru
      _
    // Predicated region
    $region122: #{tpu_custom_call.1} parent=1 // pred_check
      _
    $region123: #{tpu_custom_call.1} parent=1 // pred_check_branch
      %142 = sbr.rel (0) target = $region125
    $region124: #{tpu_custom_call.1} parent=1 // pred_region
      _
    $region125: #{tpu_custom_call.1} parent=1 // pred_fallthru
      _
    // Predicated region
    $region126: #{tpu_custom_call.1} parent=1 // pred_check
      _
    $region127: #{tpu_custom_call.1} parent=1 // pred_check_branch
      %144 = sbr.rel (0) target = $region129
    $region128: #{tpu_custom_call.1} parent=1 // pred_region
      _
    $region129: #{tpu_custom_call.1} parent=1 // pred_fallthru
      _
    // Predicated region
    $region130: #{tpu_custom_call.1} parent=1 // pred_check
      _
    $region131: #{tpu_custom_call.1} parent=1 // pred_check_branch
      %146 = sbr.rel (0) target = $region133
    $region132: #{tpu_custom_call.1} parent=1 // pred_region
      _
    $region133: #{tpu_custom_call.1} parent=1 // pred_fallthru
      _
    // Predicated region
    $region134: #{tpu_custom_call.1} parent=1 // pred_check
      _
    $region135: #{tpu_custom_call.1} parent=1 // pred_check_branch
      %148 = sbr.rel (0) target = $region137
    $region136: #{tpu_custom_call.1} parent=1 // pred_region
      _
    $region137: #{tpu_custom_call.1} parent=1 // pred_fallthru
      _
    // Predicated region
    $region138: #{tpu_custom_call.1} parent=1 // pred_check
      _
    $region139: #{tpu_custom_call.1} parent=1 // pred_check_branch
      %150 = sbr.rel (0) target = $region141
    $region140: #{tpu_custom_call.1} parent=1 // pred_region
      _
    $region141: #{tpu_custom_call.1} parent=1 // pred_fallthru
      _
    %p152 = scmp.eq.s32.totalorder 0, 0
    // Predicated region
    $region142: #{tpu_custom_call.1} parent=1 // pred_check
      %p153 = pneg %p152
    $region143: #{tpu_custom_call.1} parent=1 // pred_check_branch
      %155 = sbr.rel (%p153) target = $region145
    $region144: #{tpu_custom_call.1} parent=1 // pred_region
      %vm156 = vcmask 261120
      %157 = vst.msk [vmem:[#allocation2] sm:$0xff] %vm156, 0.0
    $region145: #{tpu_custom_call.1} parent=1 // pred_fallthru
      _
    %v158 = vld [vmem:[#allocation2] sm:$0xff]
    %v159 = vld [vmem:[%s3] sm:$0xf]
    %v160 = vld [vmem:[%s15] sm:$0xf]
    %v161 = vld [vmem:[%s15 + $0x4] sm:$0xf]
    %v162 = vld [vmem:[%s15 + $0x8] sm:$0xf]
    %v163 = vld [vmem:[%s15 + $0xc] sm:$0xf]
    %v164 = vld [vmem:[%s15 + $0x10] sm:$0xf]
    %v165 = vld [vmem:[%s15 + $0x14] sm:$0xf]
    %v166 = vld [vmem:[%s15 + $0x18] sm:$0xf]
    %v167 = vld [vmem:[%s15 + $0x1c] sm:$0xf]
    %v168 = vld [vmem:[%s15 + $0x20] sm:$0xf]
    %v169 = vld [vmem:[%s15 + $0x24] sm:$0xf]
    %v170 = vld [vmem:[%s15 + $0x28] sm:$0xf]
    %v171 = vld [vmem:[%s15 + $0x2c] sm:$0xf]
    %v172 = vld [vmem:[%s15 + $0x30] sm:$0xf]
    %v173 = vld [vmem:[%s15 + $0x34] sm:$0xf]
    %v174 = vld [vmem:[%s15 + $0x38] sm:$0xf]
    %v175 = vld [vmem:[%s15 + $0x3c] sm:$0xf]
    %v192 = vunpack.c.l.b16 %v160
    %v193 = vunpack.c.l.b16 %v161
    %v194 = vunpack.c.l.b16 %v162
    %v195 = vunpack.c.l.b16 %v163
    %v196 = vunpack.c.l.b16 %v164
    %v197 = vunpack.c.l.b16 %v165
    %v198 = vunpack.c.l.b16 %v166
    %v199 = vunpack.c.l.b16 %v167
    %v200 = vunpack.c.l.b16 %v168
    %v201 = vunpack.c.l.b16 %v169
    %v202 = vunpack.c.l.b16 %v170
    %v203 = vunpack.c.l.b16 %v171
    %v204 = vunpack.c.l.b16 %v172
    %v205 = vunpack.c.l.b16 %v173
    %v206 = vunpack.c.l.b16 %v174
    %v207 = vunpack.c.l.b16 %v175
    %v208 = vpack.c.b16 %v193, %v192
    %v209 = vpack.c.b16 %v195, %v194
    %v210 = vpack.c.b16 %v197, %v196
    %v211 = vpack.c.b16 %v199, %v198
    %v212 = vpack.c.b16 %v201, %v200
    %v213 = vpack.c.b16 %v203, %v202
    %v214 = vpack.c.b16 %v205, %v204
    %v215 = vpack.c.b16 %v207, %v206
    %224 = vmatpush.bf16.msra.mxu0 %v215
    %225 = vmatpush.bf16.msra.mxu0 %v214
    %226 = vmatpush.bf16.msra.mxu0 %v213
    %227 = vmatpush.bf16.msra.mxu0 %v212
    %228 = vmatpush.bf16.msra.mxu0 %v211
    %229 = vmatpush.bf16.msra.mxu0 %v210
    %230 = vmatpush.bf16.msra.mxu0 %v209
    %231 = vmatpush.bf16.msra.mxu0 %v208
    %232 = vmatmul.bf16.gmra.mxu0 %v159
    %v233 = vpop.f32.mrf.mxu0
    %v234 = vadd.f32 0.0, %v233
    %v235 = vpop.f32.mrf.mxu0
    %236 = vdwg.mxu0
    %v237 = vadd.f32 %v158, %v234
    %vm238 = vcmask 261120
    %239 = vst.msk [vmem:[#allocation2] sm:$0xff] %vm238, %v237
    // Predicated region
    $region146: #{tpu_custom_call.1} parent=1 // pred_check
      %p240 = pneg %p152
    $region147: #{tpu_custom_call.1} parent=1 // pred_check_branch
      %242 = sbr.rel (%p240) target = $region149
    $region148: #{tpu_custom_call.1} parent=1 // pred_region
      %v243 = vld [vmem:[%s5] sm:$0x1]
      %v244 = vpack.c.bf16 %v243, %v243
      %v245 = vld [vmem:[%s13] sm:$0x3]
      %vm246 = vcmask 23552
      %v248 = vsel %vm246, %v244, 0
      %vm250 = vcmask 1040384
      %vm251 = vcmask 1041408
      %v252 = vsel %vm250, 4294967295, 65535
      %v253 = vsel %vm251, %v252, 0
      %v255 = vand.u32 %v245, %v253
      %257 = vmatpush.bf16.msra.mxu0 0
      %258 = vmatpush.bf16.msra.mxu0 0
      %259 = vmatpush.bf16.msra.mxu0 0
      %260 = vmatpush.bf16.msra.mxu0 0
      %261 = vmatpush.bf16.msra.mxu0 0
      %262 = vmatpush.bf16.msra.mxu0 0
      %263 = vmatpush.bf16.msra.mxu0 0
      %264 = vmatpush.bf16.msra.mxu0 %v255
      %265 = vmatmul.bf16.gmra.mxu0 %v248
      %v266 = vpop.f32.mrf.mxu0
      %v267 = vadd.f32 0.0, %v266
      %v268 = vpop.f32.mrf.mxu0
      %269 = vdwg.mxu0
      %v270 = vld [vmem:[#allocation2] sm:$0xff]
      %v271 = vld [vmem:[%s17] sm:$0x1]
      %v273 = vperm.slane %v271, 0
      %v275 = vadd.f32 %v270, %v273
      %v276 = vperm.slane %v267, 0
      %v277 = vadd.f32 %v275, %v276
      %v278 = vld [vmem:[%s7] sm:$0xff]
      %v279 = vadd.f32 %v277, %v278
      %280 = vst.msk [vmem:[#allocation3] sm:$0xff] %vm238, %v279
      %v281 = vld [vmem:[%s1] sm:$0xff]
      %v282 = vpack.c.bf16 %v281, %v281
      %v283 = vld [vmem:[%s9] sm:$0xf]
      %v284 = vld [vmem:[%s9 + $0x4] sm:$0xf]
      %v285 = vld [vmem:[%s9 + $0x8] sm:$0xf]
      %v286 = vld [vmem:[%s9 + $0xc] sm:$0xf]
      %v287 = vld [vmem:[%s9 + $0x10] sm:$0xf]
      %v288 = vld [vmem:[%s9 + $0x14] sm:$0xf]
      %v289 = vld [vmem:[%s9 + $0x18] sm:$0xf]
      %v290 = vld [vmem:[%s9 + $0x1c] sm:$0xf]
      %v291 = vld [vmem:[%s11] sm:$0x1]
      %v293 = vperm.slane %v291, 0
      %v303 = vunpack.c.l.b16 %v283
      %v304 = vunpack.c.l.b16 %v284
      %v305 = vunpack.c.l.b16 %v285
      %v306 = vunpack.c.l.b16 %v286
      %v307 = vunpack.c.l.b16 %v287
      %v308 = vunpack.c.l.b16 %v288
      %v309 = vunpack.c.l.b16 %v289
      %v310 = vunpack.c.l.b16 %v290
      %v311 = vpack.c.b16 %v304, %v303
      %v312 = vpack.c.b16 %v306, %v305
      %v313 = vpack.c.b16 %v308, %v307
      %v314 = vpack.c.b16 %v310, %v309
      %vm319 = vcmask 523264
      %v321 = vsel %vm319, %v282, 0
      %323 = vmatpush.bf16.msra.mxu0 0
      %324 = vmatpush.bf16.msra.mxu0 0
      %325 = vmatpush.bf16.msra.mxu0 0
      %326 = vmatpush.bf16.msra.mxu0 0
      %327 = vmatpush.bf16.msra.mxu0 %v314
      %328 = vmatpush.bf16.msra.mxu0 %v313
      %329 = vmatpush.bf16.msra.mxu0 %v312
      %330 = vmatpush.bf16.msra.mxu0 %v311
      %331 = vmatmul.bf16.gmra.mxu0 %v321
      %v332 = vpop.f32.mrf.mxu0
      %v333 = vadd.f32 %v293, %v332
      %v334 = vpop.f32.mrf.mxu0
      %335 = vdwg.mxu0
      %v336 = vlaneseq
      %v337 = vshrl.u32 %v336, 7
      %v338 = vlaneseq
      %v339 = vand.u32 %v338, 127
      %v340 = vsub.s32 %v337, %v339
      %v341 = vcvt.s32.f32 %v340
      %vm342 = vcmp.ge.f32.partialorder %v341, 0.0
      %v343 = vsel %vm342, 0.0, -1e+30
      %v344 = vmax.f32 %v341, 0.0
      %v345 = vadd.f32 %v344, 0.5
      %v346 = vmul.f32 %v345, 0.04
      %v347 = vfloor.f32 %v346
      %v348 = vsub.f32 0.0, %v347
      %vm349 = vcmp.eq.s32.totalorder %v339, %v337
      %v350 = vsel %vm349, 0.0, -1e+30
      %v351 = vpack.c.bf16 %v279, %v279
      %v352 = vld [vmem:[%s19] sm:$0xf]
      %v353 = vld [vmem:[%s19 + $0x4] sm:$0xf]
      %v354 = vld [vmem:[%s19 + $0x8] sm:$0xf]
      %v355 = vld [vmem:[%s19 + $0xc] sm:$0xf]
      %v356 = vld [vmem:[%s27] sm:$0x1]
      %v358 = vperm.slane %v356, 0
      %v364 = vunpack.c.l.b16 %v352
      %v365 = vunpack.c.l.b16 %v353
      %v366 = vunpack.c.l.b16 %v354
      %v367 = vunpack.c.l.b16 %v355
      %v368 = vpack.c.b16 %v365, %v364
      %v369 = vpack.c.b16 %v367, %v366
      %v373 = vsel %vm238, %v351, 0
      %375 = vmatpush.bf16.msra.mxu0 0
      %376 = vmatpush.bf16.msra.mxu0 0
      %377 = vmatpush.bf16.msra.mxu0 0
      %378 = vmatpush.bf16.msra.mxu0 0
      %379 = vmatpush.bf16.msra.mxu0 0
      %380 = vmatpush.bf16.msra.mxu0 0
      %381 = vmatpush.bf16.msra.mxu0 %v369
      %382 = vmatpush.bf16.msra.mxu0 %v368
      %383 = vmatmul.bf16.gmra.mxu0 %v373
      %v384 = vpop.f32.mrf.mxu0
      %v385 = vadd.f32 %v358, %v384
      %v386 = vpop.f32.mrf.mxu0
      %387 = vdwg.mxu0
      %v388 = vld [vmem:[%s21] sm:$0xf]
      %v389 = vld [vmem:[%s21 + $0x4] sm:$0xf]
      %v390 = vld [vmem:[%s21 + $0x8] sm:$0xf]
      %v391 = vld [vmem:[%s21 + $0xc] sm:$0xf]
      %v392 = vld [vmem:[%s29] sm:$0x1]
      %v394 = vperm.slane %v392, 0
      %v400 = vunpack.c.l.b16 %v388
      %v401 = vunpack.c.l.b16 %v389
      %v402 = vunpack.c.l.b16 %v390
      %v403 = vunpack.c.l.b16 %v391
      %v404 = vpack.c.b16 %v401, %v400
      %v405 = vpack.c.b16 %v403, %v402
      %408 = vmatpush.bf16.msra.mxu0 0
      %409 = vmatpush.bf16.msra.mxu0 0
      %410 = vmatpush.bf16.msra.mxu0 0
      %411 = vmatpush.bf16.msra.mxu0 0
      %412 = vmatpush.bf16.msra.mxu0 0
      %413 = vmatpush.bf16.msra.mxu0 0
      %414 = vmatpush.bf16.msra.mxu0 %v405
      %415 = vmatpush.bf16.msra.mxu0 %v404
      %416 = vmatmul.bf16.gmra.mxu0 %v373
      %v417 = vpop.f32.mrf.mxu0
      %v418 = vadd.f32 %v394, %v417
      %v419 = vpop.f32.mrf.mxu0
      %420 = vdwg.mxu0
      %v421 = vld [vmem:[%s23] sm:$0xf]
      %v422 = vld [vmem:[%s23 + $0x4] sm:$0xf]
      %v423 = vld [vmem:[%s23 + $0x8] sm:$0xf]
      %v424 = vld [vmem:[%s23 + $0xc] sm:$0xf]
      %v425 = vld [vmem:[%s31] sm:$0x1]
      %v427 = vperm.slane %v425, 0
      %v433 = vunpack.c.l.b16 %v421
      %v434 = vunpack.c.l.b16 %v422
      %v435 = vunpack.c.l.b16 %v423
      %v436 = vunpack.c.l.b16 %v424
      %v437 = vpack.c.b16 %v434, %v433
      %v438 = vpack.c.b16 %v436, %v435
      %441 = vmatpush.bf16.msra.mxu0 0
      %442 = vmatpush.bf16.msra.mxu0 0
      %443 = vmatpush.bf16.msra.mxu0 0
      %444 = vmatpush.bf16.msra.mxu0 0
      %445 = vmatpush.bf16.msra.mxu0 0
      %446 = vmatpush.bf16.msra.mxu0 0
      %447 = vmatpush.bf16.msra.mxu0 %v438
      %448 = vmatpush.bf16.msra.mxu0 %v437
      %449 = vmatmul.bf16.gmra.mxu0 %v373
      %v450 = vpop.f32.mrf.mxu0
      %v451 = vadd.f32 %v427, %v450
      %v452 = vpop.f32.mrf.mxu0
      %453 = vdwg.mxu0
      %v454 = vpack.c.bf16 %v385, %v385
      %v455 = vpack.c.bf16 %v418, %v418
      %vm456 = vcmask 64512
      %v458 = vsel %vm456, %v454, 0
      %v461 = vsel %vm456, %v455, 0
      %463 = vmatpush.bf16.xpose.msra.mxu0 0
      %464 = vmatpush.bf16.xpose.msra.mxu0 0
      %465 = vmatpush.bf16.xpose.msra.mxu0 0
      %466 = vmatpush.bf16.xpose.msra.mxu0 0
      %467 = vmatpush.bf16.xpose.msra.mxu0 0
      %468 = vmatpush.bf16.xpose.msra.mxu0 0
      %469 = vmatpush.bf16.xpose.msra.mxu0 0
      %470 = vmatpush.bf16.xpose.msra.mxu0 %v461
      %471 = vmatmul.bf16.gmra.mxu0 %v458
      %v472 = vpop.f32.mrf.mxu0
      %v473 = vadd.f32 0.0, %v472
      %v474 = vpop.f32.mrf.mxu0
      %475 = vdwg.mxu0
      %v476 = vmul.f32 %v473, 0.35355338
      %v477 = vmul.f32 %v348, 0.25
      %v478 = vadd.f32 %v343, %v477
      %v479 = vadd.f32 %v476, %v478
      %v480 = vsel %vm456, %v479, -inf
      %481 = vmax.xlane.f32.xlu0 %v480
      %v482 = vpop.xlane.xlu0 %481
      %v483 = vsub.f32 %v479, %v482
      %v484 = vmul.f32 %v483, 1.442695
      %v485 = vpow.pop %v484
      %v486 = vsel %vm456, %v485, 0.0
      %487 = vadd.xlane.f32.xlu0 %v486
      %v488 = vpop.xlane.xlu0 %487
      %v489 = vrcp.pop %v488
      %v490 = vmul.f32 %v485, %v489
      %v491 = vpack.c.bf16 %v490, %v490
      %v492 = vpack.c.bf16 %v451, %v451
      %v494 = vsel %vm456, %v491, 0
      %vm496 = vcmask 1043456
      %v498 = vsel %vm496, %v492, 0
      %500 = vmatpush.bf16.msra.mxu0 0
      %501 = vmatpush.bf16.msra.mxu0 0
      %502 = vmatpush.bf16.msra.mxu0 0
      %503 = vmatpush.bf16.msra.mxu0 0
      %504 = vmatpush.bf16.msra.mxu0 0
      %505 = vmatpush.bf16.msra.mxu0 0
      %506 = vmatpush.bf16.msra.mxu0 0
      %507 = vmatpush.bf16.msra.mxu0 %v498
      %508 = vmatmul.bf16.gmra.mxu0 %v494
      %v509 = vpop.f32.mrf.mxu0
      %v510 = vadd.f32 0.0, %v509
      %v511 = vpop.f32.mrf.mxu0
      %512 = vdwg.mxu0
      %v513 = vpack.c.bf16 %v510, %v510
      %v514 = vld [vmem:[%s25] sm:$0xf]
      %s515 = scalar_lea.vmem %s19, 16
      %v516 = vld [vmem:[%s515] sm:$0xf]
      %v517 = vld [vmem:[%s515 + $0x4] sm:$0xf]
      %v518 = vld [vmem:[%s515 + $0x8] sm:$0xf]
      %v519 = vld [vmem:[%s515 + $0xc] sm:$0xf]
      %s520 = scalar_lea.vmem %s27, 1
      %v521 = vld [vmem:[%s520] sm:$0x1]
      %v523 = vperm.slane %v521, 0
      %v529 = vunpack.c.l.b16 %v516
      %v530 = vunpack.c.l.b16 %v517
      %v531 = vunpack.c.l.b16 %v518
      %v532 = vunpack.c.l.b16 %v519
      %v533 = vpack.c.b16 %v530, %v529
      %v534 = vpack.c.b16 %v532, %v531
      %537 = vmatpush.bf16.msra.mxu0 0
      %538 = vmatpush.bf16.msra.mxu0 0
      %539 = vmatpush.bf16.msra.mxu0 0
      %540 = vmatpush.bf16.msra.mxu0 0
      %541 = vmatpush.bf16.msra.mxu0 0
      %542 = vmatpush.bf16.msra.mxu0 0
      %543 = vmatpush.bf16.msra.mxu0 %v534
      %544 = vmatpush.bf16.msra.mxu0 %v533
      %545 = vmatmul.bf16.gmra.mxu0 %v373
      %v546 = vpop.f32.mrf.mxu0
      %v547 = vadd.f32 %v523, %v546
      %v548 = vpop.f32.mrf.mxu0
      %549 = vdwg.mxu0
      %s550 = scalar_lea.vmem %s21, 16
      %v551 = vld [vmem:[%s550] sm:$0xf]
      %v552 = vld [vmem:[%s550 + $0x4] sm:$0xf]
      %v553 = vld [vmem:[%s550 + $0x8] sm:$0xf]
      %v554 = vld [vmem:[%s550 + $0xc] sm:$0xf]
      %s555 = scalar_lea.vmem %s29, 1
      %v556 = vld [vmem:[%s555] sm:$0x1]
      %v558 = vperm.slane %v556, 0
      %v564 = vunpack.c.l.b16 %v551
      %v565 = vunpack.c.l.b16 %v552
      %v566 = vunpack.c.l.b16 %v553
      %v567 = vunpack.c.l.b16 %v554
      %v568 = vpack.c.b16 %v565, %v564
      %v569 = vpack.c.b16 %v567, %v566
      %572 = vmatpush.bf16.msra.mxu0 0
      %573 = vmatpush.bf16.msra.mxu0 0
      %574 = vmatpush.bf16.msra.mxu0 0
      %575 = vmatpush.bf16.msra.mxu0 0
      %576 = vmatpush.bf16.msra.mxu0 0
      %577 = vmatpush.bf16.msra.mxu0 0
      %578 = vmatpush.bf16.msra.mxu0 %v569
      %579 = vmatpush.bf16.msra.mxu0 %v568
      %580 = vmatmul.bf16.gmra.mxu0 %v373
      %v581 = vpop.f32.mrf.mxu0
      %v582 = vadd.f32 %v558, %v581
      %v583 = vpop.f32.mrf.mxu0
      %584 = vdwg.mxu0
      %s585 = scalar_lea.vmem %s23, 16
      %v586 = vld [vmem:[%s585] sm:$0xf]
      %v587 = vld [vmem:[%s585 + $0x4] sm:$0xf]
      %v588 = vld [vmem:[%s585 + $0x8] sm:$0xf]
      %v589 = vld [vmem:[%s585 + $0xc] sm:$0xf]
      %s590 = scalar_lea.vmem %s31, 1
      %v591 = vld [vmem:[%s590] sm:$0x1]
      %v593 = vperm.slane %v591, 0
      %v599 = vunpack.c.l.b16 %v586
      %v600 = vunpack.c.l.b16 %v587
      %v601 = vunpack.c.l.b16 %v588
      %v602 = vunpack.c.l.b16 %v589
      %v603 = vpack.c.b16 %v600, %v599
      %v604 = vpack.c.b16 %v602, %v601
      %607 = vmatpush.bf16.msra.mxu0 0
      %608 = vmatpush.bf16.msra.mxu0 0
      %609 = vmatpush.bf16.msra.mxu0 0
      %610 = vmatpush.bf16.msra.mxu0 0
      %611 = vmatpush.bf16.msra.mxu0 0
      %612 = vmatpush.bf16.msra.mxu0 0
      %613 = vmatpush.bf16.msra.mxu0 %v604
      %614 = vmatpush.bf16.msra.mxu0 %v603
      %615 = vmatmul.bf16.gmra.mxu0 %v373
      %v616 = vpop.f32.mrf.mxu0
      %v617 = vadd.f32 %v593, %v616
      %v618 = vpop.f32.mrf.mxu0
      %619 = vdwg.mxu0
      %v620 = vpack.c.bf16 %v547, %v547
      %v621 = vpack.c.bf16 %v582, %v582
      %v623 = vsel %vm456, %v620, 0
      %v626 = vsel %vm456, %v621, 0
      %628 = vmatpush.bf16.xpose.msra.mxu0 0
      %629 = vmatpush.bf16.xpose.msra.mxu0 0
      %630 = vmatpush.bf16.xpose.msra.mxu0 0
      %631 = vmatpush.bf16.xpose.msra.mxu0 0
      %632 = vmatpush.bf16.xpose.msra.mxu0 0
      %633 = vmatpush.bf16.xpose.msra.mxu0 0
      %634 = vmatpush.bf16.xpose.msra.mxu0 0
      %635 = vmatpush.bf16.xpose.msra.mxu0 %v626
      %636 = vmatmul.bf16.gmra.mxu0 %v623
      %v637 = vpop.f32.mrf.mxu0
      %v638 = vadd.f32 0.0, %v637
      %v639 = vpop.f32.mrf.mxu0
      %640 = vdwg.mxu0
      %v641 = vmul.f32 %v638, 0.35355338
      %v642 = vmul.f32 %v348, 0.0625
      %v643 = vadd.f32 %v343, %v642
      %v644 = vadd.f32 %v641, %v643
      %v645 = vsel %vm456, %v644, -inf
      %646 = vmax.xlane.f32.xlu0 %v645
      %v647 = vpop.xlane.xlu0 %646
      %v648 = vsub.f32 %v644, %v647
      %v649 = vmul.f32 %v648, 1.442695
      %v650 = vpow.pop %v649
      %v651 = vsel %vm456, %v650, 0.0
      %652 = vadd.xlane.f32.xlu0 %v651
      %v653 = vpop.xlane.xlu0 %652
      %v654 = vrcp.pop %v653
      %v655 = vmul.f32 %v650, %v654
      %v656 = vpack.c.bf16 %v655, %v655
      %v657 = vpack.c.bf16 %v617, %v617
      %v659 = vsel %vm456, %v656, 0
      %v662 = vsel %vm496, %v657, 0
      %664 = vmatpush.bf16.msra.mxu0 0
      %665 = vmatpush.bf16.msra.mxu0 0
      %666 = vmatpush.bf16.msra.mxu0 0
      %667 = vmatpush.bf16.msra.mxu0 0
      %668 = vmatpush.bf16.msra.mxu0 0
      %669 = vmatpush.bf16.msra.mxu0 0
      %670 = vmatpush.bf16.msra.mxu0 0
      %671 = vmatpush.bf16.msra.mxu0 %v662
      %672 = vmatmul.bf16.gmra.mxu0 %v659
      %v673 = vpop.f32.mrf.mxu0
      %v674 = vadd.f32 0.0, %v673
      %v675 = vpop.f32.mrf.mxu0
      %676 = vdwg.mxu0
      %v677 = vpack.c.bf16 %v674, %v674
      %s678 = scalar_lea.vmem %s25, 4
      %v679 = vld [vmem:[%s678] sm:$0xf]
      %v681 = vsel %vm456, %v677, 0
      %v684 = vsel %vm496, %v679, 0
      %686 = vmatpush.bf16.msra.mxu0 0
      %687 = vmatpush.bf16.msra.mxu0 0
      %688 = vmatpush.bf16.msra.mxu0 0
      %689 = vmatpush.bf16.msra.mxu0 0
      %690 = vmatpush.bf16.msra.mxu0 0
      %691 = vmatpush.bf16.msra.mxu0 0
      %692 = vmatpush.bf16.msra.mxu0 0
      %693 = vmatpush.bf16.msra.mxu0 %v684
      %694 = vmatmul.bf16.gmra.mxu0 %v681
      %v695 = vpop.f32.mrf.mxu0
      %v696 = vadd.f32 0.0, %v695
      %v697 = vpop.f32.mrf.mxu0
      %698 = vdwg.mxu0
      %v700 = vsel %vm456, %v513, 0
      %v703 = vsel %vm496, %v514, 0
      %705 = vmatpush.bf16.msra.mxu0 0
      %706 = vmatpush.bf16.msra.mxu0 0
      %707 = vmatpush.bf16.msra.mxu0 0
      %708 = vmatpush.bf16.msra.mxu0 0
      %709 = vmatpush.bf16.msra.mxu0 0
      %710 = vmatpush.bf16.msra.mxu0 0
      %711 = vmatpush.bf16.msra.mxu0 0
      %712 = vmatpush.bf16.msra.mxu0 %v703
      %713 = vmatmul.bf16.gmra.mxu0 %v700
      %v714 = vpop.f32.mrf.mxu0
      %v715 = vadd.f32 %v696, %v714
      %v716 = vpop.f32.mrf.mxu0
      %717 = vdwg.mxu0
      %s718 = scalar_lea.vmem %s19, 32
      %v719 = vld [vmem:[%s718] sm:$0xf]
      %v720 = vld [vmem:[%s718 + $0x4] sm:$0xf]
      %v721 = vld [vmem:[%s718 + $0x8] sm:$0xf]
      %v722 = vld [vmem:[%s718 + $0xc] sm:$0xf]
      %s723 = scalar_lea.vmem %s27, 2
      %v724 = vld [vmem:[%s723] sm:$0x1]
      %v726 = vperm.slane %v724, 0
      %v732 = vunpack.c.l.b16 %v719
      %v733 = vunpack.c.l.b16 %v720
      %v734 = vunpack.c.l.b16 %v721
      %v735 = vunpack.c.l.b16 %v722
      %v736 = vpack.c.b16 %v733, %v732
      %v737 = vpack.c.b16 %v735, %v734
      %740 = vmatpush.bf16.msra.mxu0 0
      %741 = vmatpush.bf16.msra.mxu0 0
      %742 = vmatpush.bf16.msra.mxu0 0
      %743 = vmatpush.bf16.msra.mxu0 0
      %744 = vmatpush.bf16.msra.mxu0 0
      %745 = vmatpush.bf16.msra.mxu0 0
      %746 = vmatpush.bf16.msra.mxu0 %v737
      %747 = vmatpush.bf16.msra.mxu0 %v736
      %748 = vmatmul.bf16.gmra.mxu0 %v373
      %v749 = vpop.f32.mrf.mxu0
      %v750 = vadd.f32 %v726, %v749
      %v751 = vpop.f32.mrf.mxu0
      %752 = vdwg.mxu0
      %s753 = scalar_lea.vmem %s21, 32
      %v754 = vld [vmem:[%s753] sm:$0xf]
      %v755 = vld [vmem:[%s753 + $0x4] sm:$0xf]
      %v756 = vld [vmem:[%s753 + $0x8] sm:$0xf]
      %v757 = vld [vmem:[%s753 + $0xc] sm:$0xf]
      %s758 = scalar_lea.vmem %s29, 2
      %v759 = vld [vmem:[%s758] sm:$0x1]
      %v761 = vperm.slane %v759, 0
      %v767 = vunpack.c.l.b16 %v754
      %v768 = vunpack.c.l.b16 %v755
      %v769 = vunpack.c.l.b16 %v756
      %v770 = vunpack.c.l.b16 %v757
      %v771 = vpack.c.b16 %v768, %v767
      %v772 = vpack.c.b16 %v770, %v769
      %775 = vmatpush.bf16.msra.mxu0 0
      %776 = vmatpush.bf16.msra.mxu0 0
      %777 = vmatpush.bf16.msra.mxu0 0
      %778 = vmatpush.bf16.msra.mxu0 0
      %779 = vmatpush.bf16.msra.mxu0 0
      %780 = vmatpush.bf16.msra.mxu0 0
      %781 = vmatpush.bf16.msra.mxu0 %v772
      %782 = vmatpush.bf16.msra.mxu0 %v771
      %783 = vmatmul.bf16.gmra.mxu0 %v373
      %v784 = vpop.f32.mrf.mxu0
      %v785 = vadd.f32 %v761, %v784
      %v786 = vpop.f32.mrf.mxu0
      %787 = vdwg.mxu0
      %s788 = scalar_lea.vmem %s23, 32
      %v789 = vld [vmem:[%s788] sm:$0xf]
      %v790 = vld [vmem:[%s788 + $0x4] sm:$0xf]
      %v791 = vld [vmem:[%s788 + $0x8] sm:$0xf]
      %v792 = vld [vmem:[%s788 + $0xc] sm:$0xf]
      %s793 = scalar_lea.vmem %s31, 2
      %v794 = vld [vmem:[%s793] sm:$0x1]
      %v796 = vperm.slane %v794, 0
      %v802 = vunpack.c.l.b16 %v789
      %v803 = vunpack.c.l.b16 %v790
      %v804 = vunpack.c.l.b16 %v791
      %v805 = vunpack.c.l.b16 %v792
      %v806 = vpack.c.b16 %v803, %v802
      %v807 = vpack.c.b16 %v805, %v804
      %810 = vmatpush.bf16.msra.mxu0 0
      %811 = vmatpush.bf16.msra.mxu0 0
      %812 = vmatpush.bf16.msra.mxu0 0
      %813 = vmatpush.bf16.msra.mxu0 0
      %814 = vmatpush.bf16.msra.mxu0 0
      %815 = vmatpush.bf16.msra.mxu0 0
      %816 = vmatpush.bf16.msra.mxu0 %v807
      %817 = vmatpush.bf16.msra.mxu0 %v806
      %818 = vmatmul.bf16.gmra.mxu0 %v373
      %v819 = vpop.f32.mrf.mxu0
      %v820 = vadd.f32 %v796, %v819
      %v821 = vpop.f32.mrf.mxu0
      %822 = vdwg.mxu0
      %v823 = vpack.c.bf16 %v750, %v750
      %v824 = vpack.c.bf16 %v785, %v785
      %v826 = vsel %vm456, %v823, 0
      %v829 = vsel %vm456, %v824, 0
      %831 = vmatpush.bf16.xpose.msra.mxu0 0
      %832 = vmatpush.bf16.xpose.msra.mxu0 0
      %833 = vmatpush.bf16.xpose.msra.mxu0 0
      %834 = vmatpush.bf16.xpose.msra.mxu0 0
      %835 = vmatpush.bf16.xpose.msra.mxu0 0
      %836 = vmatpush.bf16.xpose.msra.mxu0 0
      %837 = vmatpush.bf16.xpose.msra.mxu0 0
      %838 = vmatpush.bf16.xpose.msra.mxu0 %v829
      %839 = vmatmul.bf16.gmra.mxu0 %v826
      %v840 = vpop.f32.mrf.mxu0
      %v841 = vadd.f32 0.0, %v840
      %v842 = vpop.f32.mrf.mxu0
      %843 = vdwg.mxu0
      %v844 = vmul.f32 %v841, 0.35355338
      %v845 = vmul.f32 %v348, 0.015625
      %v846 = vadd.f32 %v343, %v845
      %v847 = vadd.f32 %v844, %v846
      %v848 = vsel %vm456, %v847, -inf
      %849 = vmax.xlane.f32.xlu0 %v848
      %v850 = vpop.xlane.xlu0 %849
      %v851 = vsub.f32 %v847, %v850
      %v852 = vmul.f32 %v851, 1.442695
      %v853 = vpow.pop %v852
      %v854 = vsel %vm456, %v853, 0.0
      %855 = vadd.xlane.f32.xlu0 %v854
      %v856 = vpop.xlane.xlu0 %855
      %v857 = vrcp.pop %v856
      %v858 = vmul.f32 %v853, %v857
      %v859 = vpack.c.bf16 %v858, %v858
      %v860 = vpack.c.bf16 %v820, %v820
      %v862 = vsel %vm456, %v859, 0
      %v865 = vsel %vm496, %v860, 0
      %867 = vmatpush.bf16.msra.mxu0 0
      %868 = vmatpush.bf16.msra.mxu0 0
      %869 = vmatpush.bf16.msra.mxu0 0
      %870 = vmatpush.bf16.msra.mxu0 0
      %871 = vmatpush.bf16.msra.mxu0 0
      %872 = vmatpush.bf16.msra.mxu0 0
      %873 = vmatpush.bf16.msra.mxu0 0
      %874 = vmatpush.bf16.msra.mxu0 %v865
      %875 = vmatmul.bf16.gmra.mxu0 %v862
      %v876 = vpop.f32.mrf.mxu0
      %v877 = vadd.f32 0.0, %v876
      %v878 = vpop.f32.mrf.mxu0
      %879 = vdwg.mxu0
      %v880 = vpack.c.bf16 %v877, %v877
      %s881 = scalar_lea.vmem %s25, 8
      %v882 = vld [vmem:[%s881] sm:$0xf]
      %v884 = vsel %vm456, %v880, 0
      %v887 = vsel %vm496, %v882, 0
      %889 = vmatpush.bf16.msra.mxu0 0
      %890 = vmatpush.bf16.msra.mxu0 0
      %891 = vmatpush.bf16.msra.mxu0 0
      %892 = vmatpush.bf16.msra.mxu0 0
      %893 = vmatpush.bf16.msra.mxu0 0
      %894 = vmatpush.bf16.msra.mxu0 0
      %895 = vmatpush.bf16.msra.mxu0 0
      %896 = vmatpush.bf16.msra.mxu0 %v887
      %897 = vmatmul.bf16.gmra.mxu0 %v884
      %v898 = vpop.f32.mrf.mxu0
      %v899 = vadd.f32 0.0, %v898
      %v900 = vpop.f32.mrf.mxu0
      %901 = vdwg.mxu0
      %v902 = vadd.f32 %v715, %v899
      %s903 = scalar_lea.vmem %s19, 48
      %v904 = vld [vmem:[%s903] sm:$0xf]
      %v905 = vld [vmem:[%s903 + $0x4] sm:$0xf]
      %v906 = vld [vmem:[%s903 + $0x8] sm:$0xf]
      %v907 = vld [vmem:[%s903 + $0xc] sm:$0xf]
      %s908 = scalar_lea.vmem %s27, 3
      %v909 = vld [vmem:[%s908] sm:$0x1]
      %v911 = vperm.slane %v909, 0
      %v917 = vunpack.c.l.b16 %v904
      %v918 = vunpack.c.l.b16 %v905
      %v919 = vunpack.c.l.b16 %v906
      %v920 = vunpack.c.l.b16 %v907
      %v921 = vpack.c.b16 %v918, %v917
      %v922 = vpack.c.b16 %v920, %v919
      %925 = vmatpush.bf16.msra.mxu0 0
      %926 = vmatpush.bf16.msra.mxu0 0
      %927 = vmatpush.bf16.msra.mxu0 0
      %928 = vmatpush.bf16.msra.mxu0 0
      %929 = vmatpush.bf16.msra.mxu0 0
      %930 = vmatpush.bf16.msra.mxu0 0
      %931 = vmatpush.bf16.msra.mxu0 %v922
      %932 = vmatpush.bf16.msra.mxu0 %v921
      %933 = vmatmul.bf16.gmra.mxu0 %v373
      %v934 = vpop.f32.mrf.mxu0
      %v935 = vadd.f32 %v911, %v934
      %v936 = vpop.f32.mrf.mxu0
      %937 = vdwg.mxu0
      %s938 = scalar_lea.vmem %s21, 48
      %v939 = vld [vmem:[%s938] sm:$0xf]
      %v940 = vld [vmem:[%s938 + $0x4] sm:$0xf]
      %v941 = vld [vmem:[%s938 + $0x8] sm:$0xf]
      %v942 = vld [vmem:[%s938 + $0xc] sm:$0xf]
      %s943 = scalar_lea.vmem %s29, 3
      %v944 = vld [vmem:[%s943] sm:$0x1]
      %v946 = vperm.slane %v944, 0
      %v952 = vunpack.c.l.b16 %v939
      %v953 = vunpack.c.l.b16 %v940
      %v954 = vunpack.c.l.b16 %v941
      %v955 = vunpack.c.l.b16 %v942
      %v956 = vpack.c.b16 %v953, %v952
      %v957 = vpack.c.b16 %v955, %v954
      %960 = vmatpush.bf16.msra.mxu0 0
      %961 = vmatpush.bf16.msra.mxu0 0
      %962 = vmatpush.bf16.msra.mxu0 0
      %963 = vmatpush.bf16.msra.mxu0 0
      %964 = vmatpush.bf16.msra.mxu0 0
      %965 = vmatpush.bf16.msra.mxu0 0
      %966 = vmatpush.bf16.msra.mxu0 %v957
      %967 = vmatpush.bf16.msra.mxu0 %v956
      %968 = vmatmul.bf16.gmra.mxu0 %v373
      %v969 = vpop.f32.mrf.mxu0
      %v970 = vadd.f32 %v946, %v969
      %v971 = vpop.f32.mrf.mxu0
      %972 = vdwg.mxu0
      %s973 = scalar_lea.vmem %s23, 48
      %v974 = vld [vmem:[%s973] sm:$0xf]
      %v975 = vld [vmem:[%s973 + $0x4] sm:$0xf]
      %v976 = vld [vmem:[%s973 + $0x8] sm:$0xf]
      %v977 = vld [vmem:[%s973 + $0xc] sm:$0xf]
      %s978 = scalar_lea.vmem %s31, 3
      %v979 = vld [vmem:[%s978] sm:$0x1]
      %v981 = vperm.slane %v979, 0
      %v987 = vunpack.c.l.b16 %v974
      %v988 = vunpack.c.l.b16 %v975
      %v989 = vunpack.c.l.b16 %v976
      %v990 = vunpack.c.l.b16 %v977
      %v991 = vpack.c.b16 %v988, %v987
      %v992 = vpack.c.b16 %v990, %v989
      %995 = vmatpush.bf16.msra.mxu0 0
      %996 = vmatpush.bf16.msra.mxu0 0
      %997 = vmatpush.bf16.msra.mxu0 0
      %998 = vmatpush.bf16.msra.mxu0 0
      %999 = vmatpush.bf16.msra.mxu0 0
      %1000 = vmatpush.bf16.msra.mxu0 0
      %1001 = vmatpush.bf16.msra.mxu0 %v992
      %1002 = vmatpush.bf16.msra.mxu0 %v991
      %1003 = vmatmul.bf16.gmra.mxu0 %v373
      %v1004 = vpop.f32.mrf.mxu0
      %v1005 = vadd.f32 %v981, %v1004
      %v1006 = vpop.f32.mrf.mxu0
      %1007 = vdwg.mxu0
      %v1008 = vpack.c.bf16 %v935, %v935
      %v1009 = vpack.c.bf16 %v970, %v970
      %v1011 = vsel %vm456, %v1008, 0
      %v1014 = vsel %vm456, %v1009, 0
      %1016 = vmatpush.bf16.xpose.msra.mxu0 0
      %1017 = vmatpush.bf16.xpose.msra.mxu0 0
      %1018 = vmatpush.bf16.xpose.msra.mxu0 0
      %1019 = vmatpush.bf16.xpose.msra.mxu0 0
      %1020 = vmatpush.bf16.xpose.msra.mxu0 0
      %1021 = vmatpush.bf16.xpose.msra.mxu0 0
      %1022 = vmatpush.bf16.xpose.msra.mxu0 0
      %1023 = vmatpush.bf16.xpose.msra.mxu0 %v1014
      %1024 = vmatmul.bf16.gmra.mxu0 %v1011
      %v1025 = vpop.f32.mrf.mxu0
      %v1026 = vadd.f32 0.0, %v1025
      %v1027 = vpop.f32.mrf.mxu0
      %1028 = vdwg.mxu0
      %v1029 = vmul.f32 %v1026, 0.35355338
      %v1030 = vmul.f32 %v348, 0.00390625
      %v1031 = vadd.f32 %v343, %v1030
      %v1032 = vadd.f32 %v1029, %v1031
      %v1033 = vsel %vm456, %v1032, -inf
      %1034 = vmax.xlane.f32.xlu0 %v1033
      %v1035 = vpop.xlane.xlu0 %1034
      %v1036 = vsub.f32 %v1032, %v1035
      %v1037 = vmul.f32 %v1036, 1.442695
      %v1038 = vpow.pop %v1037
      %v1039 = vsel %vm456, %v1038, 0.0
      %1040 = vadd.xlane.f32.xlu0 %v1039
      %v1041 = vpop.xlane.xlu0 %1040
      %v1042 = vrcp.pop %v1041
      %v1043 = vmul.f32 %v1038, %v1042
      %v1044 = vpack.c.bf16 %v1043, %v1043
      %v1045 = vpack.c.bf16 %v1005, %v1005
      %v1047 = vsel %vm456, %v1044, 0
      %v1050 = vsel %vm496, %v1045, 0
      %1052 = vmatpush.bf16.msra.mxu0 0
      %1053 = vmatpush.bf16.msra.mxu0 0
      %1054 = vmatpush.bf16.msra.mxu0 0
      %1055 = vmatpush.bf16.msra.mxu0 0
      %1056 = vmatpush.bf16.msra.mxu0 0
      %1057 = vmatpush.bf16.msra.mxu0 0
      %1058 = vmatpush.bf16.msra.mxu0 0
      %1059 = vmatpush.bf16.msra.mxu0 %v1050
      %1060 = vmatmul.bf16.gmra.mxu0 %v1047
      %v1061 = vpop.f32.mrf.mxu0
      %v1062 = vadd.f32 0.0, %v1061
      %v1063 = vpop.f32.mrf.mxu0
      %1064 = vdwg.mxu0
      %v1065 = vpack.c.bf16 %v1062, %v1062
      %s1066 = scalar_lea.vmem %s25, 12
      %v1067 = vld [vmem:[%s1066] sm:$0xf]
      %v1069 = vsel %vm456, %v1065, 0
      %v1072 = vsel %vm496, %v1067, 0
      %1074 = vmatpush.bf16.msra.mxu0 0
      %1075 = vmatpush.bf16.msra.mxu0 0
      %1076 = vmatpush.bf16.msra.mxu0 0
      %1077 = vmatpush.bf16.msra.mxu0 0
      %1078 = vmatpush.bf16.msra.mxu0 0
      %1079 = vmatpush.bf16.msra.mxu0 0
      %1080 = vmatpush.bf16.msra.mxu0 0
      %1081 = vmatpush.bf16.msra.mxu0 %v1072
      %1082 = vmatmul.bf16.gmra.mxu0 %v1069
      %v1083 = vpop.f32.mrf.mxu0
      %v1084 = vadd.f32 0.0, %v1083
      %v1085 = vpop.f32.mrf.mxu0
      %1086 = vdwg.mxu0
      %v1087 = vadd.f32 %v902, %v1084
      %v1088 = vld [vmem:[%s33] sm:$0x1]
      %v1090 = vperm.slane %v1088, 0
      %v1092 = vadd.f32 %v1087, %v1090
      %v1093 = vadd.f32 %v279, %v1092
      %v1094 = vsel %vm238, %v1093, 0.0
      %1095 = vadd.xlane.f32.xlu0 %v1094
      %v1096 = vpop.xlane.xlu0 %1095
      %v1097 = vrcp.pop 32.0
      %v1098 = vmul.f32 32.0, %v1097
      %v1099 = vsub.f32 1.0, %v1098
      %v1100 = vmul.f32 %v1097, %v1099
      %v1101 = vadd.f32 %v1097, %v1100
      %vm1102 = vweird.f32 %v1097
      %v1103 = vsel %vm1102, %v1097, %v1101
      %v1104 = vmul.f32 %v1096, %v1103
      %v1105 = vsub.f32 %v1093, %v1104
      %v1106 = vmul.f32 %v1105, %v1105
      %v1107 = vsel %vm238, %v1106, 0.0
      %1108 = vadd.xlane.f32.xlu0 %v1107
      %v1109 = vpop.xlane.xlu0 %1108
      %v1110 = vmul.f32 %v1109, %v1103
      %v1111 = vadd.f32 %v1110, 1e-05
      %v1112 = vrsqrt.pop %v1111
      %v1113 = vmul.f32 %v1112, %v1111
      %v1114 = vmul.f32 %v1113, %v1112
      %v1115 = vmul.f32 0.5, %v1114
      %v1116 = vsub.f32 1.5, %v1115
      %v1117 = vmul.f32 %v1112, %v1116
      %vm1118 = vweird.f32 %v1111
      %vm1119 = vweird.f32 %v1112
      %vm1120 = vmor %vm1118, %vm1119
      %v1121 = vsel %vm1120, %v1112, %v1117
      %v1122 = vmul.f32 %v1105, %v1121
      %v1123 = vld [vmem:[%s59] sm:$0x1]
      %v1125 = vperm.slane %v1123, 0
      %v1127 = vmul.f32 %v1122, %v1125
      %v1128 = vld [vmem:[%s61] sm:$0x1]
      %v1130 = vperm.slane %v1128, 0
      %v1132 = vadd.f32 %v1127, %v1130
      %v1133 = vpack.c.bf16 %v1132, %v1132
      %v1134 = vpack.c.bf16 %v333, %v333
      %v1135 = vld [vmem:[%s35] sm:$0xf]
      %v1136 = vld [vmem:[%s35 + $0x4] sm:$0xf]
      %v1137 = vld [vmem:[%s35 + $0x8] sm:$0xf]
      %v1138 = vld [vmem:[%s35 + $0xc] sm:$0xf]
      %v1139 = vld [vmem:[%s43] sm:$0x1]
      %v1141 = vperm.slane %v1139, 0
      %v1147 = vunpack.c.l.b16 %v1135
      %v1148 = vunpack.c.l.b16 %v1136
      %v1149 = vunpack.c.l.b16 %v1137
      %v1150 = vunpack.c.l.b16 %v1138
      %v1151 = vpack.c.b16 %v1148, %v1147
      %v1152 = vpack.c.b16 %v1150, %v1149
      %v1156 = vsel %vm238, %v1133, 0
      %1158 = vmatpush.bf16.msra.mxu0 0
      %1159 = vmatpush.bf16.msra.mxu0 0
      %1160 = vmatpush.bf16.msra.mxu0 0
      %1161 = vmatpush.bf16.msra.mxu0 0
      %1162 = vmatpush.bf16.msra.mxu0 0
      %1163 = vmatpush.bf16.msra.mxu0 0
      %1164 = vmatpush.bf16.msra.mxu0 %v1152
      %1165 = vmatpush.bf16.msra.mxu0 %v1151
      %1166 = vmatmul.bf16.gmra.mxu0 %v1156
      %v1167 = vpop.f32.mrf.mxu0
      %v1168 = vadd.f32 %v1141, %v1167
      %v1169 = vpop.f32.mrf.mxu0
      %1170 = vdwg.mxu0
      %v1171 = vld [vmem:[%s37] sm:$0xf]
      %v1172 = vld [vmem:[%s37 + $0x4] sm:$0xf]
      %v1173 = vld [vmem:[%s37 + $0x8] sm:$0xf]
      %v1174 = vld [vmem:[%s37 + $0xc] sm:$0xf]
      %v1175 = vld [vmem:[%s45] sm:$0x1]
      %v1177 = vperm.slane %v1175, 0
      %v1183 = vunpack.c.l.b16 %v1171
      %v1184 = vunpack.c.l.b16 %v1172
      %v1185 = vunpack.c.l.b16 %v1173
      %v1186 = vunpack.c.l.b16 %v1174
      %v1187 = vpack.c.b16 %v1184, %v1183
      %v1188 = vpack.c.b16 %v1186, %v1185
      %v1192 = vsel %vm238, %v1134, 0
      %1194 = vmatpush.bf16.msra.mxu0 0
      %1195 = vmatpush.bf16.msra.mxu0 0
      %1196 = vmatpush.bf16.msra.mxu0 0
      %1197 = vmatpush.bf16.msra.mxu0 0
      %1198 = vmatpush.bf16.msra.mxu0 0
      %1199 = vmatpush.bf16.msra.mxu0 0
      %1200 = vmatpush.bf16.msra.mxu0 %v1188
      %1201 = vmatpush.bf16.msra.mxu0 %v1187
      %1202 = vmatmul.bf16.gmra.mxu0 %v1192
      %v1203 = vpop.f32.mrf.mxu0
      %v1204 = vadd.f32 %v1177, %v1203
      %v1205 = vpop.f32.mrf.mxu0
      %1206 = vdwg.mxu0
      %v1207 = vld [vmem:[%s39] sm:$0xf]
      %v1208 = vld [vmem:[%s39 + $0x4] sm:$0xf]
      %v1209 = vld [vmem:[%s39 + $0x8] sm:$0xf]
      %v1210 = vld [vmem:[%s39 + $0xc] sm:$0xf]
      %v1211 = vld [vmem:[%s47] sm:$0x1]
      %v1213 = vperm.slane %v1211, 0
      %v1219 = vunpack.c.l.b16 %v1207
      %v1220 = vunpack.c.l.b16 %v1208
      %v1221 = vunpack.c.l.b16 %v1209
      %v1222 = vunpack.c.l.b16 %v1210
      %v1223 = vpack.c.b16 %v1220, %v1219
      %v1224 = vpack.c.b16 %v1222, %v1221
      %1227 = vmatpush.bf16.msra.mxu0 0
      %1228 = vmatpush.bf16.msra.mxu0 0
      %1229 = vmatpush.bf16.msra.mxu0 0
      %1230 = vmatpush.bf16.msra.mxu0 0
      %1231 = vmatpush.bf16.msra.mxu0 0
      %1232 = vmatpush.bf16.msra.mxu0 0
      %1233 = vmatpush.bf16.msra.mxu0 %v1224
      %1234 = vmatpush.bf16.msra.mxu0 %v1223
      %1235 = vmatmul.bf16.gmra.mxu0 %v1192
      %v1236 = vpop.f32.mrf.mxu0
      %v1237 = vadd.f32 %v1213, %v1236
      %v1238 = vpop.f32.mrf.mxu0
      %1239 = vdwg.mxu0
      %v1240 = vpack.c.bf16 %v1168, %v1168
      %v1241 = vpack.c.bf16 %v1204, %v1204
      %v1243 = vsel %vm456, %v1240, 0
      %v1246 = vsel %vm456, %v1241, 0
      %1248 = vmatpush.bf16.xpose.msra.mxu0 0
      %1249 = vmatpush.bf16.xpose.msra.mxu0 0
      %1250 = vmatpush.bf16.xpose.msra.mxu0 0
      %1251 = vmatpush.bf16.xpose.msra.mxu0 0
      %1252 = vmatpush.bf16.xpose.msra.mxu0 0
      %1253 = vmatpush.bf16.xpose.msra.mxu0 0
      %1254 = vmatpush.bf16.xpose.msra.mxu0 0
      %1255 = vmatpush.bf16.xpose.msra.mxu0 %v1246
      %1256 = vmatmul.bf16.gmra.mxu0 %v1243
      %v1257 = vpop.f32.mrf.mxu0
      %v1258 = vadd.f32 0.0, %v1257
      %v1259 = vpop.f32.mrf.mxu0
      %1260 = vdwg.mxu0
      %v1261 = vmul.f32 %v1258, 0.35355338
      %v1262 = vadd.f32 %v1261, %v350
      %v1263 = vsel %vm456, %v1262, -inf
      %1264 = vmax.xlane.f32.xlu0 %v1263
      %v1265 = vpop.xlane.xlu0 %1264
      %v1266 = vsub.f32 %v1262, %v1265
      %v1267 = vmul.f32 %v1266, 1.442695
      %v1268 = vpow.pop %v1267
      %v1269 = vsel %vm456, %v1268, 0.0
      %1270 = vadd.xlane.f32.xlu0 %v1269
      %v1271 = vpop.xlane.xlu0 %1270
      %v1272 = vrcp.pop %v1271
      %v1273 = vmul.f32 %v1268, %v1272
      %v1274 = vpack.c.bf16 %v1273, %v1273
      %v1275 = vpack.c.bf16 %v1237, %v1237
      %v1277 = vsel %vm456, %v1274, 0
      %v1280 = vsel %vm496, %v1275, 0
      %1282 = vmatpush.bf16.msra.mxu0 0
      %1283 = vmatpush.bf16.msra.mxu0 0
      %1284 = vmatpush.bf16.msra.mxu0 0
      %1285 = vmatpush.bf16.msra.mxu0 0
      %1286 = vmatpush.bf16.msra.mxu0 0
      %1287 = vmatpush.bf16.msra.mxu0 0
      %1288 = vmatpush.bf16.msra.mxu0 0
      %1289 = vmatpush.bf16.msra.mxu0 %v1280
      %1290 = vmatmul.bf16.gmra.mxu0 %v1277
      %v1291 = vpop.f32.mrf.mxu0
      %v1292 = vadd.f32 0.0, %v1291
      %v1293 = vpop.f32.mrf.mxu0
      %1294 = vdwg.mxu0
      %v1295 = vpack.c.bf16 %v1292, %v1292
      %v1296 = vld [vmem:[%s41] sm:$0xf]
      %s1297 = scalar_lea.vmem %s35, 16
      %v1298 = vld [vmem:[%s1297] sm:$0xf]
      %v1299 = vld [vmem:[%s1297 + $0x4] sm:$0xf]
      %v1300 = vld [vmem:[%s1297 + $0x8] sm:$0xf]
      %v1301 = vld [vmem:[%s1297 + $0xc] sm:$0xf]
      %s1302 = scalar_lea.vmem %s43, 1
      %v1303 = vld [vmem:[%s1302] sm:$0x1]
      %v1305 = vperm.slane %v1303, 0
      %v1311 = vunpack.c.l.b16 %v1298
      %v1312 = vunpack.c.l.b16 %v1299
      %v1313 = vunpack.c.l.b16 %v1300
      %v1314 = vunpack.c.l.b16 %v1301
      %v1315 = vpack.c.b16 %v1312, %v1311
      %v1316 = vpack.c.b16 %v1314, %v1313
      %1319 = vmatpush.bf16.msra.mxu0 0
      %1320 = vmatpush.bf16.msra.mxu0 0
      %1321 = vmatpush.bf16.msra.mxu0 0
      %1322 = vmatpush.bf16.msra.mxu0 0
      %1323 = vmatpush.bf16.msra.mxu0 0
      %1324 = vmatpush.bf16.msra.mxu0 0
      %1325 = vmatpush.bf16.msra.mxu0 %v1316
      %1326 = vmatpush.bf16.msra.mxu0 %v1315
      %1327 = vmatmul.bf16.gmra.mxu0 %v1156
      %v1328 = vpop.f32.mrf.mxu0
      %v1329 = vadd.f32 %v1305, %v1328
      %v1330 = vpop.f32.mrf.mxu0
      %1331 = vdwg.mxu0
      %s1332 = scalar_lea.vmem %s37, 16
      %v1333 = vld [vmem:[%s1332] sm:$0xf]
      %v1334 = vld [vmem:[%s1332 + $0x4] sm:$0xf]
      %v1335 = vld [vmem:[%s1332 + $0x8] sm:$0xf]
      %v1336 = vld [vmem:[%s1332 + $0xc] sm:$0xf]
      %s1337 = scalar_lea.vmem %s45, 1
      %v1338 = vld [vmem:[%s1337] sm:$0x1]
      %v1340 = vperm.slane %v1338, 0
      %v1346 = vunpack.c.l.b16 %v1333
      %v1347 = vunpack.c.l.b16 %v1334
      %v1348 = vunpack.c.l.b16 %v1335
      %v1349 = vunpack.c.l.b16 %v1336
      %v1350 = vpack.c.b16 %v1347, %v1346
      %v1351 = vpack.c.b16 %v1349, %v1348
      %1354 = vmatpush.bf16.msra.mxu0 0
      %1355 = vmatpush.bf16.msra.mxu0 0
      %1356 = vmatpush.bf16.msra.mxu0 0
      %1357 = vmatpush.bf16.msra.mxu0 0
      %1358 = vmatpush.bf16.msra.mxu0 0
      %1359 = vmatpush.bf16.msra.mxu0 0
      %1360 = vmatpush.bf16.msra.mxu0 %v1351
      %1361 = vmatpush.bf16.msra.mxu0 %v1350
      %1362 = vmatmul.bf16.gmra.mxu0 %v1192
      %v1363 = vpop.f32.mrf.mxu0
      %v1364 = vadd.f32 %v1340, %v1363
      %v1365 = vpop.f32.mrf.mxu0
      %1366 = vdwg.mxu0
      %s1367 = scalar_lea.vmem %s39, 16
      %v1368 = vld [vmem:[%s1367] sm:$0xf]
      %v1369 = vld [vmem:[%s1367 + $0x4] sm:$0xf]
      %v1370 = vld [vmem:[%s1367 + $0x8] sm:$0xf]
      %v1371 = vld [vmem:[%s1367 + $0xc] sm:$0xf]
      %s1372 = scalar_lea.vmem %s47, 1
      %v1373 = vld [vmem:[%s1372] sm:$0x1]
      %v1375 = vperm.slane %v1373, 0
      %v1381 = vunpack.c.l.b16 %v1368
      %v1382 = vunpack.c.l.b16 %v1369
      %v1383 = vunpack.c.l.b16 %v1370
      %v1384 = vunpack.c.l.b16 %v1371
      %v1385 = vpack.c.b16 %v1382, %v1381
      %v1386 = vpack.c.b16 %v1384, %v1383
      %1389 = vmatpush.bf16.msra.mxu0 0
      %1390 = vmatpush.bf16.msra.mxu0 0
      %1391 = vmatpush.bf16.msra.mxu0 0
      %1392 = vmatpush.bf16.msra.mxu0 0
      %1393 = vmatpush.bf16.msra.mxu0 0
      %1394 = vmatpush.bf16.msra.mxu0 0
      %1395 = vmatpush.bf16.msra.mxu0 %v1386
      %1396 = vmatpush.bf16.msra.mxu0 %v1385
      %1397 = vmatmul.bf16.gmra.mxu0 %v1192
      %v1398 = vpop.f32.mrf.mxu0
      %v1399 = vadd.f32 %v1375, %v1398
      %v1400 = vpop.f32.mrf.mxu0
      %1401 = vdwg.mxu0
      %v1402 = vpack.c.bf16 %v1329, %v1329
      %v1403 = vpack.c.bf16 %v1364, %v1364
      %v1405 = vsel %vm456, %v1402, 0
      %v1408 = vsel %vm456, %v1403, 0
      %1410 = vmatpush.bf16.xpose.msra.mxu0 0
      %1411 = vmatpush.bf16.xpose.msra.mxu0 0
      %1412 = vmatpush.bf16.xpose.msra.mxu0 0
      %1413 = vmatpush.bf16.xpose.msra.mxu0 0
      %1414 = vmatpush.bf16.xpose.msra.mxu0 0
      %1415 = vmatpush.bf16.xpose.msra.mxu0 0
      %1416 = vmatpush.bf16.xpose.msra.mxu0 0
      %1417 = vmatpush.bf16.xpose.msra.mxu0 %v1408
      %1418 = vmatmul.bf16.gmra.mxu0 %v1405
      %v1419 = vpop.f32.mrf.mxu0
      %v1420 = vadd.f32 0.0, %v1419
      %v1421 = vpop.f32.mrf.mxu0
      %1422 = vdwg.mxu0
      %v1423 = vmul.f32 %v1420, 0.35355338
      %v1424 = vadd.f32 %v1423, %v350
      %v1425 = vsel %vm456, %v1424, -inf
      %1426 = vmax.xlane.f32.xlu0 %v1425
      %v1427 = vpop.xlane.xlu0 %1426
      %v1428 = vsub.f32 %v1424, %v1427
      %v1429 = vmul.f32 %v1428, 1.442695
      %v1430 = vpow.pop %v1429
      %v1431 = vsel %vm456, %v1430, 0.0
      %1432 = vadd.xlane.f32.xlu0 %v1431
      %v1433 = vpop.xlane.xlu0 %1432
      %v1434 = vrcp.pop %v1433
      %v1435 = vmul.f32 %v1430, %v1434
      %v1436 = vpack.c.bf16 %v1435, %v1435
      %v1437 = vpack.c.bf16 %v1399, %v1399
      %v1439 = vsel %vm456, %v1436, 0
      %v1442 = vsel %vm496, %v1437, 0
      %1444 = vmatpush.bf16.msra.mxu0 0
      %1445 = vmatpush.bf16.msra.mxu0 0
      %1446 = vmatpush.bf16.msra.mxu0 0
      %1447 = vmatpush.bf16.msra.mxu0 0
      %1448 = vmatpush.bf16.msra.mxu0 0
      %1449 = vmatpush.bf16.msra.mxu0 0
      %1450 = vmatpush.bf16.msra.mxu0 0
      %1451 = vmatpush.bf16.msra.mxu0 %v1442
      %1452 = vmatmul.bf16.gmra.mxu0 %v1439
      %v1453 = vpop.f32.mrf.mxu0
      %v1454 = vadd.f32 0.0, %v1453
      %v1455 = vpop.f32.mrf.mxu0
      %1456 = vdwg.mxu0
      %v1457 = vpack.c.bf16 %v1454, %v1454
      %s1458 = scalar_lea.vmem %s41, 4
      %v1459 = vld [vmem:[%s1458] sm:$0xf]
      %v1461 = vsel %vm456, %v1457, 0
      %v1464 = vsel %vm496, %v1459, 0
      %1466 = vmatpush.bf16.msra.mxu0 0
      %1467 = vmatpush.bf16.msra.mxu0 0
      %1468 = vmatpush.bf16.msra.mxu0 0
      %1469 = vmatpush.bf16.msra.mxu0 0
      %1470 = vmatpush.bf16.msra.mxu0 0
      %1471 = vmatpush.bf16.msra.mxu0 0
      %1472 = vmatpush.bf16.msra.mxu0 0
      %1473 = vmatpush.bf16.msra.mxu0 %v1464
      %1474 = vmatmul.bf16.gmra.mxu0 %v1461
      %v1475 = vpop.f32.mrf.mxu0
      %v1476 = vadd.f32 0.0, %v1475
      %v1477 = vpop.f32.mrf.mxu0
      %1478 = vdwg.mxu0
      %v1480 = vsel %vm456, %v1295, 0
      %v1483 = vsel %vm496, %v1296, 0
      %1485 = vmatpush.bf16.msra.mxu0 0
      %1486 = vmatpush.bf16.msra.mxu0 0
      %1487 = vmatpush.bf16.msra.mxu0 0
      %1488 = vmatpush.bf16.msra.mxu0 0
      %1489 = vmatpush.bf16.msra.mxu0 0
      %1490 = vmatpush.bf16.msra.mxu0 0
      %1491 = vmatpush.bf16.msra.mxu0 0
      %1492 = vmatpush.bf16.msra.mxu0 %v1483
      %1493 = vmatmul.bf16.gmra.mxu0 %v1480
      %v1494 = vpop.f32.mrf.mxu0
      %v1495 = vadd.f32 %v1476, %v1494
      %v1496 = vpop.f32.mrf.mxu0
      %1497 = vdwg.mxu0
      %s1498 = scalar_lea.vmem %s35, 32
      %v1499 = vld [vmem:[%s1498] sm:$0xf]
      %v1500 = vld [vmem:[%s1498 + $0x4] sm:$0xf]
      %v1501 = vld [vmem:[%s1498 + $0x8] sm:$0xf]
      %v1502 = vld [vmem:[%s1498 + $0xc] sm:$0xf]
      %s1503 = scalar_lea.vmem %s43, 2
      %v1504 = vld [vmem:[%s1503] sm:$0x1]
      %v1506 = vperm.slane %v1504, 0
      %v1512 = vunpack.c.l.b16 %v1499
      %v1513 = vunpack.c.l.b16 %v1500
      %v1514 = vunpack.c.l.b16 %v1501
      %v1515 = vunpack.c.l.b16 %v1502
      %v1516 = vpack.c.b16 %v1513, %v1512
      %v1517 = vpack.c.b16 %v1515, %v1514
      %1520 = vmatpush.bf16.msra.mxu0 0
      %1521 = vmatpush.bf16.msra.mxu0 0
      %1522 = vmatpush.bf16.msra.mxu0 0
      %1523 = vmatpush.bf16.msra.mxu0 0
      %1524 = vmatpush.bf16.msra.mxu0 0
      %1525 = vmatpush.bf16.msra.mxu0 0
      %1526 = vmatpush.bf16.msra.mxu0 %v1517
      %1527 = vmatpush.bf16.msra.mxu0 %v1516
      %1528 = vmatmul.bf16.gmra.mxu0 %v1156
      %v1529 = vpop.f32.mrf.mxu0
      %v1530 = vadd.f32 %v1506, %v1529
      %v1531 = vpop.f32.mrf.mxu0
      %1532 = vdwg.mxu0
      %s1533 = scalar_lea.vmem %s37, 32
      %v1534 = vld [vmem:[%s1533] sm:$0xf]
      %v1535 = vld [vmem:[%s1533 + $0x4] sm:$0xf]
      %v1536 = vld [vmem:[%s1533 + $0x8] sm:$0xf]
      %v1537 = vld [vmem:[%s1533 + $0xc] sm:$0xf]
      %s1538 = scalar_lea.vmem %s45, 2
      %v1539 = vld [vmem:[%s1538] sm:$0x1]
      %v1541 = vperm.slane %v1539, 0
      %v1547 = vunpack.c.l.b16 %v1534
      %v1548 = vunpack.c.l.b16 %v1535
      %v1549 = vunpack.c.l.b16 %v1536
      %v1550 = vunpack.c.l.b16 %v1537
      %v1551 = vpack.c.b16 %v1548, %v1547
      %v1552 = vpack.c.b16 %v1550, %v1549
      %1555 = vmatpush.bf16.msra.mxu0 0
      %1556 = vmatpush.bf16.msra.mxu0 0
      %1557 = vmatpush.bf16.msra.mxu0 0
      %1558 = vmatpush.bf16.msra.mxu0 0
      %1559 = vmatpush.bf16.msra.mxu0 0
      %1560 = vmatpush.bf16.msra.mxu0 0
      %1561 = vmatpush.bf16.msra.mxu0 %v1552
      %1562 = vmatpush.bf16.msra.mxu0 %v1551
      %1563 = vmatmul.bf16.gmra.mxu0 %v1192
      %v1564 = vpop.f32.mrf.mxu0
      %v1565 = vadd.f32 %v1541, %v1564
      %v1566 = vpop.f32.mrf.mxu0
      %1567 = vdwg.mxu0
      %s1568 = scalar_lea.vmem %s39, 32
      %v1569 = vld [vmem:[%s1568] sm:$0xf]
      %v1570 = vld [vmem:[%s1568 + $0x4] sm:$0xf]
      %v1571 = vld [vmem:[%s1568 + $0x8] sm:$0xf]
      %v1572 = vld [vmem:[%s1568 + $0xc] sm:$0xf]
      %s1573 = scalar_lea.vmem %s47, 2
      %v1574 = vld [vmem:[%s1573] sm:$0x1]
      %v1576 = vperm.slane %v1574, 0
      %v1582 = vunpack.c.l.b16 %v1569
      %v1583 = vunpack.c.l.b16 %v1570
      %v1584 = vunpack.c.l.b16 %v1571
      %v1585 = vunpack.c.l.b16 %v1572
      %v1586 = vpack.c.b16 %v1583, %v1582
      %v1587 = vpack.c.b16 %v1585, %v1584
      %1590 = vmatpush.bf16.msra.mxu0 0
      %1591 = vmatpush.bf16.msra.mxu0 0
      %1592 = vmatpush.bf16.msra.mxu0 0
      %1593 = vmatpush.bf16.msra.mxu0 0
      %1594 = vmatpush.bf16.msra.mxu0 0
      %1595 = vmatpush.bf16.msra.mxu0 0
      %1596 = vmatpush.bf16.msra.mxu0 %v1587
      %1597 = vmatpush.bf16.msra.mxu0 %v1586
      %1598 = vmatmul.bf16.gmra.mxu0 %v1192
      %v1599 = vpop.f32.mrf.mxu0
      %v1600 = vadd.f32 %v1576, %v1599
      %v1601 = vpop.f32.mrf.mxu0
      %1602 = vdwg.mxu0
      %v1603 = vpack.c.bf16 %v1530, %v1530
      %v1604 = vpack.c.bf16 %v1565, %v1565
      %v1606 = vsel %vm456, %v1603, 0
      %v1609 = vsel %vm456, %v1604, 0
      %1611 = vmatpush.bf16.xpose.msra.mxu0 0
      %1612 = vmatpush.bf16.xpose.msra.mxu0 0
      %1613 = vmatpush.bf16.xpose.msra.mxu0 0
      %1614 = vmatpush.bf16.xpose.msra.mxu0 0
      %1615 = vmatpush.bf16.xpose.msra.mxu0 0
      %1616 = vmatpush.bf16.xpose.msra.mxu0 0
      %1617 = vmatpush.bf16.xpose.msra.mxu0 0
      %1618 = vmatpush.bf16.xpose.msra.mxu0 %v1609
      %1619 = vmatmul.bf16.gmra.mxu0 %v1606
      %v1620 = vpop.f32.mrf.mxu0
      %v1621 = vadd.f32 0.0, %v1620
      %v1622 = vpop.f32.mrf.mxu0
      %1623 = vdwg.mxu0
      %v1624 = vmul.f32 %v1621, 0.35355338
      %v1625 = vadd.f32 %v1624, %v350
      %v1626 = vsel %vm456, %v1625, -inf
      %1627 = vmax.xlane.f32.xlu0 %v1626
      %v1628 = vpop.xlane.xlu0 %1627
      %v1629 = vsub.f32 %v1625, %v1628
      %v1630 = vmul.f32 %v1629, 1.442695
      %v1631 = vpow.pop %v1630
      %v1632 = vsel %vm456, %v1631, 0.0
      %1633 = vadd.xlane.f32.xlu0 %v1632
      %v1634 = vpop.xlane.xlu0 %1633
      %v1635 = vrcp.pop %v1634
      %v1636 = vmul.f32 %v1631, %v1635
      %v1637 = vpack.c.bf16 %v1636, %v1636
      %v1638 = vpack.c.bf16 %v1600, %v1600
      %v1640 = vsel %vm456, %v1637, 0
      %v1643 = vsel %vm496, %v1638, 0
      %1645 = vmatpush.bf16.msra.mxu0 0
      %1646 = vmatpush.bf16.msra.mxu0 0
      %1647 = vmatpush.bf16.msra.mxu0 0
      %1648 = vmatpush.bf16.msra.mxu0 0
      %1649 = vmatpush.bf16.msra.mxu0 0
      %1650 = vmatpush.bf16.msra.mxu0 0
      %1651 = vmatpush.bf16.msra.mxu0 0
      %1652 = vmatpush.bf16.msra.mxu0 %v1643
      %1653 = vmatmul.bf16.gmra.mxu0 %v1640
      %v1654 = vpop.f32.mrf.mxu0
      %v1655 = vadd.f32 0.0, %v1654
      %v1656 = vpop.f32.mrf.mxu0
      %1657 = vdwg.mxu0
      %v1658 = vpack.c.bf16 %v1655, %v1655
      %s1659 = scalar_lea.vmem %s41, 8
      %v1660 = vld [vmem:[%s1659] sm:$0xf]
      %v1662 = vsel %vm456, %v1658, 0
      %v1665 = vsel %vm496, %v1660, 0
      %1667 = vmatpush.bf16.msra.mxu0 0
      %1668 = vmatpush.bf16.msra.mxu0 0
      %1669 = vmatpush.bf16.msra.mxu0 0
      %1670 = vmatpush.bf16.msra.mxu0 0
      %1671 = vmatpush.bf16.msra.mxu0 0
      %1672 = vmatpush.bf16.msra.mxu0 0
      %1673 = vmatpush.bf16.msra.mxu0 0
      %1674 = vmatpush.bf16.msra.mxu0 %v1665
      %1675 = vmatmul.bf16.gmra.mxu0 %v1662
      %v1676 = vpop.f32.mrf.mxu0
      %v1677 = vadd.f32 0.0, %v1676
      %v1678 = vpop.f32.mrf.mxu0
      %1679 = vdwg.mxu0
      %v1680 = vadd.f32 %v1495, %v1677
      %s1681 = scalar_lea.vmem %s35, 48
      %v1682 = vld [vmem:[%s1681] sm:$0xf]
      %v1683 = vld [vmem:[%s1681 + $0x4] sm:$0xf]
      %v1684 = vld [vmem:[%s1681 + $0x8] sm:$0xf]
      %v1685 = vld [vmem:[%s1681 + $0xc] sm:$0xf]
      %s1686 = scalar_lea.vmem %s43, 3
      %v1687 = vld [vmem:[%s1686] sm:$0x1]
      %v1689 = vperm.slane %v1687, 0
      %v1695 = vunpack.c.l.b16 %v1682
      %v1696 = vunpack.c.l.b16 %v1683
      %v1697 = vunpack.c.l.b16 %v1684
      %v1698 = vunpack.c.l.b16 %v1685
      %v1699 = vpack.c.b16 %v1696, %v1695
      %v1700 = vpack.c.b16 %v1698, %v1697
      %1703 = vmatpush.bf16.msra.mxu0 0
      %1704 = vmatpush.bf16.msra.mxu0 0
      %1705 = vmatpush.bf16.msra.mxu0 0
      %1706 = vmatpush.bf16.msra.mxu0 0
      %1707 = vmatpush.bf16.msra.mxu0 0
      %1708 = vmatpush.bf16.msra.mxu0 0
      %1709 = vmatpush.bf16.msra.mxu0 %v1700
      %1710 = vmatpush.bf16.msra.mxu0 %v1699
      %1711 = vmatmul.bf16.gmra.mxu0 %v1156
      %v1712 = vpop.f32.mrf.mxu0
      %v1713 = vadd.f32 %v1689, %v1712
      %v1714 = vpop.f32.mrf.mxu0
      %1715 = vdwg.mxu0
      %s1716 = scalar_lea.vmem %s37, 48
      %v1717 = vld [vmem:[%s1716] sm:$0xf]
      %v1718 = vld [vmem:[%s1716 + $0x4] sm:$0xf]
      %v1719 = vld [vmem:[%s1716 + $0x8] sm:$0xf]
      %v1720 = vld [vmem:[%s1716 + $0xc] sm:$0xf]
      %s1721 = scalar_lea.vmem %s45, 3
      %v1722 = vld [vmem:[%s1721] sm:$0x1]
      %v1724 = vperm.slane %v1722, 0
      %v1730 = vunpack.c.l.b16 %v1717
      %v1731 = vunpack.c.l.b16 %v1718
      %v1732 = vunpack.c.l.b16 %v1719
      %v1733 = vunpack.c.l.b16 %v1720
      %v1734 = vpack.c.b16 %v1731, %v1730
      %v1735 = vpack.c.b16 %v1733, %v1732
      %1738 = vmatpush.bf16.msra.mxu0 0
      %1739 = vmatpush.bf16.msra.mxu0 0
      %1740 = vmatpush.bf16.msra.mxu0 0
      %1741 = vmatpush.bf16.msra.mxu0 0
      %1742 = vmatpush.bf16.msra.mxu0 0
      %1743 = vmatpush.bf16.msra.mxu0 0
      %1744 = vmatpush.bf16.msra.mxu0 %v1735
      %1745 = vmatpush.bf16.msra.mxu0 %v1734
      %1746 = vmatmul.bf16.gmra.mxu0 %v1192
      %v1747 = vpop.f32.mrf.mxu0
      %v1748 = vadd.f32 %v1724, %v1747
      %v1749 = vpop.f32.mrf.mxu0
      %1750 = vdwg.mxu0
      %s1751 = scalar_lea.vmem %s39, 48
      %v1752 = vld [vmem:[%s1751] sm:$0xf]
      %v1753 = vld [vmem:[%s1751 + $0x4] sm:$0xf]
      %v1754 = vld [vmem:[%s1751 + $0x8] sm:$0xf]
      %v1755 = vld [vmem:[%s1751 + $0xc] sm:$0xf]
      %s1756 = scalar_lea.vmem %s47, 3
      %v1757 = vld [vmem:[%s1756] sm:$0x1]
      %v1759 = vperm.slane %v1757, 0
      %v1765 = vunpack.c.l.b16 %v1752
      %v1766 = vunpack.c.l.b16 %v1753
      %v1767 = vunpack.c.l.b16 %v1754
      %v1768 = vunpack.c.l.b16 %v1755
      %v1769 = vpack.c.b16 %v1766, %v1765
      %v1770 = vpack.c.b16 %v1768, %v1767
      %1773 = vmatpush.bf16.msra.mxu0 0
      %1774 = vmatpush.bf16.msra.mxu0 0
      %1775 = vmatpush.bf16.msra.mxu0 0
      %1776 = vmatpush.bf16.msra.mxu0 0
      %1777 = vmatpush.bf16.msra.mxu0 0
      %1778 = vmatpush.bf16.msra.mxu0 0
      %1779 = vmatpush.bf16.msra.mxu0 %v1770
      %1780 = vmatpush.bf16.msra.mxu0 %v1769
      %1781 = vmatmul.bf16.gmra.mxu0 %v1192
      %v1782 = vpop.f32.mrf.mxu0
      %v1783 = vadd.f32 %v1759, %v1782
      %v1784 = vpop.f32.mrf.mxu0
      %1785 = vdwg.mxu0
      %v1786 = vpack.c.bf16 %v1713, %v1713
      %v1787 = vpack.c.bf16 %v1748, %v1748
      %v1789 = vsel %vm456, %v1786, 0
      %v1792 = vsel %vm456, %v1787, 0
      %1794 = vmatpush.bf16.xpose.msra.mxu0 0
      %1795 = vmatpush.bf16.xpose.msra.mxu0 0
      %1796 = vmatpush.bf16.xpose.msra.mxu0 0
      %1797 = vmatpush.bf16.xpose.msra.mxu0 0
      %1798 = vmatpush.bf16.xpose.msra.mxu0 0
      %1799 = vmatpush.bf16.xpose.msra.mxu0 0
      %1800 = vmatpush.bf16.xpose.msra.mxu0 0
      %1801 = vmatpush.bf16.xpose.msra.mxu0 %v1792
      %1802 = vmatmul.bf16.gmra.mxu0 %v1789
      %v1803 = vpop.f32.mrf.mxu0
      %v1804 = vadd.f32 0.0, %v1803
      %v1805 = vpop.f32.mrf.mxu0
      %1806 = vdwg.mxu0
      %v1807 = vmul.f32 %v1804, 0.35355338
      %v1808 = vadd.f32 %v1807, %v350
      %v1809 = vsel %vm456, %v1808, -inf
      %1810 = vmax.xlane.f32.xlu0 %v1809
      %v1811 = vpop.xlane.xlu0 %1810
      %v1812 = vsub.f32 %v1808, %v1811
      %v1813 = vmul.f32 %v1812, 1.442695
      %v1814 = vpow.pop %v1813
      %v1815 = vsel %vm456, %v1814, 0.0
      %1816 = vadd.xlane.f32.xlu0 %v1815
      %v1817 = vpop.xlane.xlu0 %1816
      %v1818 = vrcp.pop %v1817
      %v1819 = vmul.f32 %v1814, %v1818
      %v1820 = vpack.c.bf16 %v1819, %v1819
      %v1821 = vpack.c.bf16 %v1783, %v1783
      %v1823 = vsel %vm456, %v1820, 0
      %v1826 = vsel %vm496, %v1821, 0
      %1828 = vmatpush.bf16.msra.mxu0 0
      %1829 = vmatpush.bf16.msra.mxu0 0
      %1830 = vmatpush.bf16.msra.mxu0 0
      %1831 = vmatpush.bf16.msra.mxu0 0
      %1832 = vmatpush.bf16.msra.mxu0 0
      %1833 = vmatpush.bf16.msra.mxu0 0
      %1834 = vmatpush.bf16.msra.mxu0 0
      %1835 = vmatpush.bf16.msra.mxu0 %v1826
      %1836 = vmatmul.bf16.gmra.mxu0 %v1823
      %v1837 = vpop.f32.mrf.mxu0
      %v1838 = vadd.f32 0.0, %v1837
      %v1839 = vpop.f32.mrf.mxu0
      %1840 = vdwg.mxu0
      %v1841 = vpack.c.bf16 %v1838, %v1838
      %s1842 = scalar_lea.vmem %s41, 12
      %v1843 = vld [vmem:[%s1842] sm:$0xf]
      %v1845 = vsel %vm456, %v1841, 0
      %v1848 = vsel %vm496, %v1843, 0
      %1850 = vmatpush.bf16.msra.mxu0 0
      %1851 = vmatpush.bf16.msra.mxu0 0
      %1852 = vmatpush.bf16.msra.mxu0 0
      %1853 = vmatpush.bf16.msra.mxu0 0
      %1854 = vmatpush.bf16.msra.mxu0 0
      %1855 = vmatpush.bf16.msra.mxu0 0
      %1856 = vmatpush.bf16.msra.mxu0 0
      %1857 = vmatpush.bf16.msra.mxu0 %v1848
      %1858 = vmatmul.bf16.gmra.mxu0 %v1845
      %v1859 = vpop.f32.mrf.mxu0
      %v1860 = vadd.f32 0.0, %v1859
      %v1861 = vpop.f32.mrf.mxu0
      %1862 = vdwg.mxu0
      %v1863 = vadd.f32 %v1680, %v1860
      %v1864 = vld [vmem:[%s49] sm:$0x1]
      %v1866 = vperm.slane %v1864, 0
      %v1868 = vadd.f32 %v1863, %v1866
      %v1869 = vadd.f32 %v1132, %v1868
      %v1870 = vsel %vm238, %v1869, 0.0
      %1871 = vadd.xlane.f32.xlu0 %v1870
      %v1872 = vpop.xlane.xlu0 %1871
      %v1873 = vmul.f32 %v1872, %v1103
      %v1874 = vsub.f32 %v1869, %v1873
      %v1875 = vmul.f32 %v1874, %v1874
      %v1876 = vsel %vm238, %v1875, 0.0
      %1877 = vadd.xlane.f32.xlu0 %v1876
      %v1878 = vpop.xlane.xlu0 %1877
      %v1879 = vmul.f32 %v1878, %v1103
      %v1880 = vadd.f32 %v1879, 1e-05
      %v1881 = vrsqrt.pop %v1880
      %v1882 = vmul.f32 %v1881, %v1880
      %v1883 = vmul.f32 %v1882, %v1881
      %v1884 = vmul.f32 0.5, %v1883
      %v1885 = vsub.f32 1.5, %v1884
      %v1886 = vmul.f32 %v1881, %v1885
      %vm1887 = vweird.f32 %v1880
      %vm1888 = vweird.f32 %v1881
      %vm1889 = vmor %vm1887, %vm1888
      %v1890 = vsel %vm1889, %v1881, %v1886
      %v1891 = vmul.f32 %v1874, %v1890
      %v1892 = vld [vmem:[%s63] sm:$0x1]
      %v1894 = vperm.slane %v1892, 0
      %v1896 = vmul.f32 %v1891, %v1894
      %v1897 = vld [vmem:[%s65] sm:$0x1]
      %v1899 = vperm.slane %v1897, 0
      %v1901 = vadd.f32 %v1896, %v1899
      %v1902 = vpack.c.bf16 %v1901, %v1901
      %v1903 = vld [vmem:[%s51] sm:$0xf]
      %v1904 = vld [vmem:[%s51 + $0x4] sm:$0xf]
      %v1905 = vld [vmem:[%s51 + $0x8] sm:$0xf]
      %v1906 = vld [vmem:[%s51 + $0xc] sm:$0xf]
      %v1907 = vld [vmem:[%s53] sm:$0x1]
      %v1909 = vperm.slane %v1907, 0
      %v1915 = vunpack.c.l.b16 %v1903
      %v1916 = vunpack.c.l.b16 %v1904
      %v1917 = vunpack.c.l.b16 %v1905
      %v1918 = vunpack.c.l.b16 %v1906
      %v1919 = vpack.c.b16 %v1916, %v1915
      %v1920 = vpack.c.b16 %v1918, %v1917
      %v1924 = vsel %vm238, %v1902, 0
      %1926 = vmatpush.bf16.msra.mxu0 0
      %1927 = vmatpush.bf16.msra.mxu0 0
      %1928 = vmatpush.bf16.msra.mxu0 0
      %1929 = vmatpush.bf16.msra.mxu0 0
      %1930 = vmatpush.bf16.msra.mxu0 0
      %1931 = vmatpush.bf16.msra.mxu0 0
      %1932 = vmatpush.bf16.msra.mxu0 %v1920
      %1933 = vmatpush.bf16.msra.mxu0 %v1919
      %1934 = vmatmul.bf16.gmra.mxu0 %v1924
      %v1935 = vpop.f32.mrf.mxu0
      %v1936 = vadd.f32 %v1909, %v1935
      %v1937 = vpop.f32.mrf.mxu0
      %1938 = vdwg.mxu0
      %v1939 = vmax.f32 %v1936, 0.0
      %v1940 = vpack.c.bf16 %v1939, %v1939
      %v1941 = vld [vmem:[%s55] sm:$0xf]
      %v1942 = vld [vmem:[%s55 + $0x4] sm:$0xf]
      %v1943 = vld [vmem:[%s55 + $0x8] sm:$0xf]
      %v1944 = vld [vmem:[%s55 + $0xc] sm:$0xf]
      %v1945 = vld [vmem:[%s55 + $0x10] sm:$0xf]
      %v1946 = vld [vmem:[%s55 + $0x14] sm:$0xf]
      %v1947 = vld [vmem:[%s55 + $0x18] sm:$0xf]
      %v1948 = vld [vmem:[%s55 + $0x1c] sm:$0xf]
      %v1949 = vld [vmem:[%s57] sm:$0x1]
      %v1951 = vperm.slane %v1949, 0
      %v1961 = vunpack.c.l.b16 %v1941
      %v1962 = vunpack.c.l.b16 %v1942
      %v1963 = vunpack.c.l.b16 %v1943
      %v1964 = vunpack.c.l.b16 %v1944
      %v1965 = vunpack.c.l.b16 %v1945
      %v1966 = vunpack.c.l.b16 %v1946
      %v1967 = vunpack.c.l.b16 %v1947
      %v1968 = vunpack.c.l.b16 %v1948
      %v1969 = vpack.c.b16 %v1962, %v1961
      %v1970 = vpack.c.b16 %v1964, %v1963
      %v1971 = vpack.c.b16 %v1966, %v1965
      %v1972 = vpack.c.b16 %v1968, %v1967
      %v1978 = vsel %vm319, %v1940, 0
      %1980 = vmatpush.bf16.msra.mxu0 0
      %1981 = vmatpush.bf16.msra.mxu0 0
      %1982 = vmatpush.bf16.msra.mxu0 0
      %1983 = vmatpush.bf16.msra.mxu0 0
      %1984 = vmatpush.bf16.msra.mxu0 %v1972
      %1985 = vmatpush.bf16.msra.mxu0 %v1971
      %1986 = vmatpush.bf16.msra.mxu0 %v1970
      %1987 = vmatpush.bf16.msra.mxu0 %v1969
      %1988 = vmatmul.bf16.gmra.mxu0 %v1978
      %v1989 = vpop.f32.mrf.mxu0
      %v1990 = vadd.f32 %v1951, %v1989
      %v1991 = vpop.f32.mrf.mxu0
      %1992 = vdwg.mxu0
      %v1993 = vadd.f32 %v1901, %v1990
      %v1994 = vsel %vm238, %v1993, 0.0
      %1995 = vadd.xlane.f32.xlu0 %v1994
      %v1996 = vpop.xlane.xlu0 %1995
      %v1997 = vmul.f32 %v1996, %v1103
      %v1998 = vsub.f32 %v1993, %v1997
      %v1999 = vmul.f32 %v1998, %v1998
      %v2000 = vsel %vm238, %v1999, 0.0
      %2001 = vadd.xlane.f32.xlu0 %v2000
      %v2002 = vpop.xlane.xlu0 %2001
      %v2003 = vmul.f32 %v2002, %v1103
      %v2004 = vadd.f32 %v2003, 1e-05
      %v2005 = vrsqrt.pop %v2004
      %v2006 = vmul.f32 %v2005, %v2004
      %v2007 = vmul.f32 %v2006, %v2005
      %v2008 = vmul.f32 0.5, %v2007
      %v2009 = vsub.f32 1.5, %v2008
      %v2010 = vmul.f32 %v2005, %v2009
      %vm2011 = vweird.f32 %v2004
      %vm2012 = vweird.f32 %v2005
      %vm2013 = vmor %vm2011, %vm2012
      %v2014 = vsel %vm2013, %v2005, %v2010
      %v2015 = vmul.f32 %v1998, %v2014
      %v2016 = vld [vmem:[%s67] sm:$0x1]
      %v2018 = vperm.slane %v2016, 0
      %v2020 = vmul.f32 %v2015, %v2018
      %v2021 = vld [vmem:[%s69] sm:$0x1]
      %v2023 = vperm.slane %v2021, 0
      %v2025 = vadd.f32 %v2020, %v2023
      %2026 = vst.msk [vmem:[#allocation5] sm:$0xff] %vm238, %v2025
    $region149: #{tpu_custom_call.1} parent=1 // pred_fallthru
      _
    // Predicated region
    $region150: #{tpu_custom_call.1} parent=1 // pred_check
      _
    $region151: #{tpu_custom_call.1} parent=1 // pred_check_branch
      %2028 = sbr.rel (0) target = $region153
    $region152: #{tpu_custom_call.1} parent=1 // pred_region
      %2030 = vsyncadd [#allocation4], 0
      %s2032 = sshll.u32 [#allocation3], 4
      %s2033 = int_to_ptr.vmem [resolvable:$true] %s2032
      %s2034 = sshll.u32 %s71, 4
      %s2035 = int_to_ptr.hbm [resolvable:$true] %s2034
      %2037 = dma.vmem_to_hbm [thread:$0]  %s2033, 128, %s2035, [#allocation4]
    $region153: #{tpu_custom_call.1} parent=1 // pred_fallthru
      _
    // Predicated region
    $region154: #{tpu_custom_call.1} parent=1 // pred_check
      _
    $region155: #{tpu_custom_call.1} parent=1 // pred_check_branch
      %2039 = sbr.rel (0) target = $region157
    $region156: #{tpu_custom_call.1} parent=1 // pred_region
      %2041 = vsyncadd [#allocation6], 0
      %s2043 = sshll.u32 [#allocation5], 4
      %s2044 = int_to_ptr.vmem [resolvable:$true] %s2043
      %s2045 = sshll.u32 %s73, 4
      %s2046 = int_to_ptr.hbm [resolvable:$true] %s2045
      %2048 = dma.vmem_to_hbm [thread:$0]  %s2044, 128, %s2046, [#allocation6]
    $region157: #{tpu_custom_call.1} parent=1 // pred_fallthru
      _
    // Predicated region
    $region158: #{tpu_custom_call.1} parent=1 // pred_check
      _
    $region159: #{tpu_custom_call.1} parent=1 // pred_check_branch
      %2050 = sbr.rel (0) target = $region161
    $region160: #{tpu_custom_call.1} parent=1 // pred_region
      %2052 = dma.done [#allocation4], 128
    $region161: #{tpu_custom_call.1} parent=1 // pred_fallthru
      _
    // Predicated region
    $region162: #{tpu_custom_call.1} parent=1 // pred_check
      _
    $region163: #{tpu_custom_call.1} parent=1 // pred_check_branch
      %2054 = sbr.rel (0) target = $region165
    $region164: #{tpu_custom_call.1} parent=1 // pred_region
      %2056 = dma.done [#allocation6], 128
    $region165: #{tpu_custom_call.1} parent=1 // pred_fallthru
      _
    %2057 = vsyncpa [#allocation4], 1
    %2058 = vsyncpa [#allocation6], 1

</llo_original>
